<compile_context>
chip_gen: v5e
topology: v5e:2x2
jax: 0.10.0
libtpu: 0.0.40
codegen_flags: <defaults>
</compile_context>

<pallas_src>
import jax
import jax.numpy as jnp
from jax import lax
from jax.experimental import pallas as pl
from jax.experimental.pallas import tpu as pltpu

KH = KW = 3  # fixed 3x3 kernel, stride=1, padding=1 (as in ConvBlock)


# --------------------------------------------------------------------------------- #
# Kernel
# --------------------------------------------------------------------------------- #
def _conv3x3_prelu_kernel(x_ref, w_ref, b_ref, a_ref, o_ref):
    """One (batch n, H-tile t) grid step.

    x_ref : (1, H+2, W+2, Cin)      spatially pre-padded input, resident across t
    w_ref : (KH*KW, Cin, Cout_pad)  conv taps (zero cols in lane-padded channels,
                                    zero rows for channel-padded inputs)
    b_ref : (1, 1, Cout_pad) f32    bias        (zero in padded channels)
    a_ref : (1, 1, Cout_pad) f32    PReLU slope (zero in padded channels)
    o_ref : (1, tile_h, W, Cout_pad) output tile (lane-dense: Cout_pad % 128 == 0)
    """
    tile_h = o_ref.shape[1]
    W = o_ref.shape[2]
    cout_pad = o_ref.shape[3]

    t = pl.program_id(1)
    row0 = t * tile_h  # top padded-input row of tap (kh=0, kw=0) for this tile

    # Nine K=Cin MXU matmuls accumulated in f32, read straight from the padded
    # resident input: no halo slab, no im2col slab, no per-step slab zeroing.
    # (kw shifts land on the sublane axis -> XLU rotate, a free-ish slot.)
    acc = jnp.zeros((tile_h, W, cout_pad), jnp.float32)
    for idx in range(KH * KW):
        kh, kw = idx // KW, idx % KW
        tap = x_ref[0, pl.ds(row0 + kh, tile_h), pl.ds(kw, W), :]
        acc += jnp.einsum("hwc,cf->hwf", tap, w_ref[idx],
                          preferred_element_type=jnp.float32)

    # f32 epilogue: bias + per-channel PReLU, lane-dense (unmasked) store.
    acc = acc + b_ref[...]
    y = jnp.where(acc > 0, acc, a_ref[...] * acc)
    o_ref[0] = y.astype(o_ref.dtype)


# --------------------------------------------------------------------------------- #
# Host-side helpers
# --------------------------------------------------------------------------------- #
def _round_up(x, m):
    return (x + m - 1) // m * m


def _vmem_capacity_bytes():
    """Per-core VMEM capacity (generation-aware); conservative fallback = v7x."""
    try:
        cap = int(pltpu.get_tpu_info().vmem_capacity_bytes)
        if cap > 0:
            return cap
    except Exception:
        pass
    return 64 * 1024 * 1024


def _footprint_bytes(H, W, cin, cout_pad, tile_h, in_bytes, out_bytes,
                     resident_bufs=2):
    """Conservative per-step VMEM footprint (resident image + weights counted at
    `resident_bufs` copies; the output block is double-buffered by the pipeline)."""
    x_res = resident_bufs * (H + 2) * (W + 2) * cin * in_bytes
    wgt = resident_bufs * KH * KW * cin * cout_pad * in_bytes
    out_blk = 2 * tile_h * W * cout_pad * out_bytes
    acc = tile_h * W * cout_pad * 4                      # f32 accumulator
    taps = 2 * tile_h * W * cin * max(in_bytes, 4)       # tap-load intermediates
    small = 4 * cout_pad * 4                             # bias / alpha blocks
    return x_res + wgt + out_blk + acc + taps + small


def _pick_tile_h(H, W, cin, cout_pad, in_bytes, out_bytes, budget_bytes):
    """Largest divisor of H whose footprint fits the (per-generation) VMEM budget."""
    best = 1
    for th in range(1, H + 1):
        if H % th:
            continue
        if _footprint_bytes(H, W, cin, cout_pad, th, in_bytes, out_bytes) <= budget_bytes:
            best = th
    return best


def _build_conv_call(N, H, W, cin, cout_pad, tile_h, out_dtype, vmem_limit,
                     flops, bytes_accessed, single_buffer_resident):
    n_t = H // tile_h

    def resident_spec(shape, imap):
        # Blocks whose index never changes within a batch element: single-buffer.
        if single_buffer_resident:
            return pl.BlockSpec(shape, imap, pipeline_mode=pl.Buffered(1))
        return pl.BlockSpec(shape, imap)

    # Megacore: shard across batch when possible so both v7x TensorCores don't DMA
    # the same full image; only shard across t when there is a single batch element.
    if N >= 2:
        dims = ("parallel", "arbitrary")
    else:
        dims = ("parallel", "parallel")

    return pl.pallas_call(
        _conv3x3_prelu_kernel,
        out_shape=jax.ShapeDtypeStruct((N, H, W, cout_pad), out_dtype),
        grid_spec=pltpu.PrefetchScalarGridSpec(
            num_scalar_prefetch=0,
            grid=(N, n_t),
            in_specs=[
                # full padded image; index map ignores t -> DMA'd once per batch
                # element, stays resident in VMEM across the H-tile axis.
                resident_spec((1, H + 2, W + 2, cin), lambda n, t: (n, 0, 0, 0)),
                resident_spec((KH * KW, cin, cout_pad), lambda n, t: (0, 0, 0)),
                pl.BlockSpec((1, 1, cout_pad), lambda n, t: (0, 0, 0)),
                pl.BlockSpec((1, 1, cout_pad), lambda n, t: (0, 0, 0)),
            ],
            out_specs=pl.BlockSpec((1, tile_h, W, cout_pad),
                                   lambda n, t: (n, t, 0, 0)),
        ),
        compiler_params=pltpu.CompilerParams(
            dimension_semantics=dims,
            vmem_limit_bytes=vmem_limit),
        cost_estimate=pl.CostEstimate(flops=flops, transcendentals=0,
                                      bytes_accessed=bytes_accessed),
    )


# --------------------------------------------------------------------------------- #
# Public forward
# --------------------------------------------------------------------------------- #
def conv_block_forward_nhwc(x_nhwc, w_hwio, bias, alpha, *, mxu_dtype=None,
                            out_dtype=jnp.float32, tile_h=None,
                            keep_padded_channels=True):
    """ConvBlock forward in the kernel-native NHWC layout.

    Returns the output with channels padded to a multiple of 128 (padded channels
    are exactly zero) unless keep_padded_channels=False.  A chained Unet keeps the
    padding end-to-end (next layer's extra weight rows are zero) and slices only at
    the model boundary, avoiding output write amplification / an extra HBM pass.
    """
    N, H, W, cin = x_nhwc.shape
    kh_, kw_, cin_w, cout = w_hwio.shape
    assert (kh_, kw_) == (KH, KW)
    assert cin_w <= cin, "weight input channels exceed activation channels"

    cdt = jnp.dtype(x_nhwc.dtype if mxu_dtype is None else mxu_dtype)
    odt = jnp.dtype(out_dtype)
    cout_pad = _round_up(cout, 128)   # lane-dense output (unmasked 128-lane stores)

    cap = _vmem_capacity_bytes()
    budget = cap // 2                 # conservative tile budget (leave pipeline headroom)
    vmem_limit = int(cap * 0.8)       # actually claim the per-generation VMEM

    if tile_h is None:
        tile_h = _pick_tile_h(H, W, cin, cout_pad, cdt.itemsize, odt.itemsize, budget)
    if H % tile_h:
        raise ValueError(f"tile_h={tile_h} must divide H={H}")

    # Spatial pre-pad once in HBM (~(1+2/H)(1+2/W) extra traffic); removes the
    # in-kernel halo slab, its full-slab zeroing and its misaligned +1-offset writes.
    xk = jnp.pad(x_nhwc.astype(cdt), ((0, 0), (1, 1), (1, 1), (0, 0)))

    # Conv taps: (KH*KW, Cin, Cout_pad).  Zero rows for activation channels beyond
    # the weight's Cin (chained padded-channel inputs), zero cols for lane padding.
    wk = jnp.zeros((KH, KW, cin, cout_pad), dtype=jnp.float32)
    wk = wk.at[:, :, :cin_w, :cout].set(w_hwio.astype(jnp.float32))
    wk = wk.reshape(KH * KW, cin, cout_pad).astype(cdt)

    bk = jnp.pad(bias.astype(jnp.float32), (0, cout_pad - cout)).reshape(1, 1, cout_pad)
    ak = jnp.pad(alpha.astype(jnp.float32), (0, cout_pad - cout)).reshape(1, 1, cout_pad)

    flops = 2 * N * H * W * KH * KW * cin * cout_pad
    bytes_accessed = (N * (H + 2) * (W + 2) * cin * cdt.itemsize
                      + KH * KW * cin * cout_pad * cdt.itemsize
                      + 2 * cout_pad * 4
                      + N * H * W * cout_pad * odt.itemsize)

    # Try single-buffered resident blocks first (pipeline_mode=pl.Buffered(1));
    # fall back to default double-buffering if the installed Pallas rejects it.
    last_err = None
    out_padded = None
    for single_buffer in (True, False):
        try:
            call = _build_conv_call(N, H, W, cin, cout_pad, tile_h, odt,
                                    vmem_limit, flops, bytes_accessed,
                                    single_buffer)
            out_padded = call(xk, wk, bk, ak)
            last_err = None
            break
        except Exception as e:      # pragma: no cover - version-dependent fallback
            last_err = e
    if last_err is not None:
        raise last_err

    if keep_padded_channels:
        return out_padded
    return out_padded[..., :cout]


def conv_block_forward_nchw(x_nchw, w_hwio, bias, alpha, **kwargs):
    """PyTorch-layout adapter: layout conversion / channel slice only at the boundary."""
    x_nhwc = jnp.transpose(x_nchw, (0, 2, 3, 1))
    y = conv_block_forward_nhwc(x_nhwc, w_hwio, bias, alpha,
                                keep_padded_channels=False, **kwargs)
    return jnp.transpose(y, (0, 3, 1, 2))


def reference_nchw(x_nchw, w_hwio, bias, alpha, mxu_dtype=None):
    """Pure-JAX reference (lax conv) for correctness checks."""
    cdt = x_nchw.dtype if mxu_dtype is None else mxu_dtype
    x = jnp.transpose(x_nchw, (0, 2, 3, 1)).astype(cdt)
    y = lax.conv_general_dilated(
        x, w_hwio.astype(cdt), window_strides=(1, 1), padding=((1, 1), (1, 1)),
        dimension_numbers=("NHWC", "HWIO", "NHWC"),
        preferred_element_type=jnp.float32)
    y = y + bias[None, None, None, :].astype(jnp.float32)
    y = jnp.where(y > 0, y, alpha[None, None, None, :].astype(jnp.float32) * y)
    return jnp.transpose(y, (0, 3, 1, 2))


# --------------------------------------------------------------------------------- #
# Self-test
# --------------------------------------------------------------------------------- #
if __name__ == "__main__":
    key = jax.random.PRNGKey(0)

    def make_convblock_params(k, cin, cout):
        k_w, k_b = jax.random.split(k)
        fan_in = cin * KH * KW
        fan_out = cout * KH * KW
        bound = (6.0 / (fan_in + fan_out)) ** 0.5          # xavier_uniform_ on conv weight
        w = jax.random.uniform(k_w, (KH, KW, cin, cout),
                               minval=-bound, maxval=bound, dtype=jnp.float32)
        b_bound = 1.0 / (fan_in ** 0.5)                    # PyTorch default conv-bias init
        b = jax.random.uniform(k_b, (cout,), minval=-b_bound, maxval=b_bound,
                               dtype=jnp.float32)
        a = jnp.full((cout,), 0.25, dtype=jnp.float32)     # PReLU per-channel init
        return w, b, a

    k1, k2, k3, kx1, kx2 = jax.random.split(key, 5)

    # --- Test 1: ConvBlock(ndims=2, 4 -> 8), toy shapes, f32 end to end ------------
    N, Cin, H, W = 2, 4, 16, 16
    Cout = 8
    x = jax.random.normal(kx1, (N, Cin, H, W), dtype=jnp.float32)
    wA, bA, aA = make_convblock_params(k1, Cin, Cout)

    out = jax.block_until_ready(conv_block_forward_nchw(x, wA, bA, aA))
    ref = reference_nchw(x, wA, bA, aA)
    assert out.shape == (N, Cout, H, W)
    assert jnp.allclose(out, ref, atol=1e-4, rtol=1e-4), "f32 mismatch vs reference"

    # --- Test 2: Unet-like channels (16 -> 32), bf16 MXU path, multi-tile H --------
    N2, Cin2, H2, W2, Cout2 = 2, 16, 32, 16, 32
    x2 = jax.random.normal(kx2, (N2, Cin2, H2, W2), dtype=jnp.float32)
    wB, bB, aB = make_convblock_params(k2, Cin2, Cout2)

    out2 = jax.block_until_ready(
        conv_block_forward_nchw(x2, wB, bB, aB, mxu_dtype=jnp.bfloat16, tile_h=8))
    ref2 = reference_nchw(x2, wB, bB, aB, mxu_dtype=jnp.bfloat16)
    assert out2.shape == (N2, Cout2, H2, W2)
    assert jnp.allclose(out2, ref2, atol=1e-2, rtol=1e-2), "bf16 mismatch vs reference"

    # --- Test 3: two chained ConvBlocks kept channel-padded end-to-end (NHWC) ------
    # Demonstrates the review's "no intermediate slice" path: layer-1 output stays
    # padded to 128 channels; layer-2 weight rows for the padded channels are zero.
    wC, bC, aC = make_convblock_params(k3, Cout, Cout)          # 8 -> 8
    x_nhwc = jnp.transpose(x, (0, 2, 3, 1))
    h1 = conv_block_forward_nhwc(x_nhwc, wA, bA, aA)            # (N, H, W, 128) padded
    h2 = conv_block_forward_nhwc(h1, wC, bC, aC)                # padded channels stay 0
    out3 = jax.block_until_ready(jnp.transpose(h2[..., :Cout], (0, 3, 1, 2)))
    ref3 = reference_nchw(reference_nchw(x, wA, bA, aA), wC, bC, aC)
    assert out3.shape == (N, Cout, H, W)
    assert jnp.allclose(out3, ref3, atol=1e-4, rtol=1e-4), "chained mismatch vs reference"

    print("KERNEL_OK")
</pallas_src>

<mosaic_0001>
module attributes {stable_mosaic.version = 11 : i64} {
  func.func @_conv3x3_prelu_kernel(%arg0: i32, %arg1: i32, %arg2: memref<1x18x18x4xf32, #tpu.memory_space<vmem>>, %arg3: memref<9x4x128xf32, #tpu.memory_space<vmem>>, %arg4: memref<1x1x128xf32, #tpu.memory_space<vmem>>, %arg5: memref<1x1x128xf32, #tpu.memory_space<vmem>>, %arg6: memref<1x16x16x128xf32, #tpu.memory_space<vmem>>) attributes {dimension_semantics = [#tpu.dimension_semantics<parallel>, #tpu.dimension_semantics<arbitrary>], iteration_bounds = array<i64: 2, 1>, scalar_prefetch = 0 : i64, scratch_operands = 0 : i64, tpu.core_type = #tpu.core_type<tc>, window_params = [{pipeline_mode = #tpu.pipeline_mode<synchronous>, transform_indices = @transform_0, window_bounds = array<i64: 1, 18, 18, 4>}, {pipeline_mode = #tpu.pipeline_mode<synchronous>, transform_indices = @transform_1, window_bounds = array<i64: 9, 4, 128>}, {pipeline_mode = #tpu.pipeline_mode<synchronous>, transform_indices = @transform_2, window_bounds = array<i64: 1, 1, 128>}, {pipeline_mode = #tpu.pipeline_mode<synchronous>, transform_indices = @transform_3, window_bounds = array<i64: 1, 1, 128>}, {transform_indices = @transform_4, window_bounds = array<i64: 1, 16, 16, 128>}]} {
    %c16_i32 = arith.constant 16 : i32
    %0 = arith.muli %arg1, %c16_i32 : i32
    %cst = arith.constant 0.000000e+00 : f32
    %1 = vector.broadcast %cst : f32 to vector<16x16x128xf32>
    %c0_i32 = arith.constant 0 : i32
    %2 = arith.addi %0, %c0_i32 : i32
    %c0 = arith.constant 0 : index
    %3 = arith.index_cast %2 : i32 to index
    %c0_0 = arith.constant 0 : index
    %c0_1 = arith.constant 0 : index
    %4 = vector.load %arg2[%c0, %3, %c0_0, %c0_1] : memref<1x18x18x4xf32, #tpu.memory_space<vmem>>, vector<1x16x16x4xf32>
    %5 = vector.shape_cast %4 : vector<1x16x16x4xf32> to vector<16x16x4xf32>
    %c0_2 = arith.constant 0 : index
    %c0_3 = arith.constant 0 : index
    %c0_4 = arith.constant 0 : index
    %6 = vector.load %arg3[%c0_2, %c0_3, %c0_4] : memref<9x4x128xf32, #tpu.memory_space<vmem>>, vector<1x4x128xf32>
    %7 = vector.shape_cast %6 : vector<1x4x128xf32> to vector<4x128xf32>
    "tpu.trace_start"() <{level = 10 : i32, message = "hwc,cf->hwf"}> : () -> ()
    %cst_5 = arith.constant dense<0.000000e+00> : vector<16x16x128xf32>
    %8 = tpu.matmul %5, %7, %cst_5 {dimension_numbers = #tpu.dot_dimension_numbers<[2], [0], [0, 1], [1], [0, 0, 0, 1, 1, 1], [], []>} : vector<16x16x4xf32>, vector<4x128xf32>, vector<16x16x128xf32> -> vector<16x16x128xf32>
    "tpu.trace_stop"() : () -> ()
    %9 = arith.addf %1, %8 : vector<16x16x128xf32>
    %c0_i32_6 = arith.constant 0 : i32
    %10 = arith.addi %0, %c0_i32_6 : i32
    %c0_7 = arith.constant 0 : index
    %11 = arith.index_cast %10 : i32 to index
    %c1 = arith.constant 1 : index
    %c0_8 = arith.constant 0 : index
    %12 = vector.load %arg2[%c0_7, %11, %c1, %c0_8] : memref<1x18x18x4xf32, #tpu.memory_space<vmem>>, vector<1x16x16x4xf32>
    %13 = vector.shape_cast %12 : vector<1x16x16x4xf32> to vector<16x16x4xf32>
    %c1_9 = arith.constant 1 : index
    %c0_10 = arith.constant 0 : index
    %c0_11 = arith.constant 0 : index
    %14 = vector.load %arg3[%c1_9, %c0_10, %c0_11] : memref<9x4x128xf32, #tpu.memory_space<vmem>>, vector<1x4x128xf32>
    %15 = vector.shape_cast %14 : vector<1x4x128xf32> to vector<4x128xf32>
    "tpu.trace_start"() <{level = 10 : i32, message = "hwc,cf->hwf"}> : () -> ()
    %cst_12 = arith.constant dense<0.000000e+00> : vector<16x16x128xf32>
    %16 = tpu.matmul %13, %15, %cst_12 {dimension_numbers = #tpu.dot_dimension_numbers<[2], [0], [0, 1], [1], [0, 0, 0, 1, 1, 1], [], []>} : vector<16x16x4xf32>, vector<4x128xf32>, vector<16x16x128xf32> -> vector<16x16x128xf32>
    "tpu.trace_stop"() : () -> ()
    %17 = arith.addf %9, %16 : vector<16x16x128xf32>
    %c0_i32_13 = arith.constant 0 : i32
    %18 = arith.addi %0, %c0_i32_13 : i32
    %c0_14 = arith.constant 0 : index
    %19 = arith.index_cast %18 : i32 to index
    %c2 = arith.constant 2 : index
    %c0_15 = arith.constant 0 : index
    %20 = vector.load %arg2[%c0_14, %19, %c2, %c0_15] : memref<1x18x18x4xf32, #tpu.memory_space<vmem>>, vector<1x16x16x4xf32>
    %21 = vector.shape_cast %20 : vector<1x16x16x4xf32> to vector<16x16x4xf32>
    %c2_16 = arith.constant 2 : index
    %c0_17 = arith.constant 0 : index
    %c0_18 = arith.constant 0 : index
    %22 = vector.load %arg3[%c2_16, %c0_17, %c0_18] : memref<9x4x128xf32, #tpu.memory_space<vmem>>, vector<1x4x128xf32>
    %23 = vector.shape_cast %22 : vector<1x4x128xf32> to vector<4x128xf32>
    "tpu.trace_start"() <{level = 10 : i32, message = "hwc,cf->hwf"}> : () -> ()
    %cst_19 = arith.constant dense<0.000000e+00> : vector<16x16x128xf32>
    %24 = tpu.matmul %21, %23, %cst_19 {dimension_numbers = #tpu.dot_dimension_numbers<[2], [0], [0, 1], [1], [0, 0, 0, 1, 1, 1], [], []>} : vector<16x16x4xf32>, vector<4x128xf32>, vector<16x16x128xf32> -> vector<16x16x128xf32>
    "tpu.trace_stop"() : () -> ()
    %25 = arith.addf %17, %24 : vector<16x16x128xf32>
    %c1_i32 = arith.constant 1 : i32
    %26 = arith.addi %0, %c1_i32 : i32
    %c0_20 = arith.constant 0 : index
    %27 = arith.index_cast %26 : i32 to index
    %c0_21 = arith.constant 0 : index
    %c0_22 = arith.constant 0 : index
    %28 = vector.load %arg2[%c0_20, %27, %c0_21, %c0_22] : memref<1x18x18x4xf32, #tpu.memory_space<vmem>>, vector<1x16x16x4xf32>
    %29 = vector.shape_cast %28 : vector<1x16x16x4xf32> to vector<16x16x4xf32>
    %c3 = arith.constant 3 : index
    %c0_23 = arith.constant 0 : index
    %c0_24 = arith.constant 0 : index
    %30 = vector.load %arg3[%c3, %c0_23, %c0_24] : memref<9x4x128xf32, #tpu.memory_space<vmem>>, vector<1x4x128xf32>
    %31 = vector.shape_cast %30 : vector<1x4x128xf32> to vector<4x128xf32>
    "tpu.trace_start"() <{level = 10 : i32, message = "hwc,cf->hwf"}> : () -> ()
    %cst_25 = arith.constant dense<0.000000e+00> : vector<16x16x128xf32>
    %32 = tpu.matmul %29, %31, %cst_25 {dimension_numbers = #tpu.dot_dimension_numbers<[2], [0], [0, 1], [1], [0, 0, 0, 1, 1, 1], [], []>} : vector<16x16x4xf32>, vector<4x128xf32>, vector<16x16x128xf32> -> vector<16x16x128xf32>
    "tpu.trace_stop"() : () -> ()
    %33 = arith.addf %25, %32 : vector<16x16x128xf32>
    %c1_i32_26 = arith.constant 1 : i32
    %34 = arith.addi %0, %c1_i32_26 : i32
    %c0_27 = arith.constant 0 : index
    %35 = arith.index_cast %34 : i32 to index
    %c1_28 = arith.constant 1 : index
    %c0_29 = arith.constant 0 : index
    %36 = vector.load %arg2[%c0_27, %35, %c1_28, %c0_29] : memref<1x18x18x4xf32, #tpu.memory_space<vmem>>, vector<1x16x16x4xf32>
    %37 = vector.shape_cast %36 : vector<1x16x16x4xf32> to vector<16x16x4xf32>
    %c4 = arith.constant 4 : index
    %c0_30 = arith.constant 0 : index
    %c0_31 = arith.constant 0 : index
    %38 = vector.load %arg3[%c4, %c0_30, %c0_31] : memref<9x4x128xf32, #tpu.memory_space<vmem>>, vector<1x4x128xf32>
    %39 = vector.shape_cast %38 : vector<1x4x128xf32> to vector<4x128xf32>
    "tpu.trace_start"() <{level = 10 : i32, message = "hwc,cf->hwf"}> : () -> ()
    %cst_32 = arith.constant dense<0.000000e+00> : vector<16x16x128xf32>
    %40 = tpu.matmul %37, %39, %cst_32 {dimension_numbers = #tpu.dot_dimension_numbers<[2], [0], [0, 1], [1], [0, 0, 0, 1, 1, 1], [], []>} : vector<16x16x4xf32>, vector<4x128xf32>, vector<16x16x128xf32> -> vector<16x16x128xf32>
    "tpu.trace_stop"() : () -> ()
    %41 = arith.addf %33, %40 : vector<16x16x128xf32>
    %c1_i32_33 = arith.constant 1 : i32
    %42 = arith.addi %0, %c1_i32_33 : i32
    %c0_34 = arith.constant 0 : index
    %43 = arith.index_cast %42 : i32 to index
    %c2_35 = arith.constant 2 : index
    %c0_36 = arith.constant 0 : index
    %44 = vector.load %arg2[%c0_34, %43, %c2_35, %c0_36] : memref<1x18x18x4xf32, #tpu.memory_space<vmem>>, vector<1x16x16x4xf32>
    %45 = vector.shape_cast %44 : vector<1x16x16x4xf32> to vector<16x16x4xf32>
    %c5 = arith.constant 5 : index
    %c0_37 = arith.constant 0 : index
    %c0_38 = arith.constant 0 : index
    %46 = vector.load %arg3[%c5, %c0_37, %c0_38] : memref<9x4x128xf32, #tpu.memory_space<vmem>>, vector<1x4x128xf32>
    %47 = vector.shape_cast %46 : vector<1x4x128xf32> to vector<4x128xf32>
    "tpu.trace_start"() <{level = 10 : i32, message = "hwc,cf->hwf"}> : () -> ()
    %cst_39 = arith.constant dense<0.000000e+00> : vector<16x16x128xf32>
    %48 = tpu.matmul %45, %47, %cst_39 {dimension_numbers = #tpu.dot_dimension_numbers<[2], [0], [0, 1], [1], [0, 0, 0, 1, 1, 1], [], []>} : vector<16x16x4xf32>, vector<4x128xf32>, vector<16x16x128xf32> -> vector<16x16x128xf32>
    "tpu.trace_stop"() : () -> ()
    %49 = arith.addf %41, %48 : vector<16x16x128xf32>
    %c2_i32 = arith.constant 2 : i32
    %50 = arith.addi %0, %c2_i32 : i32
    %c0_40 = arith.constant 0 : index
    %51 = arith.index_cast %50 : i32 to index
    %c0_41 = arith.constant 0 : index
    %c0_42 = arith.constant 0 : index
    %52 = vector.load %arg2[%c0_40, %51, %c0_41, %c0_42] : memref<1x18x18x4xf32, #tpu.memory_space<vmem>>, vector<1x16x16x4xf32>
    %53 = vector.shape_cast %52 : vector<1x16x16x4xf32> to vector<16x16x4xf32>
    %c6 = arith.constant 6 : index
    %c0_43 = arith.constant 0 : index
    %c0_44 = arith.constant 0 : index
    %54 = vector.load %arg3[%c6, %c0_43, %c0_44] : memref<9x4x128xf32, #tpu.memory_space<vmem>>, vector<1x4x128xf32>
    %55 = vector.shape_cast %54 : vector<1x4x128xf32> to vector<4x128xf32>
    "tpu.trace_start"() <{level = 10 : i32, message = "hwc,cf->hwf"}> : () -> ()
    %cst_45 = arith.constant dense<0.000000e+00> : vector<16x16x128xf32>
    %56 = tpu.matmul %53, %55, %cst_45 {dimension_numbers = #tpu.dot_dimension_numbers<[2], [0], [0, 1], [1], [0, 0, 0, 1, 1, 1], [], []>} : vector<16x16x4xf32>, vector<4x128xf32>, vector<16x16x128xf32> -> vector<16x16x128xf32>
    "tpu.trace_stop"() : () -> ()
    %57 = arith.addf %49, %56 : vector<16x16x128xf32>
    %c2_i32_46 = arith.constant 2 : i32
    %58 = arith.addi %0, %c2_i32_46 : i32
    %c0_47 = arith.constant 0 : index
    %59 = arith.index_cast %58 : i32 to index
    %c1_48 = arith.constant 1 : index
    %c0_49 = arith.constant 0 : index
    %60 = vector.load %arg2[%c0_47, %59, %c1_48, %c0_49] : memref<1x18x18x4xf32, #tpu.memory_space<vmem>>, vector<1x16x16x4xf32>
    %61 = vector.shape_cast %60 : vector<1x16x16x4xf32> to vector<16x16x4xf32>
    %c7 = arith.constant 7 : index
    %c0_50 = arith.constant 0 : index
    %c0_51 = arith.constant 0 : index
    %62 = vector.load %arg3[%c7, %c0_50, %c0_51] : memref<9x4x128xf32, #tpu.memory_space<vmem>>, vector<1x4x128xf32>
    %63 = vector.shape_cast %62 : vector<1x4x128xf32> to vector<4x128xf32>
    "tpu.trace_start"() <{level = 10 : i32, message = "hwc,cf->hwf"}> : () -> ()
    %cst_52 = arith.constant dense<0.000000e+00> : vector<16x16x128xf32>
    %64 = tpu.matmul %61, %63, %cst_52 {dimension_numbers = #tpu.dot_dimension_numbers<[2], [0], [0, 1], [1], [0, 0, 0, 1, 1, 1], [], []>} : vector<16x16x4xf32>, vector<4x128xf32>, vector<16x16x128xf32> -> vector<16x16x128xf32>
    "tpu.trace_stop"() : () -> ()
    %65 = arith.addf %57, %64 : vector<16x16x128xf32>
    %c2_i32_53 = arith.constant 2 : i32
    %66 = arith.addi %0, %c2_i32_53 : i32
    %c0_54 = arith.constant 0 : index
    %67 = arith.index_cast %66 : i32 to index
    %c2_55 = arith.constant 2 : index
    %c0_56 = arith.constant 0 : index
    %68 = vector.load %arg2[%c0_54, %67, %c2_55, %c0_56] : memref<1x18x18x4xf32, #tpu.memory_space<vmem>>, vector<1x16x16x4xf32>
    %69 = vector.shape_cast %68 : vector<1x16x16x4xf32> to vector<16x16x4xf32>
    %c8 = arith.constant 8 : index
    %c0_57 = arith.constant 0 : index
    %c0_58 = arith.constant 0 : index
    %70 = vector.load %arg3[%c8, %c0_57, %c0_58] : memref<9x4x128xf32, #tpu.memory_space<vmem>>, vector<1x4x128xf32>
    %71 = vector.shape_cast %70 : vector<1x4x128xf32> to vector<4x128xf32>
    "tpu.trace_start"() <{level = 10 : i32, message = "hwc,cf->hwf"}> : () -> ()
    %cst_59 = arith.constant dense<0.000000e+00> : vector<16x16x128xf32>
    %72 = tpu.matmul %69, %71, %cst_59 {dimension_numbers = #tpu.dot_dimension_numbers<[2], [0], [0, 1], [1], [0, 0, 0, 1, 1, 1], [], []>} : vector<16x16x4xf32>, vector<4x128xf32>, vector<16x16x128xf32> -> vector<16x16x128xf32>
    "tpu.trace_stop"() : () -> ()
    %73 = arith.addf %65, %72 : vector<16x16x128xf32>
    %c0_60 = arith.constant 0 : index
    %c0_61 = arith.constant 0 : index
    %c0_62 = arith.constant 0 : index
    %74 = vector.load %arg4[%c0_60, %c0_61, %c0_62] : memref<1x1x128xf32, #tpu.memory_space<vmem>>, vector<1x1x128xf32>
    %75 = vector.broadcast %74 : vector<1x1x128xf32> to vector<16x16x128xf32>
    %76 = arith.addf %73, %75 : vector<16x16x128xf32>
    %cst_63 = arith.constant 0.000000e+00 : f32
    %77 = vector.broadcast %cst_63 : f32 to vector<16x16x128xf32>
    %78 = arith.cmpf ogt, %76, %77 : vector<16x16x128xf32>
    %c0_64 = arith.constant 0 : index
    %c0_65 = arith.constant 0 : index
    %c0_66 = arith.constant 0 : index
    %79 = vector.load %arg5[%c0_64, %c0_65, %c0_66] : memref<1x1x128xf32, #tpu.memory_space<vmem>>, vector<1x1x128xf32>
    %80 = vector.broadcast %79 : vector<1x1x128xf32> to vector<16x16x128xf32>
    %81 = arith.mulf %80, %76 : vector<16x16x128xf32>
    %82 = arith.select %78, %76, %81 : vector<16x16x128xi1>, vector<16x16x128xf32>
    %c0_67 = arith.constant 0 : index
    %c0_68 = arith.constant 0 : index
    %c0_69 = arith.constant 0 : index
    %c0_70 = arith.constant 0 : index
    %83 = vector.load %arg6[%c0_67, %c0_68, %c0_69, %c0_70] : memref<1x16x16x128xf32, #tpu.memory_space<vmem>>, vector<1x16x16x128xf32>
    %84 = vector.shape_cast %83 : vector<1x16x16x128xf32> to vector<16x16x128xf32>
    %85 = vector.shape_cast %82 : vector<16x16x128xf32> to vector<1x16x16x128xf32>
    tpu.vector_store %arg6[%c0_67, %c0_68, %c0_69, %c0_70], %85 {strides = array<i32>} : memref<1x16x16x128xf32, #tpu.memory_space<vmem>>, vector<1x16x16x128xf32>,
    return
  }
  func.func @transform_0(%arg0: i32, %arg1: i32) -> (i32, i32, i32, i32) {
    %c0_i32 = arith.constant 0 : i32
    %c0_i32_0 = arith.constant 0 : i32
    %c0_i32_1 = arith.constant 0 : i32
    %c0_i32_2 = arith.constant 0 : i32
    return %arg0, %c0_i32, %c0_i32_0, %c0_i32_1 : i32, i32, i32, i32
  }
  func.func @transform_1(%arg0: i32, %arg1: i32) -> (i32, i32, i32) {
    %c0_i32 = arith.constant 0 : i32
    %c0_i32_0 = arith.constant 0 : i32
    %c0_i32_1 = arith.constant 0 : i32
    %c0_i32_2 = arith.constant 0 : i32
    return %c0_i32, %c0_i32_0, %c0_i32_1 : i32, i32, i32
  }
  func.func @transform_2(%arg0: i32, %arg1: i32) -> (i32, i32, i32) {
    %c0_i32 = arith.constant 0 : i32
    %c0_i32_0 = arith.constant 0 : i32
    %c0_i32_1 = arith.constant 0 : i32
    %c0_i32_2 = arith.constant 0 : i32
    return %c0_i32, %c0_i32_0, %c0_i32_1 : i32, i32, i32
  }
  func.func @transform_3(%arg0: i32, %arg1: i32) -> (i32, i32, i32) {
    %c0_i32 = arith.constant 0 : i32
    %c0_i32_0 = arith.constant 0 : i32
    %c0_i32_1 = arith.constant 0 : i32
    %c0_i32_2 = arith.constant 0 : i32
    return %c0_i32, %c0_i32_0, %c0_i32_1 : i32, i32, i32
  }
  func.func @transform_4(%arg0: i32, %arg1: i32) -> (i32, i32, i32, i32) {
    %c0_i32 = arith.constant 0 : i32
    %c0_i32_0 = arith.constant 0 : i32
    %c0_i32_1 = arith.constant 0 : i32
    return %arg0, %arg1, %c0_i32, %c0_i32_0 : i32, i32, i32, i32
  }
}

module attributes {stable_mosaic.version = 11 : i64} {
  func.func @_conv3x3_prelu_kernel(%arg0: i32, %arg1: i32, %arg2: memref<1x18x18x4xf32, #tpu.memory_space<vmem>>, %arg3: memref<9x4x128xf32, #tpu.memory_space<vmem>>, %arg4: memref<1x1x128xf32, #tpu.memory_space<vmem>>, %arg5: memref<1x1x128xf32, #tpu.memory_space<vmem>>, %arg6: memref<1x16x16x128xf32, #tpu.memory_space<vmem>>) attributes {dimension_semantics = [#tpu.dimension_semantics<parallel>, #tpu.dimension_semantics<arbitrary>], iteration_bounds = array<i64: 2, 1>, scalar_prefetch = 0 : i64, scratch_operands = 0 : i64, tpu.core_type = #tpu.core_type<tc>, window_params = [{transform_indices = @transform_0, window_bounds = array<i64: 1, 18, 18, 4>}, {pipeline_mode = #tpu.pipeline_mode<synchronous>, transform_indices = @transform_1, window_bounds = array<i64: 9, 4, 128>}, {pipeline_mode = #tpu.pipeline_mode<synchronous>, transform_indices = @transform_2, window_bounds = array<i64: 1, 1, 128>}, {pipeline_mode = #tpu.pipeline_mode<synchronous>, transform_indices = @transform_3, window_bounds = array<i64: 1, 1, 128>}, {transform_indices = @transform_4, window_bounds = array<i64: 1, 16, 16, 128>}]} {
    %c16_i32 = arith.constant 16 : i32
    %0 = arith.muli %arg1, %c16_i32 : i32
    %cst = arith.constant 0.000000e+00 : f32
    %1 = vector.broadcast %cst : f32 to vector<16x16x128xf32>
    %c0_i32 = arith.constant 0 : i32
    %2 = arith.addi %0, %c0_i32 : i32
    %c0 = arith.constant 0 : index
    %3 = arith.index_cast %2 : i32 to index
    %c0_0 = arith.constant 0 : index
    %c0_1 = arith.constant 0 : index
    %4 = vector.load %arg2[%c0, %3, %c0_0, %c0_1] : memref<1x18x18x4xf32, #tpu.memory_space<vmem>>, vector<1x16x16x4xf32>
    %5 = vector.shape_cast %4 : vector<1x16x16x4xf32> to vector<16x16x4xf32>
    %c0_2 = arith.constant 0 : index
    %c0_3 = arith.constant 0 : index
    %c0_4 = arith.constant 0 : index
    %6 = vector.load %arg3[%c0_2, %c0_3, %c0_4] : memref<9x4x128xf32, #tpu.memory_space<vmem>>, vector<1x4x128xf32>
    %7 = vector.shape_cast %6 : vector<1x4x128xf32> to vector<4x128xf32>
    "tpu.trace_start"() <{level = 10 : i32, message = "hwc,cf->hwf"}> : () -> ()
    %cst_5 = arith.constant dense<0.000000e+00> : vector<16x16x128xf32>
    %8 = tpu.matmul %5, %7, %cst_5 {dimension_numbers = #tpu.dot_dimension_numbers<[2], [0], [0, 1], [1], [0, 0, 0, 1, 1, 1], [], []>} : vector<16x16x4xf32>, vector<4x128xf32>, vector<16x16x128xf32> -> vector<16x16x128xf32>
    "tpu.trace_stop"() : () -> ()
    %9 = arith.addf %1, %8 : vector<16x16x128xf32>
    %c0_i32_6 = arith.constant 0 : i32
    %10 = arith.addi %0, %c0_i32_6 : i32
    %c0_7 = arith.constant 0 : index
    %11 = arith.index_cast %10 : i32 to index
    %c1 = arith.constant 1 : index
    %c0_8 = arith.constant 0 : index
    %12 = vector.load %arg2[%c0_7, %11, %c1, %c0_8] : memref<1x18x18x4xf32, #tpu.memory_space<vmem>>, vector<1x16x16x4xf32>
    %13 = vector.shape_cast %12 : vector<1x16x16x4xf32> to vector<16x16x4xf32>
    %c1_9 = arith.constant 1 : index
    %c0_10 = arith.constant 0 : index
    %c0_11 = arith.constant 0 : index
    %14 = vector.load %arg3[%c1_9, %c0_10, %c0_11] : memref<9x4x128xf32, #tpu.memory_space<vmem>>, vector<1x4x128xf32>
    %15 = vector.shape_cast %14 : vector<1x4x128xf32> to vector<4x128xf32>
    "tpu.trace_start"() <{level = 10 : i32, message = "hwc,cf->hwf"}> : () -> ()
    %cst_12 = arith.constant dense<0.000000e+00> : vector<16x16x128xf32>
    %16 = tpu.matmul %13, %15, %cst_12 {dimension_numbers = #tpu.dot_dimension_numbers<[2], [0], [0, 1], [1], [0, 0, 0, 1, 1, 1], [], []>} : vector<16x16x4xf32>, vector<4x128xf32>, vector<16x16x128xf32> -> vector<16x16x128xf32>
    "tpu.trace_stop"() : () -> ()
    %17 = arith.addf %9, %16 : vector<16x16x128xf32>
    %c0_i32_13 = arith.constant 0 : i32
    %18 = arith.addi %0, %c0_i32_13 : i32
    %c0_14 = arith.constant 0 : index
    %19 = arith.index_cast %18 : i32 to index
    %c2 = arith.constant 2 : index
    %c0_15 = arith.constant 0 : index
    %20 = vector.load %arg2[%c0_14, %19, %c2, %c0_15] : memref<1x18x18x4xf32, #tpu.memory_space<vmem>>, vector<1x16x16x4xf32>
    %21 = vector.shape_cast %20 : vector<1x16x16x4xf32> to vector<16x16x4xf32>
    %c2_16 = arith.constant 2 : index
    %c0_17 = arith.constant 0 : index
    %c0_18 = arith.constant 0 : index
    %22 = vector.load %arg3[%c2_16, %c0_17, %c0_18] : memref<9x4x128xf32, #tpu.memory_space<vmem>>, vector<1x4x128xf32>
    %23 = vector.shape_cast %22 : vector<1x4x128xf32> to vector<4x128xf32>
    "tpu.trace_start"() <{level = 10 : i32, message = "hwc,cf->hwf"}> : () -> ()
    %cst_19 = arith.constant dense<0.000000e+00> : vector<16x16x128xf32>
    %24 = tpu.matmul %21, %23, %cst_19 {dimension_numbers = #tpu.dot_dimension_numbers<[2], [0], [0, 1], [1], [0, 0, 0, 1, 1, 1], [], []>} : vector<16x16x4xf32>, vector<4x128xf32>, vector<16x16x128xf32> -> vector<16x16x128xf32>
    "tpu.trace_stop"() : () -> ()
    %25 = arith.addf %17, %24 : vector<16x16x128xf32>
    %c1_i32 = arith.constant 1 : i32
    %26 = arith.addi %0, %c1_i32 : i32
    %c0_20 = arith.constant 0 : index
    %27 = arith.index_cast %26 : i32 to index
    %c0_21 = arith.constant 0 : index
    %c0_22 = arith.constant 0 : index
    %28 = vector.load %arg2[%c0_20, %27, %c0_21, %c0_22] : memref<1x18x18x4xf32, #tpu.memory_space<vmem>>, vector<1x16x16x4xf32>
    %29 = vector.shape_cast %28 : vector<1x16x16x4xf32> to vector<16x16x4xf32>
    %c3 = arith.constant 3 : index
    %c0_23 = arith.constant 0 : index
    %c0_24 = arith.constant 0 : index
    %30 = vector.load %arg3[%c3, %c0_23, %c0_24] : memref<9x4x128xf32, #tpu.memory_space<vmem>>, vector<1x4x128xf32>
    %31 = vector.shape_cast %30 : vector<1x4x128xf32> to vector<4x128xf32>
    "tpu.trace_start"() <{level = 10 : i32, message = "hwc,cf->hwf"}> : () -> ()
    %cst_25 = arith.constant dense<0.000000e+00> : vector<16x16x128xf32>
    %32 = tpu.matmul %29, %31, %cst_25 {dimension_numbers = #tpu.dot_dimension_numbers<[2], [0], [0, 1], [1], [0, 0, 0, 1, 1, 1], [], []>} : vector<16x16x4xf32>, vector<4x128xf32>, vector<16x16x128xf32> -> vector<16x16x128xf32>
    "tpu.trace_stop"() : () -> ()
    %33 = arith.addf %25, %32 : vector<16x16x128xf32>
    %c1_i32_26 = arith.constant 1 : i32
    %34 = arith.addi %0, %c1_i32_26 : i32
    %c0_27 = arith.constant 0 : index
    %35 = arith.index_cast %34 : i32 to index
    %c1_28 = arith.constant 1 : index
    %c0_29 = arith.constant 0 : index
    %36 = vector.load %arg2[%c0_27, %35, %c1_28, %c0_29] : memref<1x18x18x4xf32, #tpu.memory_space<vmem>>, vector<1x16x16x4xf32>
    %37 = vector.shape_cast %36 : vector<1x16x16x4xf32> to vector<16x16x4xf32>
    %c4 = arith.constant 4 : index
    %c0_30 = arith.constant 0 : index
    %c0_31 = arith.constant 0 : index
    %38 = vector.load %arg3[%c4, %c0_30, %c0_31] : memref<9x4x128xf32, #tpu.memory_space<vmem>>, vector<1x4x128xf32>
    %39 = vector.shape_cast %38 : vector<1x4x128xf32> to vector<4x128xf32>
    "tpu.trace_start"() <{level = 10 : i32, message = "hwc,cf->hwf"}> : () -> ()
    %cst_32 = arith.constant dense<0.000000e+00> : vector<16x16x128xf32>
    %40 = tpu.matmul %37, %39, %cst_32 {dimension_numbers = #tpu.dot_dimension_numbers<[2], [0], [0, 1], [1], [0, 0, 0, 1, 1, 1], [], []>} : vector<16x16x4xf32>, vector<4x128xf32>, vector<16x16x128xf32> -> vector<16x16x128xf32>
    "tpu.trace_stop"() : () -> ()
    %41 = arith.addf %33, %40 : vector<16x16x128xf32>
    %c1_i32_33 = arith.constant 1 : i32
    %42 = arith.addi %0, %c1_i32_33 : i32
    %c0_34 = arith.constant 0 : index
    %43 = arith.index_cast %42 : i32 to index
    %c2_35 = arith.constant 2 : index
    %c0_36 = arith.constant 0 : index
    %44 = vector.load %arg2[%c0_34, %43, %c2_35, %c0_36] : memref<1x18x18x4xf32, #tpu.memory_space<vmem>>, vector<1x16x16x4xf32>
    %45 = vector.shape_cast %44 : vector<1x16x16x4xf32> to vector<16x16x4xf32>
    %c5 = arith.constant 5 : index
    %c0_37 = arith.constant 0 : index
    %c0_38 = arith.constant 0 : index
    %46 = vector.load %arg3[%c5, %c0_37, %c0_38] : memref<9x4x128xf32, #tpu.memory_space<vmem>>, vector<1x4x128xf32>
    %47 = vector.shape_cast %46 : vector<1x4x128xf32> to vector<4x128xf32>
    "tpu.trace_start"() <{level = 10 : i32, message = "hwc,cf->hwf"}> : () -> ()
    %cst_39 = arith.constant dense<0.000000e+00> : vector<16x16x128xf32>
    %48 = tpu.matmul %45, %47, %cst_39 {dimension_numbers = #tpu.dot_dimension_numbers<[2], [0], [0, 1], [1], [0, 0, 0, 1, 1, 1], [], []>} : vector<16x16x4xf32>, vector<4x128xf32>, vector<16x16x128xf32> -> vector<16x16x128xf32>
    "tpu.trace_stop"() : () -> ()
    %49 = arith.addf %41, %48 : vector<16x16x128xf32>
    %c2_i32 = arith.constant 2 : i32
    %50 = arith.addi %0, %c2_i32 : i32
    %c0_40 = arith.constant 0 : index
    %51 = arith.index_cast %50 : i32 to index
    %c0_41 = arith.constant 0 : index
    %c0_42 = arith.constant 0 : index
    %52 = vector.load %arg2[%c0_40, %51, %c0_41, %c0_42] : memref<1x18x18x4xf32, #tpu.memory_space<vmem>>, vector<1x16x16x4xf32>
    %53 = vector.shape_cast %52 : vector<1x16x16x4xf32> to vector<16x16x4xf32>
    %c6 = arith.constant 6 : index
    %c0_43 = arith.constant 0 : index
    %c0_44 = arith.constant 0 : index
    %54 = vector.load %arg3[%c6, %c0_43, %c0_44] : memref<9x4x128xf32, #tpu.memory_space<vmem>>, vector<1x4x128xf32>
    %55 = vector.shape_cast %54 : vector<1x4x128xf32> to vector<4x128xf32>
    "tpu.trace_start"() <{level = 10 : i32, message = "hwc,cf->hwf"}> : () -> ()
    %cst_45 = arith.constant dense<0.000000e+00> : vector<16x16x128xf32>
    %56 = tpu.matmul %53, %55, %cst_45 {dimension_numbers = #tpu.dot_dimension_numbers<[2], [0], [0, 1], [1], [0, 0, 0, 1, 1, 1], [], []>} : vector<16x16x4xf32>, vector<4x128xf32>, vector<16x16x128xf32> -> vector<16x16x128xf32>
    "tpu.trace_stop"() : () -> ()
    %57 = arith.addf %49, %56 : vector<16x16x128xf32>
    %c2_i32_46 = arith.constant 2 : i32
    %58 = arith.addi %0, %c2_i32_46 : i32
    %c0_47 = arith.constant 0 : index
    %59 = arith.index_cast %58 : i32 to index
    %c1_48 = arith.constant 1 : index
    %c0_49 = arith.constant 0 : index
    %60 = vector.load %arg2[%c0_47, %59, %c1_48, %c0_49] : memref<1x18x18x4xf32, #tpu.memory_space<vmem>>, vector<1x16x16x4xf32>
    %61 = vector.shape_cast %60 : vector<1x16x16x4xf32> to vector<16x16x4xf32>
    %c7 = arith.constant 7 : index
    %c0_50 = arith.constant 0 : index
    %c0_51 = arith.constant 0 : index
    %62 = vector.load %arg3[%c7, %c0_50, %c0_51] : memref<9x4x128xf32, #tpu.memory_space<vmem>>, vector<1x4x128xf32>
    %63 = vector.shape_cast %62 : vector<1x4x128xf32> to vector<4x128xf32>
    "tpu.trace_start"() <{level = 10 : i32, message = "hwc,cf->hwf"}> : () -> ()
    %cst_52 = arith.constant dense<0.000000e+00> : vector<16x16x128xf32>
    %64 = tpu.matmul %61, %63, %cst_52 {dimension_numbers = #tpu.dot_dimension_numbers<[2], [0], [0, 1], [1], [0, 0, 0, 1, 1, 1], [], []>} : vector<16x16x4xf32>, vector<4x128xf32>, vector<16x16x128xf32> -> vector<16x16x128xf32>
    "tpu.trace_stop"() : () -> ()
    %65 = arith.addf %57, %64 : vector<16x16x128xf32>
    %c2_i32_53 = arith.constant 2 : i32
    %66 = arith.addi %0, %c2_i32_53 : i32
    %c0_54 = arith.constant 0 : index
    %67 = arith.index_cast %66 : i32 to index
    %c2_55 = arith.constant 2 : index
    %c0_56 = arith.constant 0 : index
    %68 = vector.load %arg2[%c0_54, %67, %c2_55, %c0_56] : memref<1x18x18x4xf32, #tpu.memory_space<vmem>>, vector<1x16x16x4xf32>
    %69 = vector.shape_cast %68 : vector<1x16x16x4xf32> to vector<16x16x4xf32>
    %c8 = arith.constant 8 : index
    %c0_57 = arith.constant 0 : index
    %c0_58 = arith.constant 0 : index
    %70 = vector.load %arg3[%c8, %c0_57, %c0_58] : memref<9x4x128xf32, #tpu.memory_space<vmem>>, vector<1x4x128xf32>
    %71 = vector.shape_cast %70 : vector<1x4x128xf32> to vector<4x128xf32>
    "tpu.trace_start"() <{level = 10 : i32, message = "hwc,cf->hwf"}> : () -> ()
    %cst_59 = arith.constant dense<0.000000e+00> : vector<16x16x128xf32>
    %72 = tpu.matmul %69, %71, %cst_59 {dimension_numbers = #tpu.dot_dimension_numbers<[2], [0], [0, 1], [1], [0, 0, 0, 1, 1, 1], [], []>} : vector<16x16x4xf32>, vector<4x128xf32>, vector<16x16x128xf32> -> vector<16x16x128xf32>
    "tpu.trace_stop"() : () -> ()
    %73 = arith.addf %65, %72 : vector<16x16x128xf32>
    %c0_60 = arith.constant 0 : index
    %c0_61 = arith.constant 0 : index
    %c0_62 = arith.constant 0 : index
    %74 = vector.load %arg4[%c0_60, %c0_61, %c0_62] : memref<1x1x128xf32, #tpu.memory_space<vmem>>, vector<1x1x128xf32>
    %75 = vector.broadcast %74 : vector<1x1x128xf32> to vector<16x16x128xf32>
    %76 = arith.addf %73, %75 : vector<16x16x128xf32>
    %cst_63 = arith.constant 0.000000e+00 : f32
    %77 = vector.broadcast %cst_63 : f32 to vector<16x16x128xf32>
    %78 = arith.cmpf ogt, %76, %77 : vector<16x16x128xf32>
    %c0_64 = arith.constant 0 : index
    %c0_65 = arith.constant 0 : index
    %c0_66 = arith.constant 0 : index
    %79 = vector.load %arg5[%c0_64, %c0_65, %c0_66] : memref<1x1x128xf32, #tpu.memory_space<vmem>>, vector<1x1x128xf32>
    %80 = vector.broadcast %79 : vector<1x1x128xf32> to vector<16x16x128xf32>
    %81 = arith.mulf %80, %76 : vector<16x16x128xf32>
    %82 = arith.select %78, %76, %81 : vector<16x16x128xi1>, vector<16x16x128xf32>
    %c0_67 = arith.constant 0 : index
    %c0_68 = arith.constant 0 : index
    %c0_69 = arith.constant 0 : index
    %c0_70 = arith.constant 0 : index
    %83 = vector.load %arg6[%c0_67, %c0_68, %c0_69, %c0_70] : memref<1x16x16x128xf32, #tpu.memory_space<vmem>>, vector<1x16x16x128xf32>
    %84 = vector.shape_cast %83 : vector<1x16x16x128xf32> to vector<16x16x128xf32>
    %85 = vector.shape_cast %82 : vector<16x16x128xf32> to vector<1x16x16x128xf32>
    tpu.vector_store %arg6[%c0_67, %c0_68, %c0_69, %c0_70], %85 {strides = array<i32>} : memref<1x16x16x128xf32, #tpu.memory_space<vmem>>, vector<1x16x16x128xf32>,
    return
  }
  func.func @transform_0(%arg0: i32, %arg1: i32) -> (i32, i32, i32, i32) {
    %c0_i32 = arith.constant 0 : i32
    %c0_i32_0 = arith.constant 0 : i32
    %c0_i32_1 = arith.constant 0 : i32
    %c0_i32_2 = arith.constant 0 : i32
    return %arg0, %c0_i32, %c0_i32_0, %c0_i32_1 : i32, i32, i32, i32
  }
  func.func @transform_1(%arg0: i32, %arg1: i32) -> (i32, i32, i32) {
    %c0_i32 = arith.constant 0 : i32
    %c0_i32_0 = arith.constant 0 : i32
    %c0_i32_1 = arith.constant 0 : i32
    %c0_i32_2 = arith.constant 0 : i32
    return %c0_i32, %c0_i32_0, %c0_i32_1 : i32, i32, i32
  }
  func.func @transform_2(%arg0: i32, %arg1: i32) -> (i32, i32, i32) {
    %c0_i32 = arith.constant 0 : i32
    %c0_i32_0 = arith.constant 0 : i32
    %c0_i32_1 = arith.constant 0 : i32
    %c0_i32_2 = arith.constant 0 : i32
    return %c0_i32, %c0_i32_0, %c0_i32_1 : i32, i32, i32
  }
  func.func @transform_3(%arg0: i32, %arg1: i32) -> (i32, i32, i32) {
    %c0_i32 = arith.constant 0 : i32
    %c0_i32_0 = arith.constant 0 : i32
    %c0_i32_1 = arith.constant 0 : i32
    %c0_i32_2 = arith.constant 0 : i32
    return %c0_i32, %c0_i32_0, %c0_i32_1 : i32, i32, i32
  }
  func.func @transform_4(%arg0: i32, %arg1: i32) -> (i32, i32, i32, i32) {
    %c0_i32 = arith.constant 0 : i32
    %c0_i32_0 = arith.constant 0 : i32
    %c0_i32_1 = arith.constant 0 : i32
    return %arg0, %arg1, %c0_i32, %c0_i32_0 : i32, i32, i32, i32
  }
}

</mosaic_0001>

<llo_original>
// kernel: tpu_custom_call.1
$region0: #{tpu_custom_call.1}
  #allocation0 [shape = 'u32[]', space=smem, size = 0x4, offset = 0x4, fixed_abs, tag = 'smem constant byte address 0x4 - core index']
  #allocation1 [shape = 'u32[72,128]{1,0:T(1,128)}', space=vmem, size = 0x9000, scoped, tag = 'internal scratch']
  %s0 = inlined_call_operand.vmem [shape: f32[2,18,18,4], index: 0, kind: input, shape index: {}]
  %s1 = inlined_call_operand.vmem [shape: f32[9,4,128], index: 1, kind: input, shape index: {}]
  %s2 = inlined_call_operand.vmem [shape: f32[1,1,128], index: 2, kind: input, shape index: {}]
  %s3 = inlined_call_operand.vmem [shape: f32[1,1,128], index: 3, kind: input, shape index: {}]
  %s4 = inlined_call_operand.hbm [shape: f32[2,16,16,128], index: 4, kind: output, shape index: {}]
  %s5 = sld [smem:[#allocation0]]
  $region49: #{tpu_custom_call.1} parent=0
    _
  %s7 = ssub.s32 1, %s5
  %s8 = scalar_select 0, %s7, %s5
  $region1: #{tpu_custom_call.1} parent=0
    #allocation2 [shape = 'u8[262144]{0}', space=vmem, size = 0x40000, scoped, tag = 'output window, operand 0']
    #allocation3 [shape = 's32[2]{0}', space=sflag, size = 0x8, scoped, tag = 'scoped memory for tpu_custom_call.1']
    %9 = vsyncpa [#allocation3], 0
    %s10 = scalar_lea.sflag [#allocation3], 1
    %11 = vsyncpa %s10, 0
    loop: start=0, step=1, limit=4
    $region2: #{tpu_custom_call.1} parent=1 // loop_pre_header
      _
    $region3: #{tpu_custom_call.1} parent=1 // loop_header
      %s13 = sphi 0, %s17
      %p14 = scmp.ge.s32.totalorder %s13, 4
      %s20 = sphi 0, %s32
      %s21 = sphi 0, %s28
      %s22 = sphi 0, %s20
      %s23 = sphi 0, %s21
      %s24 = sphi 0, %s22
      %s25 = sphi 0, %s23
      %s35 = sphi 0, %s37
      %s38 = sphi 0, %s35
      %s39 = sphi 0, %s38
      %s55 = sphi 0, %s39
      %s59 = sphi 0, %s59
      %s61 = sphi 0, %s59
      %s62 = sphi 0, %s61
      %s76 = sphi 0, %s62
      %s80 = sphi 0, %s80
      %s82 = sphi 0, %s80
      %s83 = sphi 0, %s82
      %s97 = sphi 0, %s83
      %s101 = sphi 0, %s101
      %s103 = sphi 0, %s101
      %s104 = sphi 0, %s103
      %s118 = sphi 0, %s104
      %s126 = sphi 0, %s128
      %s129 = sphi 0, %s126
      %s130 = sphi 0, %s129
      %s146 = sphi 0, %s130
    $region4: #{tpu_custom_call.1} parent=1 // loop_header_branch
      %16 = sbr.rel (%p14) target = $region8
    $region5: #{tpu_custom_call.1} parent=1 // loop_body
      %s18 = ssub.s32 %s13, 1
      %s19 = ssub.s32 %s13, 2
      %s26 = sadd.s32 1, %s21
      %p27 = scmp.ge.s32.totalorder %s26, 1
      %s28 = scalar_select %p27, 0, %s26
      %s29 = sadd.s32 1, %s20
      %s30 = scalar_select %p27, %s29, %s20
      %p31 = scmp.ge.s32.totalorder %s30, 2
      %s32 = scalar_select %p31, 0, %s30
      %s33 = ssub.s32 %s20, %s32
      %p34 = scmp.eq.s32.totalorder %s33, 0
      %s36 = sadd.s32 %s35, 1
      %s37 = scalar_select %p34, %s35, %s36
      %p40 = pneg %p34
      %p41 = scmp.eq.s32.totalorder %s13, 1
      %p42 = por %p40, %p41
      %p43 = scmp.ne.s32.totalorder %s35, %s38
      %p44 = scmp.eq.s32.totalorder %s13, 0
      %p45 = por %p43, %p44
      %p46 = scmp.ne.s32.totalorder %s35, %s38
      %p47 = scmp.eq.s32.totalorder %s18, 1
      %p48 = por %p46, %p47
      %p49 = scmp.ne.s32.totalorder %s38, %s39
      %p50 = scmp.eq.s32.totalorder %s18, 0
      %p51 = por %p49, %p50
      %p52 = scmp.ne.s32.totalorder %s38, %s39
      %p53 = scmp.eq.s32.totalorder %s19, 1
      %p54 = por %p52, %p53
      %p56 = scmp.ne.s32.totalorder %s39, %s55
      %p57 = scmp.eq.s32.totalorder %s19, 0
      %p58 = por %p56, %p57
      %s60 = sadd.s32 %s59, 1
      %p63 = scmp.eq.s32.totalorder %s13, 1
      %p64 = scmp.ne.s32.totalorder %s59, %s61
      %p65 = scmp.eq.s32.totalorder %s13, 0
      %p66 = por %p64, %p65
      %p67 = scmp.ne.s32.totalorder %s59, %s61
      %p68 = scmp.eq.s32.totalorder %s18, 1
      %p69 = por %p67, %p68
      %p70 = scmp.ne.s32.totalorder %s61, %s62
      %p71 = scmp.eq.s32.totalorder %s18, 0
      %p72 = por %p70, %p71
      %p73 = scmp.ne.s32.totalorder %s61, %s62
      %p74 = scmp.eq.s32.totalorder %s19, 1
      %p75 = por %p73, %p74
      %p77 = scmp.ne.s32.totalorder %s62, %s76
      %p78 = scmp.eq.s32.totalorder %s19, 0
      %p79 = por %p77, %p78
      %s81 = sadd.s32 %s80, 1
      %p84 = scmp.eq.s32.totalorder %s13, 1
      %p85 = scmp.ne.s32.totalorder %s80, %s82
      %p86 = scmp.eq.s32.totalorder %s13, 0
      %p87 = por %p85, %p86
      %p88 = scmp.ne.s32.totalorder %s80, %s82
      %p89 = scmp.eq.s32.totalorder %s18, 1
      %p90 = por %p88, %p89
      %p91 = scmp.ne.s32.totalorder %s82, %s83
      %p92 = scmp.eq.s32.totalorder %s18, 0
      %p93 = por %p91, %p92
      %p94 = scmp.ne.s32.totalorder %s82, %s83
      %p95 = scmp.eq.s32.totalorder %s19, 1
      %p96 = por %p94, %p95
      %p98 = scmp.ne.s32.totalorder %s83, %s97
      %p99 = scmp.eq.s32.totalorder %s19, 0
      %p100 = por %p98, %p99
      %s102 = sadd.s32 %s101, 1
      %p105 = scmp.eq.s32.totalorder %s13, 1
      %p106 = scmp.ne.s32.totalorder %s101, %s103
      %p107 = scmp.eq.s32.totalorder %s13, 0
      %p108 = por %p106, %p107
      %p109 = scmp.ne.s32.totalorder %s101, %s103
      %p110 = scmp.eq.s32.totalorder %s18, 1
      %p111 = por %p109, %p110
      %p112 = scmp.ne.s32.totalorder %s103, %s104
      %p113 = scmp.eq.s32.totalorder %s18, 0
      %p114 = por %p112, %p113
      %p115 = scmp.ne.s32.totalorder %s103, %s104
      %p116 = scmp.eq.s32.totalorder %s19, 1
      %p117 = por %p115, %p116
      %p119 = scmp.ne.s32.totalorder %s104, %s118
      %p120 = scmp.eq.s32.totalorder %s19, 0
      %p121 = por %p119, %p120
      %s122 = ssub.s32 %s20, %s32
      %s123 = ssub.s32 %s21, %s28
      %s124 = sor.u32 %s122, %s123
      %p125 = scmp.eq.s32.totalorder %s124, 0
      %s127 = sadd.s32 %s126, 1
      %s128 = scalar_select %p125, %s126, %s127
      %p131 = pneg %p125
      %p132 = scmp.eq.s32.totalorder %s13, 1
      %p133 = por %p131, %p132
      %p134 = scmp.ne.s32.totalorder %s126, %s129
      %p135 = scmp.eq.s32.totalorder %s13, 0
      %p136 = por %p134, %p135
      %p137 = scmp.ne.s32.totalorder %s126, %s129
      %p138 = scmp.eq.s32.totalorder %s18, 1
      %p139 = por %p137, %p138
      %p140 = scmp.ne.s32.totalorder %s129, %s130
      %p141 = scmp.eq.s32.totalorder %s18, 0
      %p142 = por %p140, %p141
      %p143 = scmp.ne.s32.totalorder %s129, %s130
      %p144 = scmp.eq.s32.totalorder %s19, 1
      %p145 = por %p143, %p144
      %p147 = scmp.ne.s32.totalorder %s130, %s146
      %p148 = scmp.eq.s32.totalorder %s19, 0
      %p149 = por %p147, %p148
      %p150 = scmp.le.s32.totalorder 1, %s13
      %p151 = scmp.lt.s32.totalorder %s13, 3
      %p152 = pnand %p150, %p151
      %p153 = pneg %p152
      // Predicated region
      $region9: #{tpu_custom_call.1} parent=5 // pred_check
        _
      $region10: #{tpu_custom_call.1} parent=5 // pred_check_branch
        %155 = sbr.rel (%p152) target = $region12
      $region11: #{tpu_custom_call.1} parent=5 // pred_region
        %s156 = ssub.s32 %s13, 1
        // Predicated region
        $region13: #{tpu_custom_call.1} parent=11 // pred_check
          %p157 = pneg %p51
        $region14: #{tpu_custom_call.1} parent=11 // pred_check_branch
          %159 = sbr.rel (%p157) target = $region16
        $region15: #{tpu_custom_call.1} parent=11 // pred_region
          %p160 = scmp.lt.s32.totalorder %s22, 1
          %s161 = scalar_select %p160, %s22, 1
          %s162 = smul.addr %s161, 54
          %s163 = smul.addr %s162, 8
          %s164 = scalar_lea.vmem %s0, %s163
        $region16: #{tpu_custom_call.1} parent=11 // pred_fallthru
          _
        // Predicated region
        $region17: #{tpu_custom_call.1} parent=11 // pred_check
          %p165 = pneg %p72
        $region18: #{tpu_custom_call.1} parent=11 // pred_check_branch
          %167 = sbr.rel (%p165) target = $region20
        $region19: #{tpu_custom_call.1} parent=11 // pred_region
          _
        $region20: #{tpu_custom_call.1} parent=11 // pred_fallthru
          _
        // Predicated region
        $region21: #{tpu_custom_call.1} parent=11 // pred_check
          %p168 = pneg %p93
        $region22: #{tpu_custom_call.1} parent=11 // pred_check_branch
          %170 = sbr.rel (%p168) target = $region24
        $region23: #{tpu_custom_call.1} parent=11 // pred_region
          _
        $region24: #{tpu_custom_call.1} parent=11 // pred_fallthru
          _
        // Predicated region
        $region25: #{tpu_custom_call.1} parent=11 // pred_check
          %p171 = pneg %p114
        $region26: #{tpu_custom_call.1} parent=11 // pred_check_branch
          %173 = sbr.rel (%p171) target = $region28
        $region27: #{tpu_custom_call.1} parent=11 // pred_region
          _
        $region28: #{tpu_custom_call.1} parent=11 // pred_fallthru
          _
      $region12: #{tpu_custom_call.1} parent=5 // pred_fallthru
        _
      %p174 = scmp.lt.s32.totalorder %s13, 2
      // Predicated region
      $region29: #{tpu_custom_call.1} parent=5 // pred_check
        %p175 = pneg %p174
      $region30: #{tpu_custom_call.1} parent=5 // pred_check_branch
        %177 = sbr.rel (%p175) target = $region32
      $region31: #{tpu_custom_call.1} parent=5 // pred_region
        _
      $region32: #{tpu_custom_call.1} parent=5 // pred_fallthru
        _
      %p178 = scmp.le.s32.totalorder 1, %s13
      %p179 = scmp.lt.s32.totalorder %s13, 3
      %p180 = pnand %p178, %p179
      %p181 = pneg %p180
      // Predicated region
      $region33: #{tpu_custom_call.1} parent=5 // pred_check
        _
      $region34: #{tpu_custom_call.1} parent=5 // pred_check_branch
        %183 = sbr.rel (%p180) target = $region36
      $region35: #{tpu_custom_call.1} parent=5 // pred_region
        %s184 = ssub.s32 %s13, 1
        %p185 = scmp.lt.s32.totalorder %s22, 1
        %s186 = scalar_select %p185, %s22, 1
        %s187 = smul.addr %s186, 54
        %s188 = smul.addr %s187, 8
        %s189 = scalar_lea.vmem %s0, %s188
        %p190 = pneg %p51
        %p191 = pneg %p48
        %p192 = pneg %p72
        %p193 = pneg %p69
        %p194 = pneg %p93
        %p195 = pneg %p90
        %p196 = pneg %p114
        %p197 = pneg %p111
        %p198 = pneg %p142
        %p199 = pneg %p139
        %s200 = sand.u32 %s129, 1
        %s201 = scalar_lea.sflag [#allocation3], %s200
        %s202 = sand.u32 %s129, 1
        %s203 = smul.addr %s202, 256
        %s204 = scalar_lea.vmem [#allocation2], %s203
        %p205 = scmp.lt.s32.totalorder %s22, 1
        %s206 = scalar_select %p205, %s22, 1
        %s207 = smul.addr %s206, 54
        %s208 = smul.addr %s207, 8
        %s209 = scalar_lea.vmem %s0, %s208
        %s210 = smul.u32 16, %s23
        %s211 = smul.u32 %s23, 16
        %s212 = smul.u32 %s211, 24
        %s213 = scalar_lea.vmem %s209, %s212
        %v214 = vld [vmem:[%s213] sm:$0xff]
        %v215 = vld [vmem:[%s213 + $0x8] sm:$0xff]
        %v216 = vld [vmem:[%s213 + $0x18] sm:$0xff]
        %v217 = vld [vmem:[%s213 + $0x20] sm:$0xff]
        %v218 = vld [vmem:[%s213 + $0x30] sm:$0xff]
        %v219 = vld [vmem:[%s213 + $0x38] sm:$0xff]
        %v220 = vld [vmem:[%s213 + $0x48] sm:$0xff]
        %v221 = vld [vmem:[%s213 + $0x50] sm:$0xff]
        %v222 = vld [vmem:[%s213 + $0x60] sm:$0xff]
        %v223 = vld [vmem:[%s213 + $0x68] sm:$0xff]
        %v224 = vld [vmem:[%s213 + $0x78] sm:$0xff]
        %v225 = vld [vmem:[%s213 + $0x80] sm:$0xff]
        %v226 = vld [vmem:[%s213 + $0x90] sm:$0xff]
        %v227 = vld [vmem:[%s213 + $0x98] sm:$0xff]
        %v228 = vld [vmem:[%s213 + $0xa8] sm:$0xff]
        %v229 = vld [vmem:[%s213 + $0xb0] sm:$0xff]
        %v230 = vld [vmem:[%s213 + $0xc0] sm:$0xff]
        %v231 = vld [vmem:[%s213 + $0xc8] sm:$0xff]
        %v232 = vld [vmem:[%s213 + $0xd8] sm:$0xff]
        %v233 = vld [vmem:[%s213 + $0xe0] sm:$0xff]
        %v234 = vld [vmem:[%s213 + $0xf0] sm:$0xff]
        %v235 = vld [vmem:[%s213 + $0xf8] sm:$0xff]
        %v236 = vld [vmem:[%s213 + $0x108] sm:$0xff]
        %v237 = vld [vmem:[%s213 + $0x110] sm:$0xff]
        %v238 = vld [vmem:[%s213 + $0x120] sm:$0xff]
        %v239 = vld [vmem:[%s213 + $0x128] sm:$0xff]
        %v240 = vld [vmem:[%s213 + $0x138] sm:$0xff]
        %v241 = vld [vmem:[%s213 + $0x140] sm:$0xff]
        %v242 = vld [vmem:[%s213 + $0x150] sm:$0xff]
        %v243 = vld [vmem:[%s213 + $0x158] sm:$0xff]
        %v244 = vld [vmem:[%s213 + $0x168] sm:$0xff]
        %v245 = vld [vmem:[%s213 + $0x170] sm:$0xff]
        %v246 = vld [vmem:[%s1] sm:$0xf]
        %v247 = vld [vmem:[%s213 + $0x1] sm:$0xff]
        %v248 = vld [vmem:[%s213 + $0x9] sm:$0xff]
        %v249 = vld [vmem:[%s213 + $0x19] sm:$0xff]
        %v250 = vld [vmem:[%s213 + $0x21] sm:$0xff]
        %v251 = vld [vmem:[%s213 + $0x31] sm:$0xff]
        %v252 = vld [vmem:[%s213 + $0x39] sm:$0xff]
        %v253 = vld [vmem:[%s213 + $0x49] sm:$0xff]
        %v254 = vld [vmem:[%s213 + $0x51] sm:$0xff]
        %v255 = vld [vmem:[%s213 + $0x61] sm:$0xff]
        %v256 = vld [vmem:[%s213 + $0x69] sm:$0xff]
        %v257 = vld [vmem:[%s213 + $0x79] sm:$0xff]
        %v258 = vld [vmem:[%s213 + $0x81] sm:$0xff]
        %v259 = vld [vmem:[%s213 + $0x91] sm:$0xff]
        %v260 = vld [vmem:[%s213 + $0x99] sm:$0xff]
        %v261 = vld [vmem:[%s213 + $0xa9] sm:$0xff]
        %v262 = vld [vmem:[%s213 + $0xb1] sm:$0xff]
        %v263 = vld [vmem:[%s213 + $0xc1] sm:$0xff]
        %v264 = vld [vmem:[%s213 + $0xc9] sm:$0xff]
        %v265 = vld [vmem:[%s213 + $0xd9] sm:$0xff]
        %v266 = vld [vmem:[%s213 + $0xe1] sm:$0xff]
        %v267 = vld [vmem:[%s213 + $0xf1] sm:$0xff]
        %v268 = vld [vmem:[%s213 + $0xf9] sm:$0xff]
        %v269 = vld [vmem:[%s213 + $0x109] sm:$0xff]
        %v270 = vld [vmem:[%s213 + $0x111] sm:$0xff]
        %v271 = vld [vmem:[%s213 + $0x121] sm:$0xff]
        %v272 = vld [vmem:[%s213 + $0x129] sm:$0xff]
        %v273 = vld [vmem:[%s213 + $0x139] sm:$0xff]
        %v274 = vld [vmem:[%s213 + $0x141] sm:$0xff]
        %v275 = vld [vmem:[%s213 + $0x151] sm:$0xff]
        %v276 = vld [vmem:[%s213 + $0x159] sm:$0xff]
        %v277 = vld [vmem:[%s213 + $0x169] sm:$0xff]
        %v278 = vld [vmem:[%s213 + $0x171] sm:$0xff]
        %s279 = scalar_lea.vmem %s1, 4
        %v280 = vld [vmem:[%s279] sm:$0xf]
        %vm281 = vcmask 31744
        %v283 = vsel %vm281, %v247, 0
        %v286 = vsel %vm281, %v248, 0
        %v289 = vsel %vm281, %v249, 0
        %v292 = vsel %vm281, %v250, 0
        %v295 = vsel %vm281, %v251, 0
        %v298 = vsel %vm281, %v252, 0
        %v301 = vsel %vm281, %v253, 0
        %v304 = vsel %vm281, %v254, 0
        %v307 = vsel %vm281, %v255, 0
        %v310 = vsel %vm281, %v256, 0
        %v313 = vsel %vm281, %v257, 0
        %v316 = vsel %vm281, %v258, 0
        %v319 = vsel %vm281, %v259, 0
        %v322 = vsel %vm281, %v260, 0
        %v325 = vsel %vm281, %v261, 0
        %v328 = vsel %vm281, %v262, 0
        %v331 = vsel %vm281, %v263, 0
        %v334 = vsel %vm281, %v264, 0
        %v337 = vsel %vm281, %v265, 0
        %v340 = vsel %vm281, %v266, 0
        %v343 = vsel %vm281, %v267, 0
        %v346 = vsel %vm281, %v268, 0
        %v349 = vsel %vm281, %v269, 0
        %v352 = vsel %vm281, %v270, 0
        %v355 = vsel %vm281, %v271, 0
        %v358 = vsel %vm281, %v272, 0
        %v361 = vsel %vm281, %v273, 0
        %v364 = vsel %vm281, %v274, 0
        %v367 = vsel %vm281, %v275, 0
        %v370 = vsel %vm281, %v276, 0
        %v373 = vsel %vm281, %v277, 0
        %v376 = vsel %vm281, %v278, 0
        %vm378 = vcmask 1043456
        %v380 = vsel %vm378, %v280, 0
        %382 = vmatpush.msra.mxu0 0.0
        %383 = vmatpush.msra.mxu0 0.0
        %384 = vmatpush.msra.mxu0 0.0
        %385 = vmatpush.msra.mxu0 0.0
        %386 = vmatpush.msra.mxu0 0.0
        %387 = vmatpush.msra.mxu0 0.0
        %388 = vmatpush.msra.mxu0 0.0
        %389 = vmatpush.msra.mxu0 0.0
        %390 = vmatpush.msra.mxu0 0.0
        %391 = vmatpush.msra.mxu0 0.0
        %392 = vmatpush.msra.mxu0 0.0
        %393 = vmatpush.msra.mxu0 0.0
        %394 = vmatpush.msra.mxu0 0.0
        %395 = vmatpush.msra.mxu0 0.0
        %396 = vmatpush.msra.mxu0 0.0
        %397 = vmatpush.msra.mxu0 %v380
        %398 = vmatmul.f32.gmra.mxu0 %v283
        %v399 = vpop.f32.mrf.mxu0
        %v400 = vadd.f32 0.0, %v399
        %401 = vmatmul.f32.gmra.mxu0 %v286
        %v402 = vpop.f32.mrf.mxu0
        %v403 = vadd.f32 0.0, %v402
        %404 = vmatmul.f32.gmra.mxu0 %v289
        %v405 = vpop.f32.mrf.mxu0
        %v406 = vadd.f32 0.0, %v405
        %407 = vmatmul.f32.gmra.mxu0 %v292
        %v408 = vpop.f32.mrf.mxu0
        %v409 = vadd.f32 0.0, %v408
        %410 = vmatmul.f32.gmra.mxu0 %v295
        %v411 = vpop.f32.mrf.mxu0
        %v412 = vadd.f32 0.0, %v411
        %413 = vmatmul.f32.gmra.mxu0 %v298
        %v414 = vpop.f32.mrf.mxu0
        %v415 = vadd.f32 0.0, %v414
        %416 = vmatmul.f32.gmra.mxu0 %v301
        %v417 = vpop.f32.mrf.mxu0
        %v418 = vadd.f32 0.0, %v417
        %419 = vmatmul.f32.gmra.mxu0 %v304
        %v420 = vpop.f32.mrf.mxu0
        %v421 = vadd.f32 0.0, %v420
        %422 = vmatmul.f32.gmra.mxu0 %v307
        %v423 = vpop.f32.mrf.mxu0
        %v424 = vadd.f32 0.0, %v423
        %425 = vmatmul.f32.gmra.mxu0 %v310
        %v426 = vpop.f32.mrf.mxu0
        %v427 = vadd.f32 0.0, %v426
        %428 = vmatmul.f32.gmra.mxu0 %v313
        %v429 = vpop.f32.mrf.mxu0
        %v430 = vadd.f32 0.0, %v429
        %431 = vmatmul.f32.gmra.mxu0 %v316
        %v432 = vpop.f32.mrf.mxu0
        %v433 = vadd.f32 0.0, %v432
        %434 = vmatmul.f32.gmra.mxu0 %v319
        %v435 = vpop.f32.mrf.mxu0
        %v436 = vadd.f32 0.0, %v435
        %437 = vmatmul.f32.gmra.mxu0 %v322
        %v438 = vpop.f32.mrf.mxu0
        %v439 = vadd.f32 0.0, %v438
        %440 = vmatmul.f32.gmra.mxu0 %v325
        %v441 = vpop.f32.mrf.mxu0
        %v442 = vadd.f32 0.0, %v441
        %443 = vmatmul.f32.gmra.mxu0 %v328
        %v444 = vpop.f32.mrf.mxu0
        %v445 = vadd.f32 0.0, %v444
        %446 = vmatmul.f32.gmra.mxu0 %v331
        %v447 = vpop.f32.mrf.mxu0
        %v448 = vadd.f32 0.0, %v447
        %449 = vmatmul.f32.gmra.mxu0 %v334
        %v450 = vpop.f32.mrf.mxu0
        %v451 = vadd.f32 0.0, %v450
        %452 = vmatmul.f32.gmra.mxu0 %v337
        %v453 = vpop.f32.mrf.mxu0
        %v454 = vadd.f32 0.0, %v453
        %455 = vmatmul.f32.gmra.mxu0 %v340
        %v456 = vpop.f32.mrf.mxu0
        %v457 = vadd.f32 0.0, %v456
        %458 = vmatmul.f32.gmra.mxu0 %v343
        %v459 = vpop.f32.mrf.mxu0
        %v460 = vadd.f32 0.0, %v459
        %461 = vmatmul.f32.gmra.mxu0 %v346
        %v462 = vpop.f32.mrf.mxu0
        %v463 = vadd.f32 0.0, %v462
        %464 = vmatmul.f32.gmra.mxu0 %v349
        %v465 = vpop.f32.mrf.mxu0
        %v466 = vadd.f32 0.0, %v465
        %467 = vmatmul.f32.gmra.mxu0 %v352
        %v468 = vpop.f32.mrf.mxu0
        %v469 = vadd.f32 0.0, %v468
        %470 = vmatmul.f32.gmra.mxu0 %v355
        %v471 = vpop.f32.mrf.mxu0
        %v472 = vadd.f32 0.0, %v471
        %473 = vmatmul.f32.gmra.mxu0 %v358
        %v474 = vpop.f32.mrf.mxu0
        %v475 = vadd.f32 0.0, %v474
        %476 = vmatmul.f32.gmra.mxu0 %v361
        %v477 = vpop.f32.mrf.mxu0
        %v478 = vadd.f32 0.0, %v477
        %479 = vmatmul.f32.gmra.mxu0 %v364
        %v480 = vpop.f32.mrf.mxu0
        %v481 = vadd.f32 0.0, %v480
        %482 = vmatmul.f32.gmra.mxu0 %v367
        %v483 = vpop.f32.mrf.mxu0
        %v484 = vadd.f32 0.0, %v483
        %485 = vmatmul.f32.gmra.mxu0 %v370
        %v486 = vpop.f32.mrf.mxu0
        %v487 = vadd.f32 0.0, %v486
        %488 = vmatmul.f32.gmra.mxu0 %v373
        %v489 = vpop.f32.mrf.mxu0
        %v490 = vadd.f32 0.0, %v489
        %491 = vmatmul.f32.gmra.mxu0 %v376
        %v492 = vpop.f32.mrf.mxu0
        %v493 = vadd.f32 0.0, %v492
        %494 = vdwg.mxu0
        %v496 = vsel %vm281, %v214, 0
        %v499 = vsel %vm281, %v215, 0
        %v502 = vsel %vm281, %v216, 0
        %v505 = vsel %vm281, %v217, 0
        %v508 = vsel %vm281, %v218, 0
        %v511 = vsel %vm281, %v219, 0
        %v514 = vsel %vm281, %v220, 0
        %v517 = vsel %vm281, %v221, 0
        %v520 = vsel %vm281, %v222, 0
        %v523 = vsel %vm281, %v223, 0
        %v526 = vsel %vm281, %v224, 0
        %v529 = vsel %vm281, %v225, 0
        %v532 = vsel %vm281, %v226, 0
        %v535 = vsel %vm281, %v227, 0
        %v538 = vsel %vm281, %v228, 0
        %v541 = vsel %vm281, %v229, 0
        %v544 = vsel %vm281, %v230, 0
        %v547 = vsel %vm281, %v231, 0
        %v550 = vsel %vm281, %v232, 0
        %v553 = vsel %vm281, %v233, 0
        %v556 = vsel %vm281, %v234, 0
        %v559 = vsel %vm281, %v235, 0
        %v562 = vsel %vm281, %v236, 0
        %v565 = vsel %vm281, %v237, 0
        %v568 = vsel %vm281, %v238, 0
        %v571 = vsel %vm281, %v239, 0
        %v574 = vsel %vm281, %v240, 0
        %v577 = vsel %vm281, %v241, 0
        %v580 = vsel %vm281, %v242, 0
        %v583 = vsel %vm281, %v243, 0
        %v586 = vsel %vm281, %v244, 0
        %v589 = vsel %vm281, %v245, 0
        %v592 = vsel %vm378, %v246, 0
        %594 = vmatpush.msra.mxu0 0.0
        %595 = vmatpush.msra.mxu0 0.0
        %596 = vmatpush.msra.mxu0 0.0
        %597 = vmatpush.msra.mxu0 0.0
        %598 = vmatpush.msra.mxu0 0.0
        %599 = vmatpush.msra.mxu0 0.0
        %600 = vmatpush.msra.mxu0 0.0
        %601 = vmatpush.msra.mxu0 0.0
        %602 = vmatpush.msra.mxu0 0.0
        %603 = vmatpush.msra.mxu0 0.0
        %604 = vmatpush.msra.mxu0 0.0
        %605 = vmatpush.msra.mxu0 0.0
        %606 = vmatpush.msra.mxu0 0.0
        %607 = vmatpush.msra.mxu0 0.0
        %608 = vmatpush.msra.mxu0 0.0
        %609 = vmatpush.msra.mxu0 %v592
        %610 = vmatmul.f32.gmra.mxu0 %v496
        %v611 = vpop.f32.mrf.mxu0
        %v612 = vadd.f32 %v400, %v611
        %613 = vmatmul.f32.gmra.mxu0 %v499
        %v614 = vpop.f32.mrf.mxu0
        %v615 = vadd.f32 %v403, %v614
        %616 = vmatmul.f32.gmra.mxu0 %v502
        %v617 = vpop.f32.mrf.mxu0
        %v618 = vadd.f32 %v406, %v617
        %619 = vmatmul.f32.gmra.mxu0 %v505
        %v620 = vpop.f32.mrf.mxu0
        %v621 = vadd.f32 %v409, %v620
        %622 = vmatmul.f32.gmra.mxu0 %v508
        %v623 = vpop.f32.mrf.mxu0
        %v624 = vadd.f32 %v412, %v623
        %625 = vmatmul.f32.gmra.mxu0 %v511
        %v626 = vpop.f32.mrf.mxu0
        %v627 = vadd.f32 %v415, %v626
        %628 = vmatmul.f32.gmra.mxu0 %v514
        %v629 = vpop.f32.mrf.mxu0
        %v630 = vadd.f32 %v418, %v629
        %631 = vmatmul.f32.gmra.mxu0 %v517
        %v632 = vpop.f32.mrf.mxu0
        %v633 = vadd.f32 %v421, %v632
        %634 = vmatmul.f32.gmra.mxu0 %v520
        %v635 = vpop.f32.mrf.mxu0
        %v636 = vadd.f32 %v424, %v635
        %637 = vmatmul.f32.gmra.mxu0 %v523
        %v638 = vpop.f32.mrf.mxu0
        %v639 = vadd.f32 %v427, %v638
        %640 = vmatmul.f32.gmra.mxu0 %v526
        %v641 = vpop.f32.mrf.mxu0
        %v642 = vadd.f32 %v430, %v641
        %643 = vmatmul.f32.gmra.mxu0 %v529
        %v644 = vpop.f32.mrf.mxu0
        %v645 = vadd.f32 %v433, %v644
        %646 = vmatmul.f32.gmra.mxu0 %v532
        %v647 = vpop.f32.mrf.mxu0
        %v648 = vadd.f32 %v436, %v647
        %649 = vmatmul.f32.gmra.mxu0 %v535
        %v650 = vpop.f32.mrf.mxu0
        %v651 = vadd.f32 %v439, %v650
        %652 = vmatmul.f32.gmra.mxu0 %v538
        %v653 = vpop.f32.mrf.mxu0
        %v654 = vadd.f32 %v442, %v653
        %655 = vmatmul.f32.gmra.mxu0 %v541
        %v656 = vpop.f32.mrf.mxu0
        %v657 = vadd.f32 %v445, %v656
        %658 = vmatmul.f32.gmra.mxu0 %v544
        %v659 = vpop.f32.mrf.mxu0
        %v660 = vadd.f32 %v448, %v659
        %661 = vmatmul.f32.gmra.mxu0 %v547
        %v662 = vpop.f32.mrf.mxu0
        %v663 = vadd.f32 %v451, %v662
        %664 = vmatmul.f32.gmra.mxu0 %v550
        %v665 = vpop.f32.mrf.mxu0
        %v666 = vadd.f32 %v454, %v665
        %667 = vmatmul.f32.gmra.mxu0 %v553
        %v668 = vpop.f32.mrf.mxu0
        %v669 = vadd.f32 %v457, %v668
        %670 = vmatmul.f32.gmra.mxu0 %v556
        %v671 = vpop.f32.mrf.mxu0
        %v672 = vadd.f32 %v460, %v671
        %673 = vmatmul.f32.gmra.mxu0 %v559
        %v674 = vpop.f32.mrf.mxu0
        %v675 = vadd.f32 %v463, %v674
        %676 = vmatmul.f32.gmra.mxu0 %v562
        %v677 = vpop.f32.mrf.mxu0
        %v678 = vadd.f32 %v466, %v677
        %679 = vmatmul.f32.gmra.mxu0 %v565
        %v680 = vpop.f32.mrf.mxu0
        %v681 = vadd.f32 %v469, %v680
        %682 = vmatmul.f32.gmra.mxu0 %v568
        %v683 = vpop.f32.mrf.mxu0
        %v684 = vadd.f32 %v472, %v683
        %685 = vmatmul.f32.gmra.mxu0 %v571
        %v686 = vpop.f32.mrf.mxu0
        %v687 = vadd.f32 %v475, %v686
        %688 = vmatmul.f32.gmra.mxu0 %v574
        %v689 = vpop.f32.mrf.mxu0
        %v690 = vadd.f32 %v478, %v689
        %691 = vmatmul.f32.gmra.mxu0 %v577
        %v692 = vpop.f32.mrf.mxu0
        %v693 = vadd.f32 %v481, %v692
        %694 = vmatmul.f32.gmra.mxu0 %v580
        %v695 = vpop.f32.mrf.mxu0
        %v696 = vadd.f32 %v484, %v695
        %697 = vmatmul.f32.gmra.mxu0 %v583
        %v698 = vpop.f32.mrf.mxu0
        %v699 = vadd.f32 %v487, %v698
        %700 = vmatmul.f32.gmra.mxu0 %v586
        %v701 = vpop.f32.mrf.mxu0
        %v702 = vadd.f32 %v490, %v701
        %703 = vmatmul.f32.gmra.mxu0 %v589
        %v704 = vpop.f32.mrf.mxu0
        %v705 = vadd.f32 %v493, %v704
        %706 = vdwg.mxu0
        %v707 = vld [vmem:[%s213 + $0x2] sm:$0xff]
        %v708 = vld [vmem:[%s213 + $0xa] sm:$0xff]
        %v709 = vld [vmem:[%s213 + $0x1a] sm:$0xff]
        %v710 = vld [vmem:[%s213 + $0x22] sm:$0xff]
        %v711 = vld [vmem:[%s213 + $0x32] sm:$0xff]
        %v712 = vld [vmem:[%s213 + $0x3a] sm:$0xff]
        %v713 = vld [vmem:[%s213 + $0x4a] sm:$0xff]
        %v714 = vld [vmem:[%s213 + $0x52] sm:$0xff]
        %v715 = vld [vmem:[%s213 + $0x62] sm:$0xff]
        %v716 = vld [vmem:[%s213 + $0x6a] sm:$0xff]
        %v717 = vld [vmem:[%s213 + $0x7a] sm:$0xff]
        %v718 = vld [vmem:[%s213 + $0x82] sm:$0xff]
        %v719 = vld [vmem:[%s213 + $0x92] sm:$0xff]
        %v720 = vld [vmem:[%s213 + $0x9a] sm:$0xff]
        %v721 = vld [vmem:[%s213 + $0xaa] sm:$0xff]
        %v722 = vld [vmem:[%s213 + $0xb2] sm:$0xff]
        %v723 = vld [vmem:[%s213 + $0xc2] sm:$0xff]
        %v724 = vld [vmem:[%s213 + $0xca] sm:$0xff]
        %v725 = vld [vmem:[%s213 + $0xda] sm:$0xff]
        %v726 = vld [vmem:[%s213 + $0xe2] sm:$0xff]
        %v727 = vld [vmem:[%s213 + $0xf2] sm:$0xff]
        %v728 = vld [vmem:[%s213 + $0xfa] sm:$0xff]
        %v729 = vld [vmem:[%s213 + $0x10a] sm:$0xff]
        %v730 = vld [vmem:[%s213 + $0x112] sm:$0xff]
        %v731 = vld [vmem:[%s213 + $0x122] sm:$0xff]
        %v732 = vld [vmem:[%s213 + $0x12a] sm:$0xff]
        %v733 = vld [vmem:[%s213 + $0x13a] sm:$0xff]
        %v734 = vld [vmem:[%s213 + $0x142] sm:$0xff]
        %v735 = vld [vmem:[%s213 + $0x152] sm:$0xff]
        %v736 = vld [vmem:[%s213 + $0x15a] sm:$0xff]
        %v737 = vld [vmem:[%s213 + $0x16a] sm:$0xff]
        %v738 = vld [vmem:[%s213 + $0x172] sm:$0xff]
        %s739 = scalar_lea.vmem %s1, 8
        %v740 = vld [vmem:[%s739] sm:$0xf]
        %v742 = vsel %vm281, %v707, 0
        %v745 = vsel %vm281, %v708, 0
        %v748 = vsel %vm281, %v709, 0
        %v751 = vsel %vm281, %v710, 0
        %v754 = vsel %vm281, %v711, 0
        %v757 = vsel %vm281, %v712, 0
        %v760 = vsel %vm281, %v713, 0
        %v763 = vsel %vm281, %v714, 0
        %v766 = vsel %vm281, %v715, 0
        %v769 = vsel %vm281, %v716, 0
        %v772 = vsel %vm281, %v717, 0
        %v775 = vsel %vm281, %v718, 0
        %v778 = vsel %vm281, %v719, 0
        %v781 = vsel %vm281, %v720, 0
        %v784 = vsel %vm281, %v721, 0
        %v787 = vsel %vm281, %v722, 0
        %v790 = vsel %vm281, %v723, 0
        %v793 = vsel %vm281, %v724, 0
        %v796 = vsel %vm281, %v725, 0
        %v799 = vsel %vm281, %v726, 0
        %v802 = vsel %vm281, %v727, 0
        %v805 = vsel %vm281, %v728, 0
        %v808 = vsel %vm281, %v729, 0
        %v811 = vsel %vm281, %v730, 0
        %v814 = vsel %vm281, %v731, 0
        %v817 = vsel %vm281, %v732, 0
        %v820 = vsel %vm281, %v733, 0
        %v823 = vsel %vm281, %v734, 0
        %v826 = vsel %vm281, %v735, 0
        %v829 = vsel %vm281, %v736, 0
        %v832 = vsel %vm281, %v737, 0
        %v835 = vsel %vm281, %v738, 0
        %v838 = vsel %vm378, %v740, 0
        %840 = vmatpush.msra.mxu0 0.0
        %841 = vmatpush.msra.mxu0 0.0
        %842 = vmatpush.msra.mxu0 0.0
        %843 = vmatpush.msra.mxu0 0.0
        %844 = vmatpush.msra.mxu0 0.0
        %845 = vmatpush.msra.mxu0 0.0
        %846 = vmatpush.msra.mxu0 0.0
        %847 = vmatpush.msra.mxu0 0.0
        %848 = vmatpush.msra.mxu0 0.0
        %849 = vmatpush.msra.mxu0 0.0
        %850 = vmatpush.msra.mxu0 0.0
        %851 = vmatpush.msra.mxu0 0.0
        %852 = vmatpush.msra.mxu0 0.0
        %853 = vmatpush.msra.mxu0 0.0
        %854 = vmatpush.msra.mxu0 0.0
        %855 = vmatpush.msra.mxu0 %v838
        %856 = vmatmul.f32.gmra.mxu0 %v742
        %v857 = vpop.f32.mrf.mxu0
        %v858 = vadd.f32 0.0, %v857
        %859 = vmatmul.f32.gmra.mxu0 %v745
        %v860 = vpop.f32.mrf.mxu0
        %v861 = vadd.f32 0.0, %v860
        %862 = vmatmul.f32.gmra.mxu0 %v748
        %v863 = vpop.f32.mrf.mxu0
        %v864 = vadd.f32 0.0, %v863
        %865 = vmatmul.f32.gmra.mxu0 %v751
        %v866 = vpop.f32.mrf.mxu0
        %v867 = vadd.f32 0.0, %v866
        %868 = vmatmul.f32.gmra.mxu0 %v754
        %v869 = vpop.f32.mrf.mxu0
        %v870 = vadd.f32 0.0, %v869
        %871 = vmatmul.f32.gmra.mxu0 %v757
        %v872 = vpop.f32.mrf.mxu0
        %v873 = vadd.f32 0.0, %v872
        %874 = vmatmul.f32.gmra.mxu0 %v760
        %v875 = vpop.f32.mrf.mxu0
        %v876 = vadd.f32 0.0, %v875
        %877 = vmatmul.f32.gmra.mxu0 %v763
        %v878 = vpop.f32.mrf.mxu0
        %v879 = vadd.f32 0.0, %v878
        %880 = vmatmul.f32.gmra.mxu0 %v766
        %v881 = vpop.f32.mrf.mxu0
        %v882 = vadd.f32 0.0, %v881
        %883 = vmatmul.f32.gmra.mxu0 %v769
        %v884 = vpop.f32.mrf.mxu0
        %v885 = vadd.f32 0.0, %v884
        %886 = vmatmul.f32.gmra.mxu0 %v772
        %v887 = vpop.f32.mrf.mxu0
        %v888 = vadd.f32 0.0, %v887
        %889 = vmatmul.f32.gmra.mxu0 %v775
        %v890 = vpop.f32.mrf.mxu0
        %v891 = vadd.f32 0.0, %v890
        %892 = vmatmul.f32.gmra.mxu0 %v778
        %v893 = vpop.f32.mrf.mxu0
        %v894 = vadd.f32 0.0, %v893
        %895 = vmatmul.f32.gmra.mxu0 %v781
        %v896 = vpop.f32.mrf.mxu0
        %v897 = vadd.f32 0.0, %v896
        %898 = vmatmul.f32.gmra.mxu0 %v784
        %v899 = vpop.f32.mrf.mxu0
        %v900 = vadd.f32 0.0, %v899
        %901 = vmatmul.f32.gmra.mxu0 %v787
        %v902 = vpop.f32.mrf.mxu0
        %v903 = vadd.f32 0.0, %v902
        %904 = vmatmul.f32.gmra.mxu0 %v790
        %v905 = vpop.f32.mrf.mxu0
        %v906 = vadd.f32 0.0, %v905
        %907 = vmatmul.f32.gmra.mxu0 %v793
        %v908 = vpop.f32.mrf.mxu0
        %v909 = vadd.f32 0.0, %v908
        %910 = vmatmul.f32.gmra.mxu0 %v796
        %v911 = vpop.f32.mrf.mxu0
        %v912 = vadd.f32 0.0, %v911
        %913 = vmatmul.f32.gmra.mxu0 %v799
        %v914 = vpop.f32.mrf.mxu0
        %v915 = vadd.f32 0.0, %v914
        %916 = vmatmul.f32.gmra.mxu0 %v802
        %v917 = vpop.f32.mrf.mxu0
        %v918 = vadd.f32 0.0, %v917
        %919 = vmatmul.f32.gmra.mxu0 %v805
        %v920 = vpop.f32.mrf.mxu0
        %v921 = vadd.f32 0.0, %v920
        %922 = vmatmul.f32.gmra.mxu0 %v808
        %v923 = vpop.f32.mrf.mxu0
        %v924 = vadd.f32 0.0, %v923
        %925 = vmatmul.f32.gmra.mxu0 %v811
        %v926 = vpop.f32.mrf.mxu0
        %v927 = vadd.f32 0.0, %v926
        %928 = vmatmul.f32.gmra.mxu0 %v814
        %v929 = vpop.f32.mrf.mxu0
        %v930 = vadd.f32 0.0, %v929
        %931 = vmatmul.f32.gmra.mxu0 %v817
        %v932 = vpop.f32.mrf.mxu0
        %v933 = vadd.f32 0.0, %v932
        %934 = vmatmul.f32.gmra.mxu0 %v820
        %v935 = vpop.f32.mrf.mxu0
        %v936 = vadd.f32 0.0, %v935
        %937 = vmatmul.f32.gmra.mxu0 %v823
        %v938 = vpop.f32.mrf.mxu0
        %v939 = vadd.f32 0.0, %v938
        %940 = vmatmul.f32.gmra.mxu0 %v826
        %v941 = vpop.f32.mrf.mxu0
        %v942 = vadd.f32 0.0, %v941
        %943 = vmatmul.f32.gmra.mxu0 %v829
        %v944 = vpop.f32.mrf.mxu0
        %v945 = vadd.f32 0.0, %v944
        %946 = vmatmul.f32.gmra.mxu0 %v832
        %v947 = vpop.f32.mrf.mxu0
        %v948 = vadd.f32 0.0, %v947
        %949 = vmatmul.f32.gmra.mxu0 %v835
        %v950 = vpop.f32.mrf.mxu0
        %v951 = vadd.f32 0.0, %v950
        %952 = vdwg.mxu0
        %v953 = vadd.f32 %v612, %v858
        %v954 = vadd.f32 %v615, %v861
        %v955 = vadd.f32 %v618, %v864
        %v956 = vadd.f32 %v621, %v867
        %v957 = vadd.f32 %v624, %v870
        %v958 = vadd.f32 %v627, %v873
        %v959 = vadd.f32 %v630, %v876
        %v960 = vadd.f32 %v633, %v879
        %v961 = vadd.f32 %v636, %v882
        %v962 = vadd.f32 %v639, %v885
        %v963 = vadd.f32 %v642, %v888
        %v964 = vadd.f32 %v645, %v891
        %v965 = vadd.f32 %v648, %v894
        %v966 = vadd.f32 %v651, %v897
        %v967 = vadd.f32 %v654, %v900
        %v968 = vadd.f32 %v657, %v903
        %v969 = vadd.f32 %v660, %v906
        %v970 = vadd.f32 %v663, %v909
        %v971 = vadd.f32 %v666, %v912
        %v972 = vadd.f32 %v669, %v915
        %v973 = vadd.f32 %v672, %v918
        %v974 = vadd.f32 %v675, %v921
        %v975 = vadd.f32 %v678, %v924
        %v976 = vadd.f32 %v681, %v927
        %v977 = vadd.f32 %v684, %v930
        %v978 = vadd.f32 %v687, %v933
        %v979 = vadd.f32 %v690, %v936
        %v980 = vadd.f32 %v693, %v939
        %v981 = vadd.f32 %v696, %v942
        %v982 = vadd.f32 %v699, %v945
        %v983 = vadd.f32 %v702, %v948
        %v984 = vadd.f32 %v705, %v951
        %s985 = sadd.s32 %s211, 1
        %s986 = smul.u32 %s985, 24
        %s987 = scalar_lea.vmem %s209, %s986
        %v988 = vld [vmem:[%s987] sm:$0xff]
        %v989 = vld [vmem:[%s987 + $0x8] sm:$0xff]
        %v990 = vld [vmem:[%s987 + $0x18] sm:$0xff]
        %v991 = vld [vmem:[%s987 + $0x20] sm:$0xff]
        %v992 = vld [vmem:[%s987 + $0x30] sm:$0xff]
        %v993 = vld [vmem:[%s987 + $0x38] sm:$0xff]
        %v994 = vld [vmem:[%s987 + $0x48] sm:$0xff]
        %v995 = vld [vmem:[%s987 + $0x50] sm:$0xff]
        %v996 = vld [vmem:[%s987 + $0x60] sm:$0xff]
        %v997 = vld [vmem:[%s987 + $0x68] sm:$0xff]
        %v998 = vld [vmem:[%s987 + $0x78] sm:$0xff]
        %v999 = vld [vmem:[%s987 + $0x80] sm:$0xff]
        %v1000 = vld [vmem:[%s987 + $0x90] sm:$0xff]
        %v1001 = vld [vmem:[%s987 + $0x98] sm:$0xff]
        %v1002 = vld [vmem:[%s987 + $0xa8] sm:$0xff]
        %v1003 = vld [vmem:[%s987 + $0xb0] sm:$0xff]
        %v1004 = vld [vmem:[%s987 + $0xc0] sm:$0xff]
        %v1005 = vld [vmem:[%s987 + $0xc8] sm:$0xff]
        %v1006 = vld [vmem:[%s987 + $0xd8] sm:$0xff]
        %v1007 = vld [vmem:[%s987 + $0xe0] sm:$0xff]
        %v1008 = vld [vmem:[%s987 + $0xf0] sm:$0xff]
        %v1009 = vld [vmem:[%s987 + $0xf8] sm:$0xff]
        %v1010 = vld [vmem:[%s987 + $0x108] sm:$0xff]
        %v1011 = vld [vmem:[%s987 + $0x110] sm:$0xff]
        %v1012 = vld [vmem:[%s987 + $0x120] sm:$0xff]
        %v1013 = vld [vmem:[%s987 + $0x128] sm:$0xff]
        %v1014 = vld [vmem:[%s987 + $0x138] sm:$0xff]
        %v1015 = vld [vmem:[%s987 + $0x140] sm:$0xff]
        %v1016 = vld [vmem:[%s987 + $0x150] sm:$0xff]
        %v1017 = vld [vmem:[%s987 + $0x158] sm:$0xff]
        %v1018 = vld [vmem:[%s987 + $0x168] sm:$0xff]
        %v1019 = vld [vmem:[%s987 + $0x170] sm:$0xff]
        %s1020 = scalar_lea.vmem %s1, 12
        %v1021 = vld [vmem:[%s1020] sm:$0xf]
        %v1023 = vsel %vm281, %v988, 0
        %v1026 = vsel %vm281, %v989, 0
        %v1029 = vsel %vm281, %v990, 0
        %v1032 = vsel %vm281, %v991, 0
        %v1035 = vsel %vm281, %v992, 0
        %v1038 = vsel %vm281, %v993, 0
        %v1041 = vsel %vm281, %v994, 0
        %v1044 = vsel %vm281, %v995, 0
        %v1047 = vsel %vm281, %v996, 0
        %v1050 = vsel %vm281, %v997, 0
        %v1053 = vsel %vm281, %v998, 0
        %v1056 = vsel %vm281, %v999, 0
        %v1059 = vsel %vm281, %v1000, 0
        %v1062 = vsel %vm281, %v1001, 0
        %v1065 = vsel %vm281, %v1002, 0
        %v1068 = vsel %vm281, %v1003, 0
        %v1071 = vsel %vm281, %v1004, 0
        %v1074 = vsel %vm281, %v1005, 0
        %v1077 = vsel %vm281, %v1006, 0
        %v1080 = vsel %vm281, %v1007, 0
        %v1083 = vsel %vm281, %v1008, 0
        %v1086 = vsel %vm281, %v1009, 0
        %v1089 = vsel %vm281, %v1010, 0
        %v1092 = vsel %vm281, %v1011, 0
        %v1095 = vsel %vm281, %v1012, 0
        %v1098 = vsel %vm281, %v1013, 0
        %v1101 = vsel %vm281, %v1014, 0
        %v1104 = vsel %vm281, %v1015, 0
        %v1107 = vsel %vm281, %v1016, 0
        %v1110 = vsel %vm281, %v1017, 0
        %v1113 = vsel %vm281, %v1018, 0
        %v1116 = vsel %vm281, %v1019, 0
        %v1119 = vsel %vm378, %v1021, 0
        %1121 = vmatpush.msra.mxu0 0.0
        %1122 = vmatpush.msra.mxu0 0.0
        %1123 = vmatpush.msra.mxu0 0.0
        %1124 = vmatpush.msra.mxu0 0.0
        %1125 = vmatpush.msra.mxu0 0.0
        %1126 = vmatpush.msra.mxu0 0.0
        %1127 = vmatpush.msra.mxu0 0.0
        %1128 = vmatpush.msra.mxu0 0.0
        %1129 = vmatpush.msra.mxu0 0.0
        %1130 = vmatpush.msra.mxu0 0.0
        %1131 = vmatpush.msra.mxu0 0.0
        %1132 = vmatpush.msra.mxu0 0.0
        %1133 = vmatpush.msra.mxu0 0.0
        %1134 = vmatpush.msra.mxu0 0.0
        %1135 = vmatpush.msra.mxu0 0.0
        %1136 = vmatpush.msra.mxu0 %v1119
        %1137 = vmatmul.f32.gmra.mxu0 %v1023
        %v1138 = vpop.f32.mrf.mxu0
        %v1139 = vadd.f32 0.0, %v1138
        %1140 = vmatmul.f32.gmra.mxu0 %v1026
        %v1141 = vpop.f32.mrf.mxu0
        %v1142 = vadd.f32 0.0, %v1141
        %1143 = vmatmul.f32.gmra.mxu0 %v1029
        %v1144 = vpop.f32.mrf.mxu0
        %v1145 = vadd.f32 0.0, %v1144
        %1146 = vmatmul.f32.gmra.mxu0 %v1032
        %v1147 = vpop.f32.mrf.mxu0
        %v1148 = vadd.f32 0.0, %v1147
        %1149 = vmatmul.f32.gmra.mxu0 %v1035
        %v1150 = vpop.f32.mrf.mxu0
        %v1151 = vadd.f32 0.0, %v1150
        %1152 = vmatmul.f32.gmra.mxu0 %v1038
        %v1153 = vpop.f32.mrf.mxu0
        %v1154 = vadd.f32 0.0, %v1153
        %1155 = vmatmul.f32.gmra.mxu0 %v1041
        %v1156 = vpop.f32.mrf.mxu0
        %v1157 = vadd.f32 0.0, %v1156
        %1158 = vmatmul.f32.gmra.mxu0 %v1044
        %v1159 = vpop.f32.mrf.mxu0
        %v1160 = vadd.f32 0.0, %v1159
        %1161 = vmatmul.f32.gmra.mxu0 %v1047
        %v1162 = vpop.f32.mrf.mxu0
        %v1163 = vadd.f32 0.0, %v1162
        %1164 = vmatmul.f32.gmra.mxu0 %v1050
        %v1165 = vpop.f32.mrf.mxu0
        %v1166 = vadd.f32 0.0, %v1165
        %1167 = vmatmul.f32.gmra.mxu0 %v1053
        %v1168 = vpop.f32.mrf.mxu0
        %v1169 = vadd.f32 0.0, %v1168
        %1170 = vmatmul.f32.gmra.mxu0 %v1056
        %v1171 = vpop.f32.mrf.mxu0
        %v1172 = vadd.f32 0.0, %v1171
        %1173 = vmatmul.f32.gmra.mxu0 %v1059
        %v1174 = vpop.f32.mrf.mxu0
        %v1175 = vadd.f32 0.0, %v1174
        %1176 = vmatmul.f32.gmra.mxu0 %v1062
        %v1177 = vpop.f32.mrf.mxu0
        %v1178 = vadd.f32 0.0, %v1177
        %1179 = vmatmul.f32.gmra.mxu0 %v1065
        %v1180 = vpop.f32.mrf.mxu0
        %v1181 = vadd.f32 0.0, %v1180
        %1182 = vmatmul.f32.gmra.mxu0 %v1068
        %v1183 = vpop.f32.mrf.mxu0
        %v1184 = vadd.f32 0.0, %v1183
        %1185 = vmatmul.f32.gmra.mxu0 %v1071
        %v1186 = vpop.f32.mrf.mxu0
        %v1187 = vadd.f32 0.0, %v1186
        %1188 = vmatmul.f32.gmra.mxu0 %v1074
        %v1189 = vpop.f32.mrf.mxu0
        %v1190 = vadd.f32 0.0, %v1189
        %1191 = vmatmul.f32.gmra.mxu0 %v1077
        %v1192 = vpop.f32.mrf.mxu0
        %v1193 = vadd.f32 0.0, %v1192
        %1194 = vmatmul.f32.gmra.mxu0 %v1080
        %v1195 = vpop.f32.mrf.mxu0
        %v1196 = vadd.f32 0.0, %v1195
        %1197 = vmatmul.f32.gmra.mxu0 %v1083
        %v1198 = vpop.f32.mrf.mxu0
        %v1199 = vadd.f32 0.0, %v1198
        %1200 = vmatmul.f32.gmra.mxu0 %v1086
        %v1201 = vpop.f32.mrf.mxu0
        %v1202 = vadd.f32 0.0, %v1201
        %1203 = vmatmul.f32.gmra.mxu0 %v1089
        %v1204 = vpop.f32.mrf.mxu0
        %v1205 = vadd.f32 0.0, %v1204
        %1206 = vmatmul.f32.gmra.mxu0 %v1092
        %v1207 = vpop.f32.mrf.mxu0
        %v1208 = vadd.f32 0.0, %v1207
        %1209 = vmatmul.f32.gmra.mxu0 %v1095
        %v1210 = vpop.f32.mrf.mxu0
        %v1211 = vadd.f32 0.0, %v1210
        %1212 = vmatmul.f32.gmra.mxu0 %v1098
        %v1213 = vpop.f32.mrf.mxu0
        %v1214 = vadd.f32 0.0, %v1213
        %1215 = vmatmul.f32.gmra.mxu0 %v1101
        %v1216 = vpop.f32.mrf.mxu0
        %v1217 = vadd.f32 0.0, %v1216
        %1218 = vmatmul.f32.gmra.mxu0 %v1104
        %v1219 = vpop.f32.mrf.mxu0
        %v1220 = vadd.f32 0.0, %v1219
        %1221 = vmatmul.f32.gmra.mxu0 %v1107
        %v1222 = vpop.f32.mrf.mxu0
        %v1223 = vadd.f32 0.0, %v1222
        %1224 = vmatmul.f32.gmra.mxu0 %v1110
        %v1225 = vpop.f32.mrf.mxu0
        %v1226 = vadd.f32 0.0, %v1225
        %1227 = vmatmul.f32.gmra.mxu0 %v1113
        %v1228 = vpop.f32.mrf.mxu0
        %v1229 = vadd.f32 0.0, %v1228
        %1230 = vmatmul.f32.gmra.mxu0 %v1116
        %v1231 = vpop.f32.mrf.mxu0
        %v1232 = vadd.f32 0.0, %v1231
        %1233 = vdwg.mxu0
        %v1234 = vadd.f32 %v953, %v1139
        %v1235 = vadd.f32 %v954, %v1142
        %v1236 = vadd.f32 %v955, %v1145
        %v1237 = vadd.f32 %v956, %v1148
        %v1238 = vadd.f32 %v957, %v1151
        %v1239 = vadd.f32 %v958, %v1154
        %v1240 = vadd.f32 %v959, %v1157
        %v1241 = vadd.f32 %v960, %v1160
        %v1242 = vadd.f32 %v961, %v1163
        %v1243 = vadd.f32 %v962, %v1166
        %v1244 = vadd.f32 %v963, %v1169
        %v1245 = vadd.f32 %v964, %v1172
        %v1246 = vadd.f32 %v965, %v1175
        %v1247 = vadd.f32 %v966, %v1178
        %v1248 = vadd.f32 %v967, %v1181
        %v1249 = vadd.f32 %v968, %v1184
        %v1250 = vadd.f32 %v969, %v1187
        %v1251 = vadd.f32 %v970, %v1190
        %v1252 = vadd.f32 %v971, %v1193
        %v1253 = vadd.f32 %v972, %v1196
        %v1254 = vadd.f32 %v973, %v1199
        %v1255 = vadd.f32 %v974, %v1202
        %v1256 = vadd.f32 %v975, %v1205
        %v1257 = vadd.f32 %v976, %v1208
        %v1258 = vadd.f32 %v977, %v1211
        %v1259 = vadd.f32 %v978, %v1214
        %v1260 = vadd.f32 %v979, %v1217
        %v1261 = vadd.f32 %v980, %v1220
        %v1262 = vadd.f32 %v981, %v1223
        %v1263 = vadd.f32 %v982, %v1226
        %v1264 = vadd.f32 %v983, %v1229
        %v1265 = vadd.f32 %v984, %v1232
        %v1266 = vld [vmem:[%s987 + $0x1] sm:$0xff]
        %v1267 = vld [vmem:[%s987 + $0x9] sm:$0xff]
        %v1268 = vld [vmem:[%s987 + $0x19] sm:$0xff]
        %v1269 = vld [vmem:[%s987 + $0x21] sm:$0xff]
        %v1270 = vld [vmem:[%s987 + $0x31] sm:$0xff]
        %v1271 = vld [vmem:[%s987 + $0x39] sm:$0xff]
        %v1272 = vld [vmem:[%s987 + $0x49] sm:$0xff]
        %v1273 = vld [vmem:[%s987 + $0x51] sm:$0xff]
        %v1274 = vld [vmem:[%s987 + $0x61] sm:$0xff]
        %v1275 = vld [vmem:[%s987 + $0x69] sm:$0xff]
        %v1276 = vld [vmem:[%s987 + $0x79] sm:$0xff]
        %v1277 = vld [vmem:[%s987 + $0x81] sm:$0xff]
        %v1278 = vld [vmem:[%s987 + $0x91] sm:$0xff]
        %v1279 = vld [vmem:[%s987 + $0x99] sm:$0xff]
        %v1280 = vld [vmem:[%s987 + $0xa9] sm:$0xff]
        %v1281 = vld [vmem:[%s987 + $0xb1] sm:$0xff]
        %v1282 = vld [vmem:[%s987 + $0xc1] sm:$0xff]
        %v1283 = vld [vmem:[%s987 + $0xc9] sm:$0xff]
        %v1284 = vld [vmem:[%s987 + $0xd9] sm:$0xff]
        %v1285 = vld [vmem:[%s987 + $0xe1] sm:$0xff]
        %v1286 = vld [vmem:[%s987 + $0xf1] sm:$0xff]
        %v1287 = vld [vmem:[%s987 + $0xf9] sm:$0xff]
        %v1288 = vld [vmem:[%s987 + $0x109] sm:$0xff]
        %v1289 = vld [vmem:[%s987 + $0x111] sm:$0xff]
        %v1290 = vld [vmem:[%s987 + $0x121] sm:$0xff]
        %v1291 = vld [vmem:[%s987 + $0x129] sm:$0xff]
        %v1292 = vld [vmem:[%s987 + $0x139] sm:$0xff]
        %v1293 = vld [vmem:[%s987 + $0x141] sm:$0xff]
        %v1294 = vld [vmem:[%s987 + $0x151] sm:$0xff]
        %v1295 = vld [vmem:[%s987 + $0x159] sm:$0xff]
        %v1296 = vld [vmem:[%s987 + $0x169] sm:$0xff]
        %v1297 = vld [vmem:[%s987 + $0x171] sm:$0xff]
        %s1298 = scalar_lea.vmem %s1, 16
        %v1299 = vld [vmem:[%s1298] sm:$0xf]
        %v1301 = vsel %vm281, %v1266, 0
        %v1304 = vsel %vm281, %v1267, 0
        %v1307 = vsel %vm281, %v1268, 0
        %v1310 = vsel %vm281, %v1269, 0
        %v1313 = vsel %vm281, %v1270, 0
        %v1316 = vsel %vm281, %v1271, 0
        %v1319 = vsel %vm281, %v1272, 0
        %v1322 = vsel %vm281, %v1273, 0
        %v1325 = vsel %vm281, %v1274, 0
        %v1328 = vsel %vm281, %v1275, 0
        %v1331 = vsel %vm281, %v1276, 0
        %v1334 = vsel %vm281, %v1277, 0
        %v1337 = vsel %vm281, %v1278, 0
        %v1340 = vsel %vm281, %v1279, 0
        %v1343 = vsel %vm281, %v1280, 0
        %v1346 = vsel %vm281, %v1281, 0
        %v1349 = vsel %vm281, %v1282, 0
        %v1352 = vsel %vm281, %v1283, 0
        %v1355 = vsel %vm281, %v1284, 0
        %v1358 = vsel %vm281, %v1285, 0
        %v1361 = vsel %vm281, %v1286, 0
        %v1364 = vsel %vm281, %v1287, 0
        %v1367 = vsel %vm281, %v1288, 0
        %v1370 = vsel %vm281, %v1289, 0
        %v1373 = vsel %vm281, %v1290, 0
        %v1376 = vsel %vm281, %v1291, 0
        %v1379 = vsel %vm281, %v1292, 0
        %v1382 = vsel %vm281, %v1293, 0
        %v1385 = vsel %vm281, %v1294, 0
        %v1388 = vsel %vm281, %v1295, 0
        %v1391 = vsel %vm281, %v1296, 0
        %v1394 = vsel %vm281, %v1297, 0
        %v1397 = vsel %vm378, %v1299, 0
        %1399 = vmatpush.msra.mxu0 0.0
        %1400 = vmatpush.msra.mxu0 0.0
        %1401 = vmatpush.msra.mxu0 0.0
        %1402 = vmatpush.msra.mxu0 0.0
        %1403 = vmatpush.msra.mxu0 0.0
        %1404 = vmatpush.msra.mxu0 0.0
        %1405 = vmatpush.msra.mxu0 0.0
        %1406 = vmatpush.msra.mxu0 0.0
        %1407 = vmatpush.msra.mxu0 0.0
        %1408 = vmatpush.msra.mxu0 0.0
        %1409 = vmatpush.msra.mxu0 0.0
        %1410 = vmatpush.msra.mxu0 0.0
        %1411 = vmatpush.msra.mxu0 0.0
        %1412 = vmatpush.msra.mxu0 0.0
        %1413 = vmatpush.msra.mxu0 0.0
        %1414 = vmatpush.msra.mxu0 %v1397
        %1415 = vmatmul.f32.gmra.mxu0 %v1301
        %v1416 = vpop.f32.mrf.mxu0
        %v1417 = vadd.f32 0.0, %v1416
        %1418 = vmatmul.f32.gmra.mxu0 %v1304
        %v1419 = vpop.f32.mrf.mxu0
        %v1420 = vadd.f32 0.0, %v1419
        %1421 = vmatmul.f32.gmra.mxu0 %v1307
        %v1422 = vpop.f32.mrf.mxu0
        %v1423 = vadd.f32 0.0, %v1422
        %1424 = vmatmul.f32.gmra.mxu0 %v1310
        %v1425 = vpop.f32.mrf.mxu0
        %v1426 = vadd.f32 0.0, %v1425
        %1427 = vmatmul.f32.gmra.mxu0 %v1313
        %v1428 = vpop.f32.mrf.mxu0
        %v1429 = vadd.f32 0.0, %v1428
        %1430 = vmatmul.f32.gmra.mxu0 %v1316
        %v1431 = vpop.f32.mrf.mxu0
        %v1432 = vadd.f32 0.0, %v1431
        %1433 = vmatmul.f32.gmra.mxu0 %v1319
        %v1434 = vpop.f32.mrf.mxu0
        %v1435 = vadd.f32 0.0, %v1434
        %1436 = vmatmul.f32.gmra.mxu0 %v1322
        %v1437 = vpop.f32.mrf.mxu0
        %v1438 = vadd.f32 0.0, %v1437
        %1439 = vmatmul.f32.gmra.mxu0 %v1325
        %v1440 = vpop.f32.mrf.mxu0
        %v1441 = vadd.f32 0.0, %v1440
        %1442 = vmatmul.f32.gmra.mxu0 %v1328
        %v1443 = vpop.f32.mrf.mxu0
        %v1444 = vadd.f32 0.0, %v1443
        %1445 = vmatmul.f32.gmra.mxu0 %v1331
        %v1446 = vpop.f32.mrf.mxu0
        %v1447 = vadd.f32 0.0, %v1446
        %1448 = vmatmul.f32.gmra.mxu0 %v1334
        %v1449 = vpop.f32.mrf.mxu0
        %v1450 = vadd.f32 0.0, %v1449
        %1451 = vmatmul.f32.gmra.mxu0 %v1337
        %v1452 = vpop.f32.mrf.mxu0
        %v1453 = vadd.f32 0.0, %v1452
        %1454 = vmatmul.f32.gmra.mxu0 %v1340
        %v1455 = vpop.f32.mrf.mxu0
        %v1456 = vadd.f32 0.0, %v1455
        %1457 = vmatmul.f32.gmra.mxu0 %v1343
        %v1458 = vpop.f32.mrf.mxu0
        %v1459 = vadd.f32 0.0, %v1458
        %1460 = vmatmul.f32.gmra.mxu0 %v1346
        %v1461 = vpop.f32.mrf.mxu0
        %v1462 = vadd.f32 0.0, %v1461
        %1463 = vmatmul.f32.gmra.mxu0 %v1349
        %v1464 = vpop.f32.mrf.mxu0
        %v1465 = vadd.f32 0.0, %v1464
        %1466 = vmatmul.f32.gmra.mxu0 %v1352
        %v1467 = vpop.f32.mrf.mxu0
        %v1468 = vadd.f32 0.0, %v1467
        %1469 = vmatmul.f32.gmra.mxu0 %v1355
        %v1470 = vpop.f32.mrf.mxu0
        %v1471 = vadd.f32 0.0, %v1470
        %1472 = vmatmul.f32.gmra.mxu0 %v1358
        %v1473 = vpop.f32.mrf.mxu0
        %v1474 = vadd.f32 0.0, %v1473
        %1475 = vmatmul.f32.gmra.mxu0 %v1361
        %v1476 = vpop.f32.mrf.mxu0
        %v1477 = vadd.f32 0.0, %v1476
        %1478 = vmatmul.f32.gmra.mxu0 %v1364
        %v1479 = vpop.f32.mrf.mxu0
        %v1480 = vadd.f32 0.0, %v1479
        %1481 = vmatmul.f32.gmra.mxu0 %v1367
        %v1482 = vpop.f32.mrf.mxu0
        %v1483 = vadd.f32 0.0, %v1482
        %1484 = vmatmul.f32.gmra.mxu0 %v1370
        %v1485 = vpop.f32.mrf.mxu0
        %v1486 = vadd.f32 0.0, %v1485
        %1487 = vmatmul.f32.gmra.mxu0 %v1373
        %v1488 = vpop.f32.mrf.mxu0
        %v1489 = vadd.f32 0.0, %v1488
        %1490 = vmatmul.f32.gmra.mxu0 %v1376
        %v1491 = vpop.f32.mrf.mxu0
        %v1492 = vadd.f32 0.0, %v1491
        %1493 = vmatmul.f32.gmra.mxu0 %v1379
        %v1494 = vpop.f32.mrf.mxu0
        %v1495 = vadd.f32 0.0, %v1494
        %1496 = vmatmul.f32.gmra.mxu0 %v1382
        %v1497 = vpop.f32.mrf.mxu0
        %v1498 = vadd.f32 0.0, %v1497
        %1499 = vmatmul.f32.gmra.mxu0 %v1385
        %v1500 = vpop.f32.mrf.mxu0
        %v1501 = vadd.f32 0.0, %v1500
        %1502 = vmatmul.f32.gmra.mxu0 %v1388
        %v1503 = vpop.f32.mrf.mxu0
        %v1504 = vadd.f32 0.0, %v1503
        %1505 = vmatmul.f32.gmra.mxu0 %v1391
        %v1506 = vpop.f32.mrf.mxu0
        %v1507 = vadd.f32 0.0, %v1506
        %1508 = vmatmul.f32.gmra.mxu0 %v1394
        %v1509 = vpop.f32.mrf.mxu0
        %v1510 = vadd.f32 0.0, %v1509
        %1511 = vdwg.mxu0
        %v1512 = vadd.f32 %v1234, %v1417
        %v1513 = vadd.f32 %v1235, %v1420
        %v1514 = vadd.f32 %v1236, %v1423
        %v1515 = vadd.f32 %v1237, %v1426
        %v1516 = vadd.f32 %v1238, %v1429
        %v1517 = vadd.f32 %v1239, %v1432
        %v1518 = vadd.f32 %v1240, %v1435
        %v1519 = vadd.f32 %v1241, %v1438
        %v1520 = vadd.f32 %v1242, %v1441
        %v1521 = vadd.f32 %v1243, %v1444
        %v1522 = vadd.f32 %v1244, %v1447
        %v1523 = vadd.f32 %v1245, %v1450
        %v1524 = vadd.f32 %v1246, %v1453
        %v1525 = vadd.f32 %v1247, %v1456
        %v1526 = vadd.f32 %v1248, %v1459
        %v1527 = vadd.f32 %v1249, %v1462
        %v1528 = vadd.f32 %v1250, %v1465
        %v1529 = vadd.f32 %v1251, %v1468
        %v1530 = vadd.f32 %v1252, %v1471
        %v1531 = vadd.f32 %v1253, %v1474
        %v1532 = vadd.f32 %v1254, %v1477
        %v1533 = vadd.f32 %v1255, %v1480
        %v1534 = vadd.f32 %v1256, %v1483
        %v1535 = vadd.f32 %v1257, %v1486
        %v1536 = vadd.f32 %v1258, %v1489
        %v1537 = vadd.f32 %v1259, %v1492
        %v1538 = vadd.f32 %v1260, %v1495
        %v1539 = vadd.f32 %v1261, %v1498
        %v1540 = vadd.f32 %v1262, %v1501
        %v1541 = vadd.f32 %v1263, %v1504
        %v1542 = vadd.f32 %v1264, %v1507
        %v1543 = vadd.f32 %v1265, %v1510
        %v1544 = vld [vmem:[%s987 + $0x2] sm:$0xff]
        %v1545 = vld [vmem:[%s987 + $0xa] sm:$0xff]
        %v1546 = vld [vmem:[%s987 + $0x1a] sm:$0xff]
        %v1547 = vld [vmem:[%s987 + $0x22] sm:$0xff]
        %v1548 = vld [vmem:[%s987 + $0x32] sm:$0xff]
        %v1549 = vld [vmem:[%s987 + $0x3a] sm:$0xff]
        %v1550 = vld [vmem:[%s987 + $0x4a] sm:$0xff]
        %v1551 = vld [vmem:[%s987 + $0x52] sm:$0xff]
        %v1552 = vld [vmem:[%s987 + $0x62] sm:$0xff]
        %v1553 = vld [vmem:[%s987 + $0x6a] sm:$0xff]
        %v1554 = vld [vmem:[%s987 + $0x7a] sm:$0xff]
        %v1555 = vld [vmem:[%s987 + $0x82] sm:$0xff]
        %v1556 = vld [vmem:[%s987 + $0x92] sm:$0xff]
        %v1557 = vld [vmem:[%s987 + $0x9a] sm:$0xff]
        %v1558 = vld [vmem:[%s987 + $0xaa] sm:$0xff]
        %v1559 = vld [vmem:[%s987 + $0xb2] sm:$0xff]
        %v1560 = vld [vmem:[%s987 + $0xc2] sm:$0xff]
        %v1561 = vld [vmem:[%s987 + $0xca] sm:$0xff]
        %v1562 = vld [vmem:[%s987 + $0xda] sm:$0xff]
        %v1563 = vld [vmem:[%s987 + $0xe2] sm:$0xff]
        %v1564 = vld [vmem:[%s987 + $0xf2] sm:$0xff]
        %v1565 = vld [vmem:[%s987 + $0xfa] sm:$0xff]
        %v1566 = vld [vmem:[%s987 + $0x10a] sm:$0xff]
        %v1567 = vld [vmem:[%s987 + $0x112] sm:$0xff]
        %v1568 = vld [vmem:[%s987 + $0x122] sm:$0xff]
        %v1569 = vld [vmem:[%s987 + $0x12a] sm:$0xff]
        %v1570 = vld [vmem:[%s987 + $0x13a] sm:$0xff]
        %v1571 = vld [vmem:[%s987 + $0x142] sm:$0xff]
        %v1572 = vld [vmem:[%s987 + $0x152] sm:$0xff]
        %v1573 = vld [vmem:[%s987 + $0x15a] sm:$0xff]
        %v1574 = vld [vmem:[%s987 + $0x16a] sm:$0xff]
        %v1575 = vld [vmem:[%s987 + $0x172] sm:$0xff]
        %s1576 = scalar_lea.vmem %s1, 20
        %v1577 = vld [vmem:[%s1576] sm:$0xf]
        %v1579 = vsel %vm281, %v1544, 0
        %v1582 = vsel %vm281, %v1545, 0
        %v1585 = vsel %vm281, %v1546, 0
        %v1588 = vsel %vm281, %v1547, 0
        %v1591 = vsel %vm281, %v1548, 0
        %v1594 = vsel %vm281, %v1549, 0
        %v1597 = vsel %vm281, %v1550, 0
        %v1600 = vsel %vm281, %v1551, 0
        %v1603 = vsel %vm281, %v1552, 0
        %v1606 = vsel %vm281, %v1553, 0
        %v1609 = vsel %vm281, %v1554, 0
        %v1612 = vsel %vm281, %v1555, 0
        %v1615 = vsel %vm281, %v1556, 0
        %v1618 = vsel %vm281, %v1557, 0
        %v1621 = vsel %vm281, %v1558, 0
        %v1624 = vsel %vm281, %v1559, 0
        %v1627 = vsel %vm281, %v1560, 0
        %v1630 = vsel %vm281, %v1561, 0
        %v1633 = vsel %vm281, %v1562, 0
        %v1636 = vsel %vm281, %v1563, 0
        %v1639 = vsel %vm281, %v1564, 0
        %v1642 = vsel %vm281, %v1565, 0
        %v1645 = vsel %vm281, %v1566, 0
        %v1648 = vsel %vm281, %v1567, 0
        %v1651 = vsel %vm281, %v1568, 0
        %v1654 = vsel %vm281, %v1569, 0
        %v1657 = vsel %vm281, %v1570, 0
        %v1660 = vsel %vm281, %v1571, 0
        %v1663 = vsel %vm281, %v1572, 0
        %v1666 = vsel %vm281, %v1573, 0
        %v1669 = vsel %vm281, %v1574, 0
        %v1672 = vsel %vm281, %v1575, 0
        %v1675 = vsel %vm378, %v1577, 0
        %1677 = vmatpush.msra.mxu0 0.0
        %1678 = vmatpush.msra.mxu0 0.0
        %1679 = vmatpush.msra.mxu0 0.0
        %1680 = vmatpush.msra.mxu0 0.0
        %1681 = vmatpush.msra.mxu0 0.0
        %1682 = vmatpush.msra.mxu0 0.0
        %1683 = vmatpush.msra.mxu0 0.0
        %1684 = vmatpush.msra.mxu0 0.0
        %1685 = vmatpush.msra.mxu0 0.0
        %1686 = vmatpush.msra.mxu0 0.0
        %1687 = vmatpush.msra.mxu0 0.0
        %1688 = vmatpush.msra.mxu0 0.0
        %1689 = vmatpush.msra.mxu0 0.0
        %1690 = vmatpush.msra.mxu0 0.0
        %1691 = vmatpush.msra.mxu0 0.0
        %1692 = vmatpush.msra.mxu0 %v1675
        %1693 = vmatmul.f32.gmra.mxu0 %v1579
        %v1694 = vpop.f32.mrf.mxu0
        %v1695 = vadd.f32 0.0, %v1694
        %1696 = vmatmul.f32.gmra.mxu0 %v1582
        %v1697 = vpop.f32.mrf.mxu0
        %v1698 = vadd.f32 0.0, %v1697
        %1699 = vmatmul.f32.gmra.mxu0 %v1585
        %v1700 = vpop.f32.mrf.mxu0
        %v1701 = vadd.f32 0.0, %v1700
        %1702 = vmatmul.f32.gmra.mxu0 %v1588
        %v1703 = vpop.f32.mrf.mxu0
        %v1704 = vadd.f32 0.0, %v1703
        %1705 = vmatmul.f32.gmra.mxu0 %v1591
        %v1706 = vpop.f32.mrf.mxu0
        %v1707 = vadd.f32 0.0, %v1706
        %1708 = vmatmul.f32.gmra.mxu0 %v1594
        %v1709 = vpop.f32.mrf.mxu0
        %v1710 = vadd.f32 0.0, %v1709
        %1711 = vmatmul.f32.gmra.mxu0 %v1597
        %v1712 = vpop.f32.mrf.mxu0
        %v1713 = vadd.f32 0.0, %v1712
        %1714 = vmatmul.f32.gmra.mxu0 %v1600
        %v1715 = vpop.f32.mrf.mxu0
        %v1716 = vadd.f32 0.0, %v1715
        %1717 = vmatmul.f32.gmra.mxu0 %v1603
        %v1718 = vpop.f32.mrf.mxu0
        %v1719 = vadd.f32 0.0, %v1718
        %1720 = vmatmul.f32.gmra.mxu0 %v1606
        %v1721 = vpop.f32.mrf.mxu0
        %v1722 = vadd.f32 0.0, %v1721
        %1723 = vmatmul.f32.gmra.mxu0 %v1609
        %v1724 = vpop.f32.mrf.mxu0
        %v1725 = vadd.f32 0.0, %v1724
        %1726 = vmatmul.f32.gmra.mxu0 %v1612
        %v1727 = vpop.f32.mrf.mxu0
        %v1728 = vadd.f32 0.0, %v1727
        %1729 = vmatmul.f32.gmra.mxu0 %v1615
        %v1730 = vpop.f32.mrf.mxu0
        %v1731 = vadd.f32 0.0, %v1730
        %1732 = vmatmul.f32.gmra.mxu0 %v1618
        %v1733 = vpop.f32.mrf.mxu0
        %v1734 = vadd.f32 0.0, %v1733
        %1735 = vmatmul.f32.gmra.mxu0 %v1621
        %v1736 = vpop.f32.mrf.mxu0
        %v1737 = vadd.f32 0.0, %v1736
        %1738 = vmatmul.f32.gmra.mxu0 %v1624
        %v1739 = vpop.f32.mrf.mxu0
        %v1740 = vadd.f32 0.0, %v1739
        %1741 = vmatmul.f32.gmra.mxu0 %v1627
        %v1742 = vpop.f32.mrf.mxu0
        %v1743 = vadd.f32 0.0, %v1742
        %1744 = vmatmul.f32.gmra.mxu0 %v1630
        %v1745 = vpop.f32.mrf.mxu0
        %v1746 = vadd.f32 0.0, %v1745
        %1747 = vmatmul.f32.gmra.mxu0 %v1633
        %v1748 = vpop.f32.mrf.mxu0
        %v1749 = vadd.f32 0.0, %v1748
        %1750 = vmatmul.f32.gmra.mxu0 %v1636
        %v1751 = vpop.f32.mrf.mxu0
        %v1752 = vadd.f32 0.0, %v1751
        %1753 = vmatmul.f32.gmra.mxu0 %v1639
        %v1754 = vpop.f32.mrf.mxu0
        %v1755 = vadd.f32 0.0, %v1754
        %1756 = vmatmul.f32.gmra.mxu0 %v1642
        %v1757 = vpop.f32.mrf.mxu0
        %v1758 = vadd.f32 0.0, %v1757
        %1759 = vmatmul.f32.gmra.mxu0 %v1645
        %v1760 = vpop.f32.mrf.mxu0
        %v1761 = vadd.f32 0.0, %v1760
        %1762 = vmatmul.f32.gmra.mxu0 %v1648
        %v1763 = vpop.f32.mrf.mxu0
        %v1764 = vadd.f32 0.0, %v1763
        %1765 = vmatmul.f32.gmra.mxu0 %v1651
        %v1766 = vpop.f32.mrf.mxu0
        %v1767 = vadd.f32 0.0, %v1766
        %1768 = vmatmul.f32.gmra.mxu0 %v1654
        %v1769 = vpop.f32.mrf.mxu0
        %v1770 = vadd.f32 0.0, %v1769
        %1771 = vmatmul.f32.gmra.mxu0 %v1657
        %v1772 = vpop.f32.mrf.mxu0
        %v1773 = vadd.f32 0.0, %v1772
        %1774 = vmatmul.f32.gmra.mxu0 %v1660
        %v1775 = vpop.f32.mrf.mxu0
        %v1776 = vadd.f32 0.0, %v1775
        %1777 = vmatmul.f32.gmra.mxu0 %v1663
        %v1778 = vpop.f32.mrf.mxu0
        %v1779 = vadd.f32 0.0, %v1778
        %1780 = vmatmul.f32.gmra.mxu0 %v1666
        %v1781 = vpop.f32.mrf.mxu0
        %v1782 = vadd.f32 0.0, %v1781
        %1783 = vmatmul.f32.gmra.mxu0 %v1669
        %v1784 = vpop.f32.mrf.mxu0
        %v1785 = vadd.f32 0.0, %v1784
        %1786 = vmatmul.f32.gmra.mxu0 %v1672
        %v1787 = vpop.f32.mrf.mxu0
        %v1788 = vadd.f32 0.0, %v1787
        %1789 = vdwg.mxu0
        %v1790 = vadd.f32 %v1512, %v1695
        %v1791 = vadd.f32 %v1513, %v1698
        %v1792 = vadd.f32 %v1514, %v1701
        %v1793 = vadd.f32 %v1515, %v1704
        %v1794 = vadd.f32 %v1516, %v1707
        %v1795 = vadd.f32 %v1517, %v1710
        %v1796 = vadd.f32 %v1518, %v1713
        %v1797 = vadd.f32 %v1519, %v1716
        %v1798 = vadd.f32 %v1520, %v1719
        %v1799 = vadd.f32 %v1521, %v1722
        %v1800 = vadd.f32 %v1522, %v1725
        %v1801 = vadd.f32 %v1523, %v1728
        %v1802 = vadd.f32 %v1524, %v1731
        %v1803 = vadd.f32 %v1525, %v1734
        %v1804 = vadd.f32 %v1526, %v1737
        %v1805 = vadd.f32 %v1527, %v1740
        %v1806 = vadd.f32 %v1528, %v1743
        %v1807 = vadd.f32 %v1529, %v1746
        %v1808 = vadd.f32 %v1530, %v1749
        %v1809 = vadd.f32 %v1531, %v1752
        %v1810 = vadd.f32 %v1532, %v1755
        %v1811 = vadd.f32 %v1533, %v1758
        %v1812 = vadd.f32 %v1534, %v1761
        %v1813 = vadd.f32 %v1535, %v1764
        %v1814 = vadd.f32 %v1536, %v1767
        %v1815 = vadd.f32 %v1537, %v1770
        %v1816 = vadd.f32 %v1538, %v1773
        %v1817 = vadd.f32 %v1539, %v1776
        %v1818 = vadd.f32 %v1540, %v1779
        %v1819 = vadd.f32 %v1541, %v1782
        %v1820 = vadd.f32 %v1542, %v1785
        %v1821 = vadd.f32 %v1543, %v1788
        %s1822 = sadd.s32 %s211, 2
        %s1823 = smul.u32 %s1822, 24
        %s1824 = scalar_lea.vmem %s209, %s1823
        %v1825 = vld [vmem:[%s1824] sm:$0xff]
        %v1826 = vld [vmem:[%s1824 + $0x8] sm:$0xff]
        %v1827 = vld [vmem:[%s1824 + $0x18] sm:$0xff]
        %v1828 = vld [vmem:[%s1824 + $0x20] sm:$0xff]
        %v1829 = vld [vmem:[%s1824 + $0x30] sm:$0xff]
        %v1830 = vld [vmem:[%s1824 + $0x38] sm:$0xff]
        %v1831 = vld [vmem:[%s1824 + $0x48] sm:$0xff]
        %v1832 = vld [vmem:[%s1824 + $0x50] sm:$0xff]
        %v1833 = vld [vmem:[%s1824 + $0x60] sm:$0xff]
        %v1834 = vld [vmem:[%s1824 + $0x68] sm:$0xff]
        %v1835 = vld [vmem:[%s1824 + $0x78] sm:$0xff]
        %v1836 = vld [vmem:[%s1824 + $0x80] sm:$0xff]
        %v1837 = vld [vmem:[%s1824 + $0x90] sm:$0xff]
        %v1838 = vld [vmem:[%s1824 + $0x98] sm:$0xff]
        %v1839 = vld [vmem:[%s1824 + $0xa8] sm:$0xff]
        %v1840 = vld [vmem:[%s1824 + $0xb0] sm:$0xff]
        %v1841 = vld [vmem:[%s1824 + $0xc0] sm:$0xff]
        %v1842 = vld [vmem:[%s1824 + $0xc8] sm:$0xff]
        %v1843 = vld [vmem:[%s1824 + $0xd8] sm:$0xff]
        %v1844 = vld [vmem:[%s1824 + $0xe0] sm:$0xff]
        %v1845 = vld [vmem:[%s1824 + $0xf0] sm:$0xff]
        %v1846 = vld [vmem:[%s1824 + $0xf8] sm:$0xff]
        %v1847 = vld [vmem:[%s1824 + $0x108] sm:$0xff]
        %v1848 = vld [vmem:[%s1824 + $0x110] sm:$0xff]
        %v1849 = vld [vmem:[%s1824 + $0x120] sm:$0xff]
        %v1850 = vld [vmem:[%s1824 + $0x128] sm:$0xff]
        %v1851 = vld [vmem:[%s1824 + $0x138] sm:$0xff]
        %v1852 = vld [vmem:[%s1824 + $0x140] sm:$0xff]
        %v1853 = vld [vmem:[%s1824 + $0x150] sm:$0xff]
        %v1854 = vld [vmem:[%s1824 + $0x158] sm:$0xff]
        %v1855 = vld [vmem:[%s1824 + $0x168] sm:$0xff]
        %v1856 = vld [vmem:[%s1824 + $0x170] sm:$0xff]
        %s1857 = scalar_lea.vmem %s1, 24
        %v1858 = vld [vmem:[%s1857] sm:$0xf]
        %v1860 = vsel %vm281, %v1825, 0
        %v1863 = vsel %vm281, %v1826, 0
        %v1866 = vsel %vm281, %v1827, 0
        %v1869 = vsel %vm281, %v1828, 0
        %v1872 = vsel %vm281, %v1829, 0
        %v1875 = vsel %vm281, %v1830, 0
        %v1878 = vsel %vm281, %v1831, 0
        %v1881 = vsel %vm281, %v1832, 0
        %v1884 = vsel %vm281, %v1833, 0
        %v1887 = vsel %vm281, %v1834, 0
        %v1890 = vsel %vm281, %v1835, 0
        %v1893 = vsel %vm281, %v1836, 0
        %v1896 = vsel %vm281, %v1837, 0
        %v1899 = vsel %vm281, %v1838, 0
        %v1902 = vsel %vm281, %v1839, 0
        %v1905 = vsel %vm281, %v1840, 0
        %v1908 = vsel %vm281, %v1841, 0
        %v1911 = vsel %vm281, %v1842, 0
        %v1914 = vsel %vm281, %v1843, 0
        %v1917 = vsel %vm281, %v1844, 0
        %v1920 = vsel %vm281, %v1845, 0
        %v1923 = vsel %vm281, %v1846, 0
        %v1926 = vsel %vm281, %v1847, 0
        %v1929 = vsel %vm281, %v1848, 0
        %v1932 = vsel %vm281, %v1849, 0
        %v1935 = vsel %vm281, %v1850, 0
        %v1938 = vsel %vm281, %v1851, 0
        %v1941 = vsel %vm281, %v1852, 0
        %v1944 = vsel %vm281, %v1853, 0
        %v1947 = vsel %vm281, %v1854, 0
        %v1950 = vsel %vm281, %v1855, 0
        %v1953 = vsel %vm281, %v1856, 0
        %v1956 = vsel %vm378, %v1858, 0
        %1958 = vmatpush.msra.mxu0 0.0
        %1959 = vmatpush.msra.mxu0 0.0
        %1960 = vmatpush.msra.mxu0 0.0
        %1961 = vmatpush.msra.mxu0 0.0
        %1962 = vmatpush.msra.mxu0 0.0
        %1963 = vmatpush.msra.mxu0 0.0
        %1964 = vmatpush.msra.mxu0 0.0
        %1965 = vmatpush.msra.mxu0 0.0
        %1966 = vmatpush.msra.mxu0 0.0
        %1967 = vmatpush.msra.mxu0 0.0
        %1968 = vmatpush.msra.mxu0 0.0
        %1969 = vmatpush.msra.mxu0 0.0
        %1970 = vmatpush.msra.mxu0 0.0
        %1971 = vmatpush.msra.mxu0 0.0
        %1972 = vmatpush.msra.mxu0 0.0
        %1973 = vmatpush.msra.mxu0 %v1956
        %1974 = vmatmul.f32.gmra.mxu0 %v1860
        %v1975 = vpop.f32.mrf.mxu0
        %v1976 = vadd.f32 0.0, %v1975
        %1977 = vmatmul.f32.gmra.mxu0 %v1863
        %v1978 = vpop.f32.mrf.mxu0
        %v1979 = vadd.f32 0.0, %v1978
        %1980 = vmatmul.f32.gmra.mxu0 %v1866
        %v1981 = vpop.f32.mrf.mxu0
        %v1982 = vadd.f32 0.0, %v1981
        %1983 = vmatmul.f32.gmra.mxu0 %v1869
        %v1984 = vpop.f32.mrf.mxu0
        %v1985 = vadd.f32 0.0, %v1984
        %1986 = vmatmul.f32.gmra.mxu0 %v1872
        %v1987 = vpop.f32.mrf.mxu0
        %v1988 = vadd.f32 0.0, %v1987
        %1989 = vmatmul.f32.gmra.mxu0 %v1875
        %v1990 = vpop.f32.mrf.mxu0
        %v1991 = vadd.f32 0.0, %v1990
        %1992 = vmatmul.f32.gmra.mxu0 %v1878
        %v1993 = vpop.f32.mrf.mxu0
        %v1994 = vadd.f32 0.0, %v1993
        %1995 = vmatmul.f32.gmra.mxu0 %v1881
        %v1996 = vpop.f32.mrf.mxu0
        %v1997 = vadd.f32 0.0, %v1996
        %1998 = vmatmul.f32.gmra.mxu0 %v1884
        %v1999 = vpop.f32.mrf.mxu0
        %v2000 = vadd.f32 0.0, %v1999
        %2001 = vmatmul.f32.gmra.mxu0 %v1887
        %v2002 = vpop.f32.mrf.mxu0
        %v2003 = vadd.f32 0.0, %v2002
        %2004 = vmatmul.f32.gmra.mxu0 %v1890
        %v2005 = vpop.f32.mrf.mxu0
        %v2006 = vadd.f32 0.0, %v2005
        %2007 = vmatmul.f32.gmra.mxu0 %v1893
        %v2008 = vpop.f32.mrf.mxu0
        %v2009 = vadd.f32 0.0, %v2008
        %2010 = vmatmul.f32.gmra.mxu0 %v1896
        %v2011 = vpop.f32.mrf.mxu0
        %v2012 = vadd.f32 0.0, %v2011
        %2013 = vmatmul.f32.gmra.mxu0 %v1899
        %v2014 = vpop.f32.mrf.mxu0
        %v2015 = vadd.f32 0.0, %v2014
        %2016 = vmatmul.f32.gmra.mxu0 %v1902
        %v2017 = vpop.f32.mrf.mxu0
        %v2018 = vadd.f32 0.0, %v2017
        %2019 = vmatmul.f32.gmra.mxu0 %v1905
        %v2020 = vpop.f32.mrf.mxu0
        %v2021 = vadd.f32 0.0, %v2020
        %2022 = vmatmul.f32.gmra.mxu0 %v1908
        %v2023 = vpop.f32.mrf.mxu0
        %v2024 = vadd.f32 0.0, %v2023
        %2025 = vmatmul.f32.gmra.mxu0 %v1911
        %v2026 = vpop.f32.mrf.mxu0
        %v2027 = vadd.f32 0.0, %v2026
        %2028 = vmatmul.f32.gmra.mxu0 %v1914
        %v2029 = vpop.f32.mrf.mxu0
        %v2030 = vadd.f32 0.0, %v2029
        %2031 = vmatmul.f32.gmra.mxu0 %v1917
        %v2032 = vpop.f32.mrf.mxu0
        %v2033 = vadd.f32 0.0, %v2032
        %2034 = vmatmul.f32.gmra.mxu0 %v1920
        %v2035 = vpop.f32.mrf.mxu0
        %v2036 = vadd.f32 0.0, %v2035
        %2037 = vmatmul.f32.gmra.mxu0 %v1923
        %v2038 = vpop.f32.mrf.mxu0
        %v2039 = vadd.f32 0.0, %v2038
        %2040 = vmatmul.f32.gmra.mxu0 %v1926
        %v2041 = vpop.f32.mrf.mxu0
        %v2042 = vadd.f32 0.0, %v2041
        %2043 = vmatmul.f32.gmra.mxu0 %v1929
        %v2044 = vpop.f32.mrf.mxu0
        %v2045 = vadd.f32 0.0, %v2044
        %2046 = vmatmul.f32.gmra.mxu0 %v1932
        %v2047 = vpop.f32.mrf.mxu0
        %v2048 = vadd.f32 0.0, %v2047
        %2049 = vmatmul.f32.gmra.mxu0 %v1935
        %v2050 = vpop.f32.mrf.mxu0
        %v2051 = vadd.f32 0.0, %v2050
        %2052 = vmatmul.f32.gmra.mxu0 %v1938
        %v2053 = vpop.f32.mrf.mxu0
        %v2054 = vadd.f32 0.0, %v2053
        %2055 = vmatmul.f32.gmra.mxu0 %v1941
        %v2056 = vpop.f32.mrf.mxu0
        %v2057 = vadd.f32 0.0, %v2056
        %2058 = vmatmul.f32.gmra.mxu0 %v1944
        %v2059 = vpop.f32.mrf.mxu0
        %v2060 = vadd.f32 0.0, %v2059
        %2061 = vmatmul.f32.gmra.mxu0 %v1947
        %v2062 = vpop.f32.mrf.mxu0
        %v2063 = vadd.f32 0.0, %v2062
        %2064 = vmatmul.f32.gmra.mxu0 %v1950
        %v2065 = vpop.f32.mrf.mxu0
        %v2066 = vadd.f32 0.0, %v2065
        %2067 = vmatmul.f32.gmra.mxu0 %v1953
        %v2068 = vpop.f32.mrf.mxu0
        %v2069 = vadd.f32 0.0, %v2068
        %2070 = vdwg.mxu0
        %v2071 = vadd.f32 %v1790, %v1976
        %v2072 = vadd.f32 %v1791, %v1979
        %v2073 = vadd.f32 %v1792, %v1982
        %v2074 = vadd.f32 %v1793, %v1985
        %v2075 = vadd.f32 %v1794, %v1988
        %v2076 = vadd.f32 %v1795, %v1991
        %v2077 = vadd.f32 %v1796, %v1994
        %v2078 = vadd.f32 %v1797, %v1997
        %v2079 = vadd.f32 %v1798, %v2000
        %v2080 = vadd.f32 %v1799, %v2003
        %v2081 = vadd.f32 %v1800, %v2006
        %v2082 = vadd.f32 %v1801, %v2009
        %v2083 = vadd.f32 %v1802, %v2012
        %v2084 = vadd.f32 %v1803, %v2015
        %v2085 = vadd.f32 %v1804, %v2018
        %v2086 = vadd.f32 %v1805, %v2021
        %v2087 = vadd.f32 %v1806, %v2024
        %v2088 = vadd.f32 %v1807, %v2027
        %v2089 = vadd.f32 %v1808, %v2030
        %v2090 = vadd.f32 %v1809, %v2033
        %v2091 = vadd.f32 %v1810, %v2036
        %v2092 = vadd.f32 %v1811, %v2039
        %v2093 = vadd.f32 %v1812, %v2042
        %v2094 = vadd.f32 %v1813, %v2045
        %v2095 = vadd.f32 %v1814, %v2048
        %v2096 = vadd.f32 %v1815, %v2051
        %v2097 = vadd.f32 %v1816, %v2054
        %v2098 = vadd.f32 %v1817, %v2057
        %v2099 = vadd.f32 %v1818, %v2060
        %v2100 = vadd.f32 %v1819, %v2063
        %v2101 = vadd.f32 %v1820, %v2066
        %v2102 = vadd.f32 %v1821, %v2069
        %v2103 = vld [vmem:[%s1824 + $0x1] sm:$0xff]
        %v2104 = vld [vmem:[%s1824 + $0x9] sm:$0xff]
        %v2105 = vld [vmem:[%s1824 + $0x19] sm:$0xff]
        %v2106 = vld [vmem:[%s1824 + $0x21] sm:$0xff]
        %v2107 = vld [vmem:[%s1824 + $0x31] sm:$0xff]
        %v2108 = vld [vmem:[%s1824 + $0x39] sm:$0xff]
        %v2109 = vld [vmem:[%s1824 + $0x49] sm:$0xff]
        %v2110 = vld [vmem:[%s1824 + $0x51] sm:$0xff]
        %v2111 = vld [vmem:[%s1824 + $0x61] sm:$0xff]
        %v2112 = vld [vmem:[%s1824 + $0x69] sm:$0xff]
        %v2113 = vld [vmem:[%s1824 + $0x79] sm:$0xff]
        %v2114 = vld [vmem:[%s1824 + $0x81] sm:$0xff]
        %v2115 = vld [vmem:[%s1824 + $0x91] sm:$0xff]
        %v2116 = vld [vmem:[%s1824 + $0x99] sm:$0xff]
        %v2117 = vld [vmem:[%s1824 + $0xa9] sm:$0xff]
        %v2118 = vld [vmem:[%s1824 + $0xb1] sm:$0xff]
        %v2119 = vld [vmem:[%s1824 + $0xc1] sm:$0xff]
        %v2120 = vld [vmem:[%s1824 + $0xc9] sm:$0xff]
        %v2121 = vld [vmem:[%s1824 + $0xd9] sm:$0xff]
        %v2122 = vld [vmem:[%s1824 + $0xe1] sm:$0xff]
        %v2123 = vld [vmem:[%s1824 + $0xf1] sm:$0xff]
        %v2124 = vld [vmem:[%s1824 + $0xf9] sm:$0xff]
        %v2125 = vld [vmem:[%s1824 + $0x109] sm:$0xff]
        %v2126 = vld [vmem:[%s1824 + $0x111] sm:$0xff]
        %v2127 = vld [vmem:[%s1824 + $0x121] sm:$0xff]
        %v2128 = vld [vmem:[%s1824 + $0x129] sm:$0xff]
        %v2129 = vld [vmem:[%s1824 + $0x139] sm:$0xff]
        %v2130 = vld [vmem:[%s1824 + $0x141] sm:$0xff]
        %v2131 = vld [vmem:[%s1824 + $0x151] sm:$0xff]
        %v2132 = vld [vmem:[%s1824 + $0x159] sm:$0xff]
        %v2133 = vld [vmem:[%s1824 + $0x169] sm:$0xff]
        %v2134 = vld [vmem:[%s1824 + $0x171] sm:$0xff]
        %s2135 = scalar_lea.vmem %s1, 28
        %v2136 = vld [vmem:[%s2135] sm:$0xf]
        %v2138 = vsel %vm281, %v2103, 0
        %v2141 = vsel %vm281, %v2104, 0
        %v2144 = vsel %vm281, %v2105, 0
        %v2147 = vsel %vm281, %v2106, 0
        %v2150 = vsel %vm281, %v2107, 0
        %v2153 = vsel %vm281, %v2108, 0
        %v2156 = vsel %vm281, %v2109, 0
        %v2159 = vsel %vm281, %v2110, 0
        %v2162 = vsel %vm281, %v2111, 0
        %v2165 = vsel %vm281, %v2112, 0
        %v2168 = vsel %vm281, %v2113, 0
        %v2171 = vsel %vm281, %v2114, 0
        %v2174 = vsel %vm281, %v2115, 0
        %v2177 = vsel %vm281, %v2116, 0
        %v2180 = vsel %vm281, %v2117, 0
        %v2183 = vsel %vm281, %v2118, 0
        %v2186 = vsel %vm281, %v2119, 0
        %v2189 = vsel %vm281, %v2120, 0
        %v2192 = vsel %vm281, %v2121, 0
        %v2195 = vsel %vm281, %v2122, 0
        %v2198 = vsel %vm281, %v2123, 0
        %v2201 = vsel %vm281, %v2124, 0
        %v2204 = vsel %vm281, %v2125, 0
        %v2207 = vsel %vm281, %v2126, 0
        %v2210 = vsel %vm281, %v2127, 0
        %v2213 = vsel %vm281, %v2128, 0
        %v2216 = vsel %vm281, %v2129, 0
        %v2219 = vsel %vm281, %v2130, 0
        %v2222 = vsel %vm281, %v2131, 0
        %v2225 = vsel %vm281, %v2132, 0
        %v2228 = vsel %vm281, %v2133, 0
        %v2231 = vsel %vm281, %v2134, 0
        %v2234 = vsel %vm378, %v2136, 0
        %2236 = vmatpush.msra.mxu0 0.0
        %2237 = vmatpush.msra.mxu0 0.0
        %2238 = vmatpush.msra.mxu0 0.0
        %2239 = vmatpush.msra.mxu0 0.0
        %2240 = vmatpush.msra.mxu0 0.0
        %2241 = vmatpush.msra.mxu0 0.0
        %2242 = vmatpush.msra.mxu0 0.0
        %2243 = vmatpush.msra.mxu0 0.0
        %2244 = vmatpush.msra.mxu0 0.0
        %2245 = vmatpush.msra.mxu0 0.0
        %2246 = vmatpush.msra.mxu0 0.0
        %2247 = vmatpush.msra.mxu0 0.0
        %2248 = vmatpush.msra.mxu0 0.0
        %2249 = vmatpush.msra.mxu0 0.0
        %2250 = vmatpush.msra.mxu0 0.0
        %2251 = vmatpush.msra.mxu0 %v2234
        %2252 = vmatmul.f32.gmra.mxu0 %v2138
        %v2253 = vpop.f32.mrf.mxu0
        %v2254 = vadd.f32 0.0, %v2253
        %2255 = vmatmul.f32.gmra.mxu0 %v2141
        %v2256 = vpop.f32.mrf.mxu0
        %v2257 = vadd.f32 0.0, %v2256
        %2258 = vmatmul.f32.gmra.mxu0 %v2144
        %v2259 = vpop.f32.mrf.mxu0
        %v2260 = vadd.f32 0.0, %v2259
        %2261 = vmatmul.f32.gmra.mxu0 %v2147
        %v2262 = vpop.f32.mrf.mxu0
        %v2263 = vadd.f32 0.0, %v2262
        %2264 = vmatmul.f32.gmra.mxu0 %v2150
        %v2265 = vpop.f32.mrf.mxu0
        %v2266 = vadd.f32 0.0, %v2265
        %2267 = vmatmul.f32.gmra.mxu0 %v2153
        %v2268 = vpop.f32.mrf.mxu0
        %v2269 = vadd.f32 0.0, %v2268
        %2270 = vmatmul.f32.gmra.mxu0 %v2156
        %v2271 = vpop.f32.mrf.mxu0
        %v2272 = vadd.f32 0.0, %v2271
        %2273 = vmatmul.f32.gmra.mxu0 %v2159
        %v2274 = vpop.f32.mrf.mxu0
        %v2275 = vadd.f32 0.0, %v2274
        %2276 = vmatmul.f32.gmra.mxu0 %v2162
        %v2277 = vpop.f32.mrf.mxu0
        %v2278 = vadd.f32 0.0, %v2277
        %2279 = vmatmul.f32.gmra.mxu0 %v2165
        %v2280 = vpop.f32.mrf.mxu0
        %v2281 = vadd.f32 0.0, %v2280
        %2282 = vmatmul.f32.gmra.mxu0 %v2168
        %v2283 = vpop.f32.mrf.mxu0
        %v2284 = vadd.f32 0.0, %v2283
        %2285 = vmatmul.f32.gmra.mxu0 %v2171
        %v2286 = vpop.f32.mrf.mxu0
        %v2287 = vadd.f32 0.0, %v2286
        %2288 = vmatmul.f32.gmra.mxu0 %v2174
        %v2289 = vpop.f32.mrf.mxu0
        %v2290 = vadd.f32 0.0, %v2289
        %2291 = vmatmul.f32.gmra.mxu0 %v2177
        %v2292 = vpop.f32.mrf.mxu0
        %v2293 = vadd.f32 0.0, %v2292
        %2294 = vmatmul.f32.gmra.mxu0 %v2180
        %v2295 = vpop.f32.mrf.mxu0
        %v2296 = vadd.f32 0.0, %v2295
        %2297 = vmatmul.f32.gmra.mxu0 %v2183
        %v2298 = vpop.f32.mrf.mxu0
        %v2299 = vadd.f32 0.0, %v2298
        %2300 = vmatmul.f32.gmra.mxu0 %v2186
        %v2301 = vpop.f32.mrf.mxu0
        %v2302 = vadd.f32 0.0, %v2301
        %2303 = vmatmul.f32.gmra.mxu0 %v2189
        %v2304 = vpop.f32.mrf.mxu0
        %v2305 = vadd.f32 0.0, %v2304
        %2306 = vmatmul.f32.gmra.mxu0 %v2192
        %v2307 = vpop.f32.mrf.mxu0
        %v2308 = vadd.f32 0.0, %v2307
        %2309 = vmatmul.f32.gmra.mxu0 %v2195
        %v2310 = vpop.f32.mrf.mxu0
        %v2311 = vadd.f32 0.0, %v2310
        %2312 = vmatmul.f32.gmra.mxu0 %v2198
        %v2313 = vpop.f32.mrf.mxu0
        %v2314 = vadd.f32 0.0, %v2313
        %2315 = vmatmul.f32.gmra.mxu0 %v2201
        %v2316 = vpop.f32.mrf.mxu0
        %v2317 = vadd.f32 0.0, %v2316
        %2318 = vmatmul.f32.gmra.mxu0 %v2204
        %v2319 = vpop.f32.mrf.mxu0
        %v2320 = vadd.f32 0.0, %v2319
        %2321 = vmatmul.f32.gmra.mxu0 %v2207
        %v2322 = vpop.f32.mrf.mxu0
        %v2323 = vadd.f32 0.0, %v2322
        %2324 = vmatmul.f32.gmra.mxu0 %v2210
        %v2325 = vpop.f32.mrf.mxu0
        %v2326 = vadd.f32 0.0, %v2325
        %2327 = vmatmul.f32.gmra.mxu0 %v2213
        %v2328 = vpop.f32.mrf.mxu0
        %v2329 = vadd.f32 0.0, %v2328
        %2330 = vmatmul.f32.gmra.mxu0 %v2216
        %v2331 = vpop.f32.mrf.mxu0
        %v2332 = vadd.f32 0.0, %v2331
        %2333 = vmatmul.f32.gmra.mxu0 %v2219
        %v2334 = vpop.f32.mrf.mxu0
        %v2335 = vadd.f32 0.0, %v2334
        %2336 = vmatmul.f32.gmra.mxu0 %v2222
        %v2337 = vpop.f32.mrf.mxu0
        %v2338 = vadd.f32 0.0, %v2337
        %2339 = vmatmul.f32.gmra.mxu0 %v2225
        %v2340 = vpop.f32.mrf.mxu0
        %v2341 = vadd.f32 0.0, %v2340
        %2342 = vmatmul.f32.gmra.mxu0 %v2228
        %v2343 = vpop.f32.mrf.mxu0
        %v2344 = vadd.f32 0.0, %v2343
        %2345 = vmatmul.f32.gmra.mxu0 %v2231
        %v2346 = vpop.f32.mrf.mxu0
        %v2347 = vadd.f32 0.0, %v2346
        %2348 = vdwg.mxu0
        %v2349 = vadd.f32 %v2071, %v2254
        %v2350 = vadd.f32 %v2072, %v2257
        %v2351 = vadd.f32 %v2073, %v2260
        %v2352 = vadd.f32 %v2074, %v2263
        %v2353 = vadd.f32 %v2075, %v2266
        %v2354 = vadd.f32 %v2076, %v2269
        %v2355 = vadd.f32 %v2077, %v2272
        %v2356 = vadd.f32 %v2078, %v2275
        %v2357 = vadd.f32 %v2079, %v2278
        %v2358 = vadd.f32 %v2080, %v2281
        %v2359 = vadd.f32 %v2081, %v2284
        %v2360 = vadd.f32 %v2082, %v2287
        %v2361 = vadd.f32 %v2083, %v2290
        %v2362 = vadd.f32 %v2084, %v2293
        %v2363 = vadd.f32 %v2085, %v2296
        %v2364 = vadd.f32 %v2086, %v2299
        %v2365 = vadd.f32 %v2087, %v2302
        %v2366 = vadd.f32 %v2088, %v2305
        %v2367 = vadd.f32 %v2089, %v2308
        %v2368 = vadd.f32 %v2090, %v2311
        %v2369 = vadd.f32 %v2091, %v2314
        %v2370 = vadd.f32 %v2092, %v2317
        %v2371 = vadd.f32 %v2093, %v2320
        %v2372 = vadd.f32 %v2094, %v2323
        %v2373 = vadd.f32 %v2095, %v2326
        %v2374 = vadd.f32 %v2096, %v2329
        %v2375 = vadd.f32 %v2097, %v2332
        %v2376 = vadd.f32 %v2098, %v2335
        %v2377 = vadd.f32 %v2099, %v2338
        %v2378 = vadd.f32 %v2100, %v2341
        %v2379 = vadd.f32 %v2101, %v2344
        %v2380 = vadd.f32 %v2102, %v2347
        %v2381 = vld [vmem:[%s1824 + $0x2] sm:$0xff]
        %v2382 = vld [vmem:[%s1824 + $0xa] sm:$0xff]
        %v2383 = vld [vmem:[%s1824 + $0x1a] sm:$0xff]
        %v2384 = vld [vmem:[%s1824 + $0x22] sm:$0xff]
        %v2385 = vld [vmem:[%s1824 + $0x32] sm:$0xff]
        %v2386 = vld [vmem:[%s1824 + $0x3a] sm:$0xff]
        %v2387 = vld [vmem:[%s1824 + $0x4a] sm:$0xff]
        %v2388 = vld [vmem:[%s1824 + $0x52] sm:$0xff]
        %v2389 = vld [vmem:[%s1824 + $0x62] sm:$0xff]
        %v2390 = vld [vmem:[%s1824 + $0x6a] sm:$0xff]
        %v2391 = vld [vmem:[%s1824 + $0x7a] sm:$0xff]
        %v2392 = vld [vmem:[%s1824 + $0x82] sm:$0xff]
        %v2393 = vld [vmem:[%s1824 + $0x92] sm:$0xff]
        %v2394 = vld [vmem:[%s1824 + $0x9a] sm:$0xff]
        %v2395 = vld [vmem:[%s1824 + $0xaa] sm:$0xff]
        %v2396 = vld [vmem:[%s1824 + $0xb2] sm:$0xff]
        %v2397 = vld [vmem:[%s1824 + $0xc2] sm:$0xff]
        %v2398 = vld [vmem:[%s1824 + $0xca] sm:$0xff]
        %v2399 = vld [vmem:[%s1824 + $0xda] sm:$0xff]
        %v2400 = vld [vmem:[%s1824 + $0xe2] sm:$0xff]
        %v2401 = vld [vmem:[%s1824 + $0xf2] sm:$0xff]
        %v2402 = vld [vmem:[%s1824 + $0xfa] sm:$0xff]
        %v2403 = vld [vmem:[%s1824 + $0x10a] sm:$0xff]
        %v2404 = vld [vmem:[%s1824 + $0x112] sm:$0xff]
        %v2405 = vld [vmem:[%s1824 + $0x122] sm:$0xff]
        %v2406 = vld [vmem:[%s1824 + $0x12a] sm:$0xff]
        %v2407 = vld [vmem:[%s1824 + $0x13a] sm:$0xff]
        %v2408 = vld [vmem:[%s1824 + $0x142] sm:$0xff]
        %v2409 = vld [vmem:[%s1824 + $0x152] sm:$0xff]
        %v2410 = vld [vmem:[%s1824 + $0x15a] sm:$0xff]
        %v2411 = vld [vmem:[%s1824 + $0x16a] sm:$0xff]
        %v2412 = vld [vmem:[%s1824 + $0x172] sm:$0xff]
        %s2413 = scalar_lea.vmem %s1, 32
        %v2414 = vld [vmem:[%s2413] sm:$0xf]
        %v2416 = vsel %vm281, %v2381, 0
        %v2419 = vsel %vm281, %v2382, 0
        %v2422 = vsel %vm281, %v2383, 0
        %v2425 = vsel %vm281, %v2384, 0
        %v2428 = vsel %vm281, %v2385, 0
        %v2431 = vsel %vm281, %v2386, 0
        %v2434 = vsel %vm281, %v2387, 0
        %v2437 = vsel %vm281, %v2388, 0
        %v2440 = vsel %vm281, %v2389, 0
        %v2443 = vsel %vm281, %v2390, 0
        %v2446 = vsel %vm281, %v2391, 0
        %v2449 = vsel %vm281, %v2392, 0
        %v2452 = vsel %vm281, %v2393, 0
        %v2455 = vsel %vm281, %v2394, 0
        %v2458 = vsel %vm281, %v2395, 0
        %v2461 = vsel %vm281, %v2396, 0
        %v2464 = vsel %vm281, %v2397, 0
        %v2467 = vsel %vm281, %v2398, 0
        %v2470 = vsel %vm281, %v2399, 0
        %v2473 = vsel %vm281, %v2400, 0
        %v2476 = vsel %vm281, %v2401, 0
        %v2479 = vsel %vm281, %v2402, 0
        %v2482 = vsel %vm281, %v2403, 0
        %v2485 = vsel %vm281, %v2404, 0
        %v2488 = vsel %vm281, %v2405, 0
        %v2491 = vsel %vm281, %v2406, 0
        %v2494 = vsel %vm281, %v2407, 0
        %v2497 = vsel %vm281, %v2408, 0
        %v2500 = vsel %vm281, %v2409, 0
        %v2503 = vsel %vm281, %v2410, 0
        %v2506 = vsel %vm281, %v2411, 0
        %v2509 = vsel %vm281, %v2412, 0
        %v2512 = vsel %vm378, %v2414, 0
        %2514 = vmatpush.msra.mxu0 0.0
        %2515 = vmatpush.msra.mxu0 0.0
        %2516 = vmatpush.msra.mxu0 0.0
        %2517 = vmatpush.msra.mxu0 0.0
        %2518 = vmatpush.msra.mxu0 0.0
        %2519 = vmatpush.msra.mxu0 0.0
        %2520 = vmatpush.msra.mxu0 0.0
        %2521 = vmatpush.msra.mxu0 0.0
        %2522 = vmatpush.msra.mxu0 0.0
        %2523 = vmatpush.msra.mxu0 0.0
        %2524 = vmatpush.msra.mxu0 0.0
        %2525 = vmatpush.msra.mxu0 0.0
        %2526 = vmatpush.msra.mxu0 0.0
        %2527 = vmatpush.msra.mxu0 0.0
        %2528 = vmatpush.msra.mxu0 0.0
        %2529 = vmatpush.msra.mxu0 %v2512
        %2530 = vmatmul.f32.gmra.mxu0 %v2416
        %v2531 = vpop.f32.mrf.mxu0
        %v2532 = vadd.f32 0.0, %v2531
        %2533 = vmatmul.f32.gmra.mxu0 %v2419
        %v2534 = vpop.f32.mrf.mxu0
        %v2535 = vadd.f32 0.0, %v2534
        %2536 = vmatmul.f32.gmra.mxu0 %v2422
        %v2537 = vpop.f32.mrf.mxu0
        %v2538 = vadd.f32 0.0, %v2537
        %2539 = vmatmul.f32.gmra.mxu0 %v2425
        %v2540 = vpop.f32.mrf.mxu0
        %v2541 = vadd.f32 0.0, %v2540
        %2542 = vmatmul.f32.gmra.mxu0 %v2428
        %v2543 = vpop.f32.mrf.mxu0
        %v2544 = vadd.f32 0.0, %v2543
        %2545 = vmatmul.f32.gmra.mxu0 %v2431
        %v2546 = vpop.f32.mrf.mxu0
        %v2547 = vadd.f32 0.0, %v2546
        %2548 = vmatmul.f32.gmra.mxu0 %v2434
        %v2549 = vpop.f32.mrf.mxu0
        %v2550 = vadd.f32 0.0, %v2549
        %2551 = vmatmul.f32.gmra.mxu0 %v2437
        %v2552 = vpop.f32.mrf.mxu0
        %v2553 = vadd.f32 0.0, %v2552
        %2554 = vmatmul.f32.gmra.mxu0 %v2440
        %v2555 = vpop.f32.mrf.mxu0
        %v2556 = vadd.f32 0.0, %v2555
        %2557 = vmatmul.f32.gmra.mxu0 %v2443
        %v2558 = vpop.f32.mrf.mxu0
        %v2559 = vadd.f32 0.0, %v2558
        %2560 = vmatmul.f32.gmra.mxu0 %v2446
        %v2561 = vpop.f32.mrf.mxu0
        %v2562 = vadd.f32 0.0, %v2561
        %2563 = vmatmul.f32.gmra.mxu0 %v2449
        %v2564 = vpop.f32.mrf.mxu0
        %v2565 = vadd.f32 0.0, %v2564
        %2566 = vmatmul.f32.gmra.mxu0 %v2452
        %v2567 = vpop.f32.mrf.mxu0
        %v2568 = vadd.f32 0.0, %v2567
        %2569 = vmatmul.f32.gmra.mxu0 %v2455
        %v2570 = vpop.f32.mrf.mxu0
        %v2571 = vadd.f32 0.0, %v2570
        %2572 = vmatmul.f32.gmra.mxu0 %v2458
        %v2573 = vpop.f32.mrf.mxu0
        %v2574 = vadd.f32 0.0, %v2573
        %2575 = vmatmul.f32.gmra.mxu0 %v2461
        %v2576 = vpop.f32.mrf.mxu0
        %v2577 = vadd.f32 0.0, %v2576
        %2578 = vmatmul.f32.gmra.mxu0 %v2464
        %v2579 = vpop.f32.mrf.mxu0
        %v2580 = vadd.f32 0.0, %v2579
        %2581 = vmatmul.f32.gmra.mxu0 %v2467
        %v2582 = vpop.f32.mrf.mxu0
        %v2583 = vadd.f32 0.0, %v2582
        %2584 = vmatmul.f32.gmra.mxu0 %v2470
        %v2585 = vpop.f32.mrf.mxu0
        %v2586 = vadd.f32 0.0, %v2585
        %2587 = vmatmul.f32.gmra.mxu0 %v2473
        %v2588 = vpop.f32.mrf.mxu0
        %v2589 = vadd.f32 0.0, %v2588
        %2590 = vmatmul.f32.gmra.mxu0 %v2476
        %v2591 = vpop.f32.mrf.mxu0
        %v2592 = vadd.f32 0.0, %v2591
        %2593 = vmatmul.f32.gmra.mxu0 %v2479
        %v2594 = vpop.f32.mrf.mxu0
        %v2595 = vadd.f32 0.0, %v2594
        %2596 = vmatmul.f32.gmra.mxu0 %v2482
        %v2597 = vpop.f32.mrf.mxu0
        %v2598 = vadd.f32 0.0, %v2597
        %2599 = vmatmul.f32.gmra.mxu0 %v2485
        %v2600 = vpop.f32.mrf.mxu0
        %v2601 = vadd.f32 0.0, %v2600
        %2602 = vmatmul.f32.gmra.mxu0 %v2488
        %v2603 = vpop.f32.mrf.mxu0
        %v2604 = vadd.f32 0.0, %v2603
        %2605 = vmatmul.f32.gmra.mxu0 %v2491
        %v2606 = vpop.f32.mrf.mxu0
        %v2607 = vadd.f32 0.0, %v2606
        %2608 = vmatmul.f32.gmra.mxu0 %v2494
        %v2609 = vpop.f32.mrf.mxu0
        %v2610 = vadd.f32 0.0, %v2609
        %2611 = vmatmul.f32.gmra.mxu0 %v2497
        %v2612 = vpop.f32.mrf.mxu0
        %v2613 = vadd.f32 0.0, %v2612
        %2614 = vmatmul.f32.gmra.mxu0 %v2500
        %v2615 = vpop.f32.mrf.mxu0
        %v2616 = vadd.f32 0.0, %v2615
        %2617 = vmatmul.f32.gmra.mxu0 %v2503
        %v2618 = vpop.f32.mrf.mxu0
        %v2619 = vadd.f32 0.0, %v2618
        %2620 = vmatmul.f32.gmra.mxu0 %v2506
        %v2621 = vpop.f32.mrf.mxu0
        %v2622 = vadd.f32 0.0, %v2621
        %2623 = vmatmul.f32.gmra.mxu0 %v2509
        %v2624 = vpop.f32.mrf.mxu0
        %v2625 = vadd.f32 0.0, %v2624
        %2626 = vdwg.mxu0
        %v2627 = vadd.f32 %v2349, %v2532
        %v2628 = vadd.f32 %v2350, %v2535
        %v2629 = vadd.f32 %v2351, %v2538
        %v2630 = vadd.f32 %v2352, %v2541
        %v2631 = vadd.f32 %v2353, %v2544
        %v2632 = vadd.f32 %v2354, %v2547
        %v2633 = vadd.f32 %v2355, %v2550
        %v2634 = vadd.f32 %v2356, %v2553
        %v2635 = vadd.f32 %v2357, %v2556
        %v2636 = vadd.f32 %v2358, %v2559
        %v2637 = vadd.f32 %v2359, %v2562
        %v2638 = vadd.f32 %v2360, %v2565
        %v2639 = vadd.f32 %v2361, %v2568
        %v2640 = vadd.f32 %v2362, %v2571
        %v2641 = vadd.f32 %v2363, %v2574
        %v2642 = vadd.f32 %v2364, %v2577
        %v2643 = vadd.f32 %v2365, %v2580
        %v2644 = vadd.f32 %v2366, %v2583
        %v2645 = vadd.f32 %v2367, %v2586
        %v2646 = vadd.f32 %v2368, %v2589
        %v2647 = vadd.f32 %v2369, %v2592
        %v2648 = vadd.f32 %v2370, %v2595
        %v2649 = vadd.f32 %v2371, %v2598
        %v2650 = vadd.f32 %v2372, %v2601
        %v2651 = vadd.f32 %v2373, %v2604
        %v2652 = vadd.f32 %v2374, %v2607
        %v2653 = vadd.f32 %v2375, %v2610
        %v2654 = vadd.f32 %v2376, %v2613
        %v2655 = vadd.f32 %v2377, %v2616
        %v2656 = vadd.f32 %v2378, %v2619
        %v2657 = vadd.f32 %v2379, %v2622
        %v2658 = vadd.f32 %v2380, %v2625
        %v2659 = vld [vmem:[%s2] sm:$0x1]
        %v2661 = vperm.slane %v2659, 0
        %v2663 = vadd.f32 %v2627, %v2661
        %v2664 = vadd.f32 %v2628, %v2661
        %v2665 = vadd.f32 %v2629, %v2661
        %v2666 = vadd.f32 %v2630, %v2661
        %v2667 = vadd.f32 %v2631, %v2661
        %v2668 = vadd.f32 %v2632, %v2661
        %v2669 = vadd.f32 %v2633, %v2661
        %v2670 = vadd.f32 %v2634, %v2661
        %v2671 = vadd.f32 %v2635, %v2661
        %v2672 = vadd.f32 %v2636, %v2661
        %v2673 = vadd.f32 %v2637, %v2661
        %v2674 = vadd.f32 %v2638, %v2661
        %v2675 = vadd.f32 %v2639, %v2661
        %v2676 = vadd.f32 %v2640, %v2661
        %v2677 = vadd.f32 %v2641, %v2661
        %v2678 = vadd.f32 %v2642, %v2661
        %v2679 = vadd.f32 %v2643, %v2661
        %v2680 = vadd.f32 %v2644, %v2661
        %v2681 = vadd.f32 %v2645, %v2661
        %v2682 = vadd.f32 %v2646, %v2661
        %v2683 = vadd.f32 %v2647, %v2661
        %v2684 = vadd.f32 %v2648, %v2661
        %v2685 = vadd.f32 %v2649, %v2661
        %v2686 = vadd.f32 %v2650, %v2661
        %v2687 = vadd.f32 %v2651, %v2661
        %v2688 = vadd.f32 %v2652, %v2661
        %v2689 = vadd.f32 %v2653, %v2661
        %v2690 = vadd.f32 %v2654, %v2661
        %v2691 = vadd.f32 %v2655, %v2661
        %v2692 = vadd.f32 %v2656, %v2661
        %v2693 = vadd.f32 %v2657, %v2661
        %v2694 = vadd.f32 %v2658, %v2661
        %vm2695 = vcmp.gt.f32.partialorder %v2663, 0.0
        %vm2696 = vcmp.gt.f32.partialorder %v2664, 0.0
        %vm2697 = vcmp.gt.f32.partialorder %v2665, 0.0
        %vm2698 = vcmp.gt.f32.partialorder %v2666, 0.0
        %vm2699 = vcmp.gt.f32.partialorder %v2667, 0.0
        %vm2700 = vcmp.gt.f32.partialorder %v2668, 0.0
        %vm2701 = vcmp.gt.f32.partialorder %v2669, 0.0
        %vm2702 = vcmp.gt.f32.partialorder %v2670, 0.0
        %vm2703 = vcmp.gt.f32.partialorder %v2671, 0.0
        %vm2704 = vcmp.gt.f32.partialorder %v2672, 0.0
        %vm2705 = vcmp.gt.f32.partialorder %v2673, 0.0
        %vm2706 = vcmp.gt.f32.partialorder %v2674, 0.0
        %vm2707 = vcmp.gt.f32.partialorder %v2675, 0.0
        %vm2708 = vcmp.gt.f32.partialorder %v2676, 0.0
        %vm2709 = vcmp.gt.f32.partialorder %v2677, 0.0
        %vm2710 = vcmp.gt.f32.partialorder %v2678, 0.0
        %vm2711 = vcmp.gt.f32.partialorder %v2679, 0.0
        %vm2712 = vcmp.gt.f32.partialorder %v2680, 0.0
        %vm2713 = vcmp.gt.f32.partialorder %v2681, 0.0
        %vm2714 = vcmp.gt.f32.partialorder %v2682, 0.0
        %vm2715 = vcmp.gt.f32.partialorder %v2683, 0.0
        %vm2716 = vcmp.gt.f32.partialorder %v2684, 0.0
        %vm2717 = vcmp.gt.f32.partialorder %v2685, 0.0
        %vm2718 = vcmp.gt.f32.partialorder %v2686, 0.0
        %vm2719 = vcmp.gt.f32.partialorder %v2687, 0.0
        %vm2720 = vcmp.gt.f32.partialorder %v2688, 0.0
        %vm2721 = vcmp.gt.f32.partialorder %v2689, 0.0
        %vm2722 = vcmp.gt.f32.partialorder %v2690, 0.0
        %vm2723 = vcmp.gt.f32.partialorder %v2691, 0.0
        %vm2724 = vcmp.gt.f32.partialorder %v2692, 0.0
        %vm2725 = vcmp.gt.f32.partialorder %v2693, 0.0
        %vm2726 = vcmp.gt.f32.partialorder %v2694, 0.0
        %v2727 = vld [vmem:[%s3] sm:$0x1]
        %v2729 = vperm.slane %v2727, 0
        %v2731 = vmul.f32 %v2729, %v2663
        %v2732 = vmul.f32 %v2729, %v2664
        %v2733 = vmul.f32 %v2729, %v2665
        %v2734 = vmul.f32 %v2729, %v2666
        %v2735 = vmul.f32 %v2729, %v2667
        %v2736 = vmul.f32 %v2729, %v2668
        %v2737 = vmul.f32 %v2729, %v2669
        %v2738 = vmul.f32 %v2729, %v2670
        %v2739 = vmul.f32 %v2729, %v2671
        %v2740 = vmul.f32 %v2729, %v2672
        %v2741 = vmul.f32 %v2729, %v2673
        %v2742 = vmul.f32 %v2729, %v2674
        %v2743 = vmul.f32 %v2729, %v2675
        %v2744 = vmul.f32 %v2729, %v2676
        %v2745 = vmul.f32 %v2729, %v2677
        %v2746 = vmul.f32 %v2729, %v2678
        %v2747 = vmul.f32 %v2729, %v2679
        %v2748 = vmul.f32 %v2729, %v2680
        %v2749 = vmul.f32 %v2729, %v2681
        %v2750 = vmul.f32 %v2729, %v2682
        %v2751 = vmul.f32 %v2729, %v2683
        %v2752 = vmul.f32 %v2729, %v2684
        %v2753 = vmul.f32 %v2729, %v2685
        %v2754 = vmul.f32 %v2729, %v2686
        %v2755 = vmul.f32 %v2729, %v2687
        %v2756 = vmul.f32 %v2729, %v2688
        %v2757 = vmul.f32 %v2729, %v2689
        %v2758 = vmul.f32 %v2729, %v2690
        %v2759 = vmul.f32 %v2729, %v2691
        %v2760 = vmul.f32 %v2729, %v2692
        %v2761 = vmul.f32 %v2729, %v2693
        %v2762 = vmul.f32 %v2729, %v2694
        %v2763 = vsel %vm2695, %v2663, %v2731
        %v2764 = vsel %vm2696, %v2664, %v2732
        %v2765 = vsel %vm2697, %v2665, %v2733
        %v2766 = vsel %vm2698, %v2666, %v2734
        %v2767 = vsel %vm2699, %v2667, %v2735
        %v2768 = vsel %vm2700, %v2668, %v2736
        %v2769 = vsel %vm2701, %v2669, %v2737
        %v2770 = vsel %vm2702, %v2670, %v2738
        %v2771 = vsel %vm2703, %v2671, %v2739
        %v2772 = vsel %vm2704, %v2672, %v2740
        %v2773 = vsel %vm2705, %v2673, %v2741
        %v2774 = vsel %vm2706, %v2674, %v2742
        %v2775 = vsel %vm2707, %v2675, %v2743
        %v2776 = vsel %vm2708, %v2676, %v2744
        %v2777 = vsel %vm2709, %v2677, %v2745
        %v2778 = vsel %vm2710, %v2678, %v2746
        %v2779 = vsel %vm2711, %v2679, %v2747
        %v2780 = vsel %vm2712, %v2680, %v2748
        %v2781 = vsel %vm2713, %v2681, %v2749
        %v2782 = vsel %vm2714, %v2682, %v2750
        %v2783 = vsel %vm2715, %v2683, %v2751
        %v2784 = vsel %vm2716, %v2684, %v2752
        %v2785 = vsel %vm2717, %v2685, %v2753
        %v2786 = vsel %vm2718, %v2686, %v2754
        %v2787 = vsel %vm2719, %v2687, %v2755
        %v2788 = vsel %vm2720, %v2688, %v2756
        %v2789 = vsel %vm2721, %v2689, %v2757
        %v2790 = vsel %vm2722, %v2690, %v2758
        %v2791 = vsel %vm2723, %v2691, %v2759
        %v2792 = vsel %vm2724, %v2692, %v2760
        %v2793 = vsel %vm2725, %v2693, %v2761
        %v2794 = vsel %vm2726, %v2694, %v2762
        %2795 = vst [vmem:[%s204] sm:$0xff] %v2763
        %2796 = vst [vmem:[%s204 + $0x8] sm:$0xff] %v2764
        %2797 = vst [vmem:[%s204 + $0x10] sm:$0xff] %v2765
        %2798 = vst [vmem:[%s204 + $0x18] sm:$0xff] %v2766
        %2799 = vst [vmem:[%s204 + $0x20] sm:$0xff] %v2767
        %2800 = vst [vmem:[%s204 + $0x28] sm:$0xff] %v2768
        %2801 = vst [vmem:[%s204 + $0x30] sm:$0xff] %v2769
        %2802 = vst [vmem:[%s204 + $0x38] sm:$0xff] %v2770
        %2803 = vst [vmem:[%s204 + $0x40] sm:$0xff] %v2771
        %2804 = vst [vmem:[%s204 + $0x48] sm:$0xff] %v2772
        %2805 = vst [vmem:[%s204 + $0x50] sm:$0xff] %v2773
        %2806 = vst [vmem:[%s204 + $0x58] sm:$0xff] %v2774
        %2807 = vst [vmem:[%s204 + $0x60] sm:$0xff] %v2775
        %2808 = vst [vmem:[%s204 + $0x68] sm:$0xff] %v2776
        %2809 = vst [vmem:[%s204 + $0x70] sm:$0xff] %v2777
        %2810 = vst [vmem:[%s204 + $0x78] sm:$0xff] %v2778
        %2811 = vst [vmem:[%s204 + $0x80] sm:$0xff] %v2779
        %2812 = vst [vmem:[%s204 + $0x88] sm:$0xff] %v2780
        %2813 = vst [vmem:[%s204 + $0x90] sm:$0xff] %v2781
        %2814 = vst [vmem:[%s204 + $0x98] sm:$0xff] %v2782
        %2815 = vst [vmem:[%s204 + $0xa0] sm:$0xff] %v2783
        %2816 = vst [vmem:[%s204 + $0xa8] sm:$0xff] %v2784
        %2817 = vst [vmem:[%s204 + $0xb0] sm:$0xff] %v2785
        %2818 = vst [vmem:[%s204 + $0xb8] sm:$0xff] %v2786
        %2819 = vst [vmem:[%s204 + $0xc0] sm:$0xff] %v2787
        %2820 = vst [vmem:[%s204 + $0xc8] sm:$0xff] %v2788
        %2821 = vst [vmem:[%s204 + $0xd0] sm:$0xff] %v2789
        %2822 = vst [vmem:[%s204 + $0xd8] sm:$0xff] %v2790
        %2823 = vst [vmem:[%s204 + $0xe0] sm:$0xff] %v2791
        %2824 = vst [vmem:[%s204 + $0xe8] sm:$0xff] %v2792
        %2825 = vst [vmem:[%s204 + $0xf0] sm:$0xff] %v2793
        %2826 = vst [vmem:[%s204 + $0xf8] sm:$0xff] %v2794
        %s2827 = sand.u32 %s129, 1
        %s2828 = scalar_lea.sflag [#allocation3], %s2827
        %s2829 = sand.u32 %s129, 1
        %s2830 = smul.addr %s2829, 256
        %s2831 = scalar_lea.vmem [#allocation2], %s2830
        // Predicated region
        $region37: #{tpu_custom_call.1} parent=35 // pred_check
          %p2832 = pneg %p139
        $region38: #{tpu_custom_call.1} parent=35 // pred_check_branch
          %2834 = sbr.rel (%p2832) target = $region40
        $region39: #{tpu_custom_call.1} parent=35 // pred_region
          %s2835 = smul.u32 16, %s23
          %2837 = vsyncadd %s2828, 0
          %s2838 = smul.addr %s2835, 2
          %s2839 = smul.addr %s22, 32
          %s2840 = sadd.s32 %s2838, %s2839
          %s2841 = smul.addr %s2840, 8
          %s2842 = scalar_lea.hbm %s4, %s2841
          %s2843 = sshll.u32 %s2831, 4
          %s2844 = int_to_ptr.vmem [resolvable:$true] %s2843
          %s2845 = sshll.u32 %s2842, 4
          %s2846 = int_to_ptr.hbm [resolvable:$true] %s2845
          %2851 = dma.vmem_to_hbm [thread:$0]  %s2844, 4096, %s2846, %s2828, 128, 128, 8
        $region40: #{tpu_custom_call.1} parent=35 // pred_fallthru
          _
      $region36: #{tpu_custom_call.1} parent=5 // pred_fallthru
        _
      %p2852 = scmp.le.s32.totalorder 2, %s13
      // Predicated region
      $region41: #{tpu_custom_call.1} parent=5 // pred_check
        %p2853 = pneg %p2852
      $region42: #{tpu_custom_call.1} parent=5 // pred_check_branch
        %2855 = sbr.rel (%p2853) target = $region44
      $region43: #{tpu_custom_call.1} parent=5 // pred_region
        %s2856 = ssub.s32 %s13, 2
        // Predicated region
        $region45: #{tpu_custom_call.1} parent=43 // pred_check
          %p2857 = pneg %p145
        $region46: #{tpu_custom_call.1} parent=43 // pred_check_branch
          %2859 = sbr.rel (%p2857) target = $region48
        $region47: #{tpu_custom_call.1} parent=43 // pred_region
          %s2860 = sand.u32 %s130, 1
          %s2861 = scalar_lea.sflag [#allocation3], %s2860
          %s2862 = sand.u32 %s130, 1
          %s2863 = smul.addr %s2862, 256
          %s2864 = scalar_lea.vmem [#allocation2], %s2863
          %2866 = dma.done %s2861, 4096
        $region48: #{tpu_custom_call.1} parent=43 // pred_fallthru
          _
      $region44: #{tpu_custom_call.1} parent=5 // pred_fallthru
        _
    $region6: #{tpu_custom_call.1} parent=1 // loop_footer
      %s17 = sadd.s32 1, %s13
    $region7: #{tpu_custom_call.1} parent=1 // loop_footer_branch
      %12 = sbr.rel target = $region3
    $region8: #{tpu_custom_call.1} parent=1 // loop_exit
      _
    %2867 = vsyncpa [#allocation3], 1
    %s2868 = scalar_lea.sflag [#allocation3], 1
    %2869 = vsyncpa %s2868, 1

// kernel: tpu_custom_call.1
$region0: #{tpu_custom_call.1}
  #allocation0 [shape = 'u32[]', space=smem, size = 0x4, offset = 0x4, fixed_abs, tag = 'smem constant byte address 0x4 - core index']
  #allocation1 [shape = 'u32[72,128]{1,0:T(1,128)}', space=vmem, size = 0x9000, scoped, tag = 'internal scratch']
  %s0 = inlined_call_operand.vmem [shape: f32[2,18,18,4], index: 0, kind: input, shape index: {}]
  %s1 = inlined_call_operand.vmem [shape: f32[9,4,128], index: 1, kind: input, shape index: {}]
  %s2 = inlined_call_operand.vmem [shape: f32[1,1,128], index: 2, kind: input, shape index: {}]
  %s3 = inlined_call_operand.vmem [shape: f32[1,1,128], index: 3, kind: input, shape index: {}]
  %s4 = inlined_call_operand.hbm [shape: f32[2,16,16,128], index: 4, kind: output, shape index: {}]
  %s5 = sld [smem:[#allocation0]]
  $region49: #{tpu_custom_call.1} parent=0
    _
  %s7 = ssub.s32 1, %s5
  %s8 = scalar_select 0, %s7, %s5
  $region1: #{tpu_custom_call.1} parent=0
    #allocation2 [shape = 'u8[262144]{0}', space=vmem, size = 0x40000, scoped, tag = 'output window, operand 0']
    #allocation3 [shape = 's32[2]{0}', space=sflag, size = 0x8, scoped, tag = 'scoped memory for tpu_custom_call.1']
    %9 = vsyncpa [#allocation3], 0
    %s10 = scalar_lea.sflag [#allocation3], 1
    %11 = vsyncpa %s10, 0
    loop: start=0, step=1, limit=4
    $region2: #{tpu_custom_call.1} parent=1 // loop_pre_header
      _
    $region3: #{tpu_custom_call.1} parent=1 // loop_header
      %s13 = sphi 0, %s17
      %p14 = scmp.ge.s32.totalorder %s13, 4
      %s20 = sphi 0, %s32
      %s21 = sphi 0, %s28
      %s22 = sphi 0, %s20
      %s23 = sphi 0, %s21
      %s24 = sphi 0, %s22
      %s25 = sphi 0, %s23
      %s35 = sphi 0, %s37
      %s38 = sphi 0, %s35
      %s39 = sphi 0, %s38
      %s55 = sphi 0, %s39
      %s59 = sphi 0, %s59
      %s61 = sphi 0, %s59
      %s62 = sphi 0, %s61
      %s76 = sphi 0, %s62
      %s80 = sphi 0, %s80
      %s82 = sphi 0, %s80
      %s83 = sphi 0, %s82
      %s97 = sphi 0, %s83
      %s101 = sphi 0, %s101
      %s103 = sphi 0, %s101
      %s104 = sphi 0, %s103
      %s118 = sphi 0, %s104
      %s126 = sphi 0, %s128
      %s129 = sphi 0, %s126
      %s130 = sphi 0, %s129
      %s146 = sphi 0, %s130
    $region4: #{tpu_custom_call.1} parent=1 // loop_header_branch
      %16 = sbr.rel (%p14) target = $region8
    $region5: #{tpu_custom_call.1} parent=1 // loop_body
      %s18 = ssub.s32 %s13, 1
      %s19 = ssub.s32 %s13, 2
      %s26 = sadd.s32 1, %s21
      %p27 = scmp.ge.s32.totalorder %s26, 1
      %s28 = scalar_select %p27, 0, %s26
      %s29 = sadd.s32 1, %s20
      %s30 = scalar_select %p27, %s29, %s20
      %p31 = scmp.ge.s32.totalorder %s30, 2
      %s32 = scalar_select %p31, 0, %s30
      %s33 = ssub.s32 %s20, %s32
      %p34 = scmp.eq.s32.totalorder %s33, 0
      %s36 = sadd.s32 %s35, 1
      %s37 = scalar_select %p34, %s35, %s36
      %p40 = pneg %p34
      %p41 = scmp.eq.s32.totalorder %s13, 1
      %p42 = por %p40, %p41
      %p43 = scmp.ne.s32.totalorder %s35, %s38
      %p44 = scmp.eq.s32.totalorder %s13, 0
      %p45 = por %p43, %p44
      %p46 = scmp.ne.s32.totalorder %s35, %s38
      %p47 = scmp.eq.s32.totalorder %s18, 1
      %p48 = por %p46, %p47
      %p49 = scmp.ne.s32.totalorder %s38, %s39
      %p50 = scmp.eq.s32.totalorder %s18, 0
      %p51 = por %p49, %p50
      %p52 = scmp.ne.s32.totalorder %s38, %s39
      %p53 = scmp.eq.s32.totalorder %s19, 1
      %p54 = por %p52, %p53
      %p56 = scmp.ne.s32.totalorder %s39, %s55
      %p57 = scmp.eq.s32.totalorder %s19, 0
      %p58 = por %p56, %p57
      %s60 = sadd.s32 %s59, 1
      %p63 = scmp.eq.s32.totalorder %s13, 1
      %p64 = scmp.ne.s32.totalorder %s59, %s61
      %p65 = scmp.eq.s32.totalorder %s13, 0
      %p66 = por %p64, %p65
      %p67 = scmp.ne.s32.totalorder %s59, %s61
      %p68 = scmp.eq.s32.totalorder %s18, 1
      %p69 = por %p67, %p68
      %p70 = scmp.ne.s32.totalorder %s61, %s62
      %p71 = scmp.eq.s32.totalorder %s18, 0
      %p72 = por %p70, %p71
      %p73 = scmp.ne.s32.totalorder %s61, %s62
      %p74 = scmp.eq.s32.totalorder %s19, 1
      %p75 = por %p73, %p74
      %p77 = scmp.ne.s32.totalorder %s62, %s76
      %p78 = scmp.eq.s32.totalorder %s19, 0
      %p79 = por %p77, %p78
      %s81 = sadd.s32 %s80, 1
      %p84 = scmp.eq.s32.totalorder %s13, 1
      %p85 = scmp.ne.s32.totalorder %s80, %s82
      %p86 = scmp.eq.s32.totalorder %s13, 0
      %p87 = por %p85, %p86
      %p88 = scmp.ne.s32.totalorder %s80, %s82
      %p89 = scmp.eq.s32.totalorder %s18, 1
      %p90 = por %p88, %p89
      %p91 = scmp.ne.s32.totalorder %s82, %s83
      %p92 = scmp.eq.s32.totalorder %s18, 0
      %p93 = por %p91, %p92
      %p94 = scmp.ne.s32.totalorder %s82, %s83
      %p95 = scmp.eq.s32.totalorder %s19, 1
      %p96 = por %p94, %p95
      %p98 = scmp.ne.s32.totalorder %s83, %s97
      %p99 = scmp.eq.s32.totalorder %s19, 0
      %p100 = por %p98, %p99
      %s102 = sadd.s32 %s101, 1
      %p105 = scmp.eq.s32.totalorder %s13, 1
      %p106 = scmp.ne.s32.totalorder %s101, %s103
      %p107 = scmp.eq.s32.totalorder %s13, 0
      %p108 = por %p106, %p107
      %p109 = scmp.ne.s32.totalorder %s101, %s103
      %p110 = scmp.eq.s32.totalorder %s18, 1
      %p111 = por %p109, %p110
      %p112 = scmp.ne.s32.totalorder %s103, %s104
      %p113 = scmp.eq.s32.totalorder %s18, 0
      %p114 = por %p112, %p113
      %p115 = scmp.ne.s32.totalorder %s103, %s104
      %p116 = scmp.eq.s32.totalorder %s19, 1
      %p117 = por %p115, %p116
      %p119 = scmp.ne.s32.totalorder %s104, %s118
      %p120 = scmp.eq.s32.totalorder %s19, 0
      %p121 = por %p119, %p120
      %s122 = ssub.s32 %s20, %s32
      %s123 = ssub.s32 %s21, %s28
      %s124 = sor.u32 %s122, %s123
      %p125 = scmp.eq.s32.totalorder %s124, 0
      %s127 = sadd.s32 %s126, 1
      %s128 = scalar_select %p125, %s126, %s127
      %p131 = pneg %p125
      %p132 = scmp.eq.s32.totalorder %s13, 1
      %p133 = por %p131, %p132
      %p134 = scmp.ne.s32.totalorder %s126, %s129
      %p135 = scmp.eq.s32.totalorder %s13, 0
      %p136 = por %p134, %p135
      %p137 = scmp.ne.s32.totalorder %s126, %s129
      %p138 = scmp.eq.s32.totalorder %s18, 1
      %p139 = por %p137, %p138
      %p140 = scmp.ne.s32.totalorder %s129, %s130
      %p141 = scmp.eq.s32.totalorder %s18, 0
      %p142 = por %p140, %p141
      %p143 = scmp.ne.s32.totalorder %s129, %s130
      %p144 = scmp.eq.s32.totalorder %s19, 1
      %p145 = por %p143, %p144
      %p147 = scmp.ne.s32.totalorder %s130, %s146
      %p148 = scmp.eq.s32.totalorder %s19, 0
      %p149 = por %p147, %p148
      %p150 = scmp.le.s32.totalorder 1, %s13
      %p151 = scmp.lt.s32.totalorder %s13, 3
      %p152 = pnand %p150, %p151
      %p153 = pneg %p152
      // Predicated region
      $region9: #{tpu_custom_call.1} parent=5 // pred_check
        _
      $region10: #{tpu_custom_call.1} parent=5 // pred_check_branch
        %155 = sbr.rel (%p152) target = $region12
      $region11: #{tpu_custom_call.1} parent=5 // pred_region
        %s156 = ssub.s32 %s13, 1
        // Predicated region
        $region13: #{tpu_custom_call.1} parent=11 // pred_check
          %p157 = pneg %p72
        $region14: #{tpu_custom_call.1} parent=11 // pred_check_branch
          %159 = sbr.rel (%p157) target = $region16
        $region15: #{tpu_custom_call.1} parent=11 // pred_region
          _
        $region16: #{tpu_custom_call.1} parent=11 // pred_fallthru
          _
        // Predicated region
        $region17: #{tpu_custom_call.1} parent=11 // pred_check
          %p160 = pneg %p93
        $region18: #{tpu_custom_call.1} parent=11 // pred_check_branch
          %162 = sbr.rel (%p160) target = $region20
        $region19: #{tpu_custom_call.1} parent=11 // pred_region
          _
        $region20: #{tpu_custom_call.1} parent=11 // pred_fallthru
          _
        // Predicated region
        $region21: #{tpu_custom_call.1} parent=11 // pred_check
          %p163 = pneg %p114
        $region22: #{tpu_custom_call.1} parent=11 // pred_check_branch
          %165 = sbr.rel (%p163) target = $region24
        $region23: #{tpu_custom_call.1} parent=11 // pred_region
          _
        $region24: #{tpu_custom_call.1} parent=11 // pred_fallthru
          _
      $region12: #{tpu_custom_call.1} parent=5 // pred_fallthru
        _
      %p166 = scmp.lt.s32.totalorder %s13, 2
      // Predicated region
      $region25: #{tpu_custom_call.1} parent=5 // pred_check
        %p167 = pneg %p166
      $region26: #{tpu_custom_call.1} parent=5 // pred_check_branch
        %169 = sbr.rel (%p167) target = $region28
      $region27: #{tpu_custom_call.1} parent=5 // pred_region
        // Predicated region
        $region29: #{tpu_custom_call.1} parent=27 // pred_check
          %p170 = pneg %p45
        $region30: #{tpu_custom_call.1} parent=27 // pred_check_branch
          %172 = sbr.rel (%p170) target = $region32
        $region31: #{tpu_custom_call.1} parent=27 // pred_region
          %p173 = scmp.lt.s32.totalorder %s20, 1
          %s174 = scalar_select %p173, %s20, 1
          %s175 = smul.addr %s174, 54
          %s176 = smul.addr %s175, 8
          %s177 = scalar_lea.vmem %s0, %s176
        $region32: #{tpu_custom_call.1} parent=27 // pred_fallthru
          _
      $region28: #{tpu_custom_call.1} parent=5 // pred_fallthru
        _
      %p178 = scmp.le.s32.totalorder 1, %s13
      %p179 = scmp.lt.s32.totalorder %s13, 3
      %p180 = pnand %p178, %p179
      %p181 = pneg %p180
      // Predicated region
      $region33: #{tpu_custom_call.1} parent=5 // pred_check
        _
      $region34: #{tpu_custom_call.1} parent=5 // pred_check_branch
        %183 = sbr.rel (%p180) target = $region36
      $region35: #{tpu_custom_call.1} parent=5 // pred_region
        %s184 = ssub.s32 %s13, 1
        %p185 = scmp.lt.s32.totalorder %s22, 1
        %s186 = scalar_select %p185, %s22, 1
        %s187 = smul.addr %s186, 54
        %s188 = smul.addr %s187, 8
        %s189 = scalar_lea.vmem %s0, %s188
        %p190 = pneg %p51
        %p191 = pneg %p48
        %p192 = pneg %p72
        %p193 = pneg %p69
        %p194 = pneg %p93
        %p195 = pneg %p90
        %p196 = pneg %p114
        %p197 = pneg %p111
        %p198 = pneg %p142
        %p199 = pneg %p139
        %s200 = sand.u32 %s129, 1
        %s201 = scalar_lea.sflag [#allocation3], %s200
        %s202 = sand.u32 %s129, 1
        %s203 = smul.addr %s202, 256
        %s204 = scalar_lea.vmem [#allocation2], %s203
        %p205 = scmp.lt.s32.totalorder %s22, 1
        %s206 = scalar_select %p205, %s22, 1
        %s207 = smul.addr %s206, 54
        %s208 = smul.addr %s207, 8
        %s209 = scalar_lea.vmem %s0, %s208
        %s210 = smul.u32 16, %s23
        %s211 = smul.u32 %s23, 16
        %s212 = smul.u32 %s211, 24
        %s213 = scalar_lea.vmem %s209, %s212
        %v214 = vld [vmem:[%s213] sm:$0xff]
        %v215 = vld [vmem:[%s213 + $0x8] sm:$0xff]
        %v216 = vld [vmem:[%s213 + $0x18] sm:$0xff]
        %v217 = vld [vmem:[%s213 + $0x20] sm:$0xff]
        %v218 = vld [vmem:[%s213 + $0x30] sm:$0xff]
        %v219 = vld [vmem:[%s213 + $0x38] sm:$0xff]
        %v220 = vld [vmem:[%s213 + $0x48] sm:$0xff]
        %v221 = vld [vmem:[%s213 + $0x50] sm:$0xff]
        %v222 = vld [vmem:[%s213 + $0x60] sm:$0xff]
        %v223 = vld [vmem:[%s213 + $0x68] sm:$0xff]
        %v224 = vld [vmem:[%s213 + $0x78] sm:$0xff]
        %v225 = vld [vmem:[%s213 + $0x80] sm:$0xff]
        %v226 = vld [vmem:[%s213 + $0x90] sm:$0xff]
        %v227 = vld [vmem:[%s213 + $0x98] sm:$0xff]
        %v228 = vld [vmem:[%s213 + $0xa8] sm:$0xff]
        %v229 = vld [vmem:[%s213 + $0xb0] sm:$0xff]
        %v230 = vld [vmem:[%s213 + $0xc0] sm:$0xff]
        %v231 = vld [vmem:[%s213 + $0xc8] sm:$0xff]
        %v232 = vld [vmem:[%s213 + $0xd8] sm:$0xff]
        %v233 = vld [vmem:[%s213 + $0xe0] sm:$0xff]
        %v234 = vld [vmem:[%s213 + $0xf0] sm:$0xff]
        %v235 = vld [vmem:[%s213 + $0xf8] sm:$0xff]
        %v236 = vld [vmem:[%s213 + $0x108] sm:$0xff]
        %v237 = vld [vmem:[%s213 + $0x110] sm:$0xff]
        %v238 = vld [vmem:[%s213 + $0x120] sm:$0xff]
        %v239 = vld [vmem:[%s213 + $0x128] sm:$0xff]
        %v240 = vld [vmem:[%s213 + $0x138] sm:$0xff]
        %v241 = vld [vmem:[%s213 + $0x140] sm:$0xff]
        %v242 = vld [vmem:[%s213 + $0x150] sm:$0xff]
        %v243 = vld [vmem:[%s213 + $0x158] sm:$0xff]
        %v244 = vld [vmem:[%s213 + $0x168] sm:$0xff]
        %v245 = vld [vmem:[%s213 + $0x170] sm:$0xff]
        %v246 = vld [vmem:[%s1] sm:$0xf]
        %v247 = vld [vmem:[%s213 + $0x1] sm:$0xff]
        %v248 = vld [vmem:[%s213 + $0x9] sm:$0xff]
        %v249 = vld [vmem:[%s213 + $0x19] sm:$0xff]
        %v250 = vld [vmem:[%s213 + $0x21] sm:$0xff]
        %v251 = vld [vmem:[%s213 + $0x31] sm:$0xff]
        %v252 = vld [vmem:[%s213 + $0x39] sm:$0xff]
        %v253 = vld [vmem:[%s213 + $0x49] sm:$0xff]
        %v254 = vld [vmem:[%s213 + $0x51] sm:$0xff]
        %v255 = vld [vmem:[%s213 + $0x61] sm:$0xff]
        %v256 = vld [vmem:[%s213 + $0x69] sm:$0xff]
        %v257 = vld [vmem:[%s213 + $0x79] sm:$0xff]
        %v258 = vld [vmem:[%s213 + $0x81] sm:$0xff]
        %v259 = vld [vmem:[%s213 + $0x91] sm:$0xff]
        %v260 = vld [vmem:[%s213 + $0x99] sm:$0xff]
        %v261 = vld [vmem:[%s213 + $0xa9] sm:$0xff]
        %v262 = vld [vmem:[%s213 + $0xb1] sm:$0xff]
        %v263 = vld [vmem:[%s213 + $0xc1] sm:$0xff]
        %v264 = vld [vmem:[%s213 + $0xc9] sm:$0xff]
        %v265 = vld [vmem:[%s213 + $0xd9] sm:$0xff]
        %v266 = vld [vmem:[%s213 + $0xe1] sm:$0xff]
        %v267 = vld [vmem:[%s213 + $0xf1] sm:$0xff]
        %v268 = vld [vmem:[%s213 + $0xf9] sm:$0xff]
        %v269 = vld [vmem:[%s213 + $0x109] sm:$0xff]
        %v270 = vld [vmem:[%s213 + $0x111] sm:$0xff]
        %v271 = vld [vmem:[%s213 + $0x121] sm:$0xff]
        %v272 = vld [vmem:[%s213 + $0x129] sm:$0xff]
        %v273 = vld [vmem:[%s213 + $0x139] sm:$0xff]
        %v274 = vld [vmem:[%s213 + $0x141] sm:$0xff]
        %v275 = vld [vmem:[%s213 + $0x151] sm:$0xff]
        %v276 = vld [vmem:[%s213 + $0x159] sm:$0xff]
        %v277 = vld [vmem:[%s213 + $0x169] sm:$0xff]
        %v278 = vld [vmem:[%s213 + $0x171] sm:$0xff]
        %s279 = scalar_lea.vmem %s1, 4
        %v280 = vld [vmem:[%s279] sm:$0xf]
        %vm281 = vcmask 31744
        %v283 = vsel %vm281, %v247, 0
        %v286 = vsel %vm281, %v248, 0
        %v289 = vsel %vm281, %v249, 0
        %v292 = vsel %vm281, %v250, 0
        %v295 = vsel %vm281, %v251, 0
        %v298 = vsel %vm281, %v252, 0
        %v301 = vsel %vm281, %v253, 0
        %v304 = vsel %vm281, %v254, 0
        %v307 = vsel %vm281, %v255, 0
        %v310 = vsel %vm281, %v256, 0
        %v313 = vsel %vm281, %v257, 0
        %v316 = vsel %vm281, %v258, 0
        %v319 = vsel %vm281, %v259, 0
        %v322 = vsel %vm281, %v260, 0
        %v325 = vsel %vm281, %v261, 0
        %v328 = vsel %vm281, %v262, 0
        %v331 = vsel %vm281, %v263, 0
        %v334 = vsel %vm281, %v264, 0
        %v337 = vsel %vm281, %v265, 0
        %v340 = vsel %vm281, %v266, 0
        %v343 = vsel %vm281, %v267, 0
        %v346 = vsel %vm281, %v268, 0
        %v349 = vsel %vm281, %v269, 0
        %v352 = vsel %vm281, %v270, 0
        %v355 = vsel %vm281, %v271, 0
        %v358 = vsel %vm281, %v272, 0
        %v361 = vsel %vm281, %v273, 0
        %v364 = vsel %vm281, %v274, 0
        %v367 = vsel %vm281, %v275, 0
        %v370 = vsel %vm281, %v276, 0
        %v373 = vsel %vm281, %v277, 0
        %v376 = vsel %vm281, %v278, 0
        %vm378 = vcmask 1043456
        %v380 = vsel %vm378, %v280, 0
        %382 = vmatpush.msra.mxu0 0.0
        %383 = vmatpush.msra.mxu0 0.0
        %384 = vmatpush.msra.mxu0 0.0
        %385 = vmatpush.msra.mxu0 0.0
        %386 = vmatpush.msra.mxu0 0.0
        %387 = vmatpush.msra.mxu0 0.0
        %388 = vmatpush.msra.mxu0 0.0
        %389 = vmatpush.msra.mxu0 0.0
        %390 = vmatpush.msra.mxu0 0.0
        %391 = vmatpush.msra.mxu0 0.0
        %392 = vmatpush.msra.mxu0 0.0
        %393 = vmatpush.msra.mxu0 0.0
        %394 = vmatpush.msra.mxu0 0.0
        %395 = vmatpush.msra.mxu0 0.0
        %396 = vmatpush.msra.mxu0 0.0
        %397 = vmatpush.msra.mxu0 %v380
        %398 = vmatmul.f32.gmra.mxu0 %v283
        %v399 = vpop.f32.mrf.mxu0
        %v400 = vadd.f32 0.0, %v399
        %401 = vmatmul.f32.gmra.mxu0 %v286
        %v402 = vpop.f32.mrf.mxu0
        %v403 = vadd.f32 0.0, %v402
        %404 = vmatmul.f32.gmra.mxu0 %v289
        %v405 = vpop.f32.mrf.mxu0
        %v406 = vadd.f32 0.0, %v405
        %407 = vmatmul.f32.gmra.mxu0 %v292
        %v408 = vpop.f32.mrf.mxu0
        %v409 = vadd.f32 0.0, %v408
        %410 = vmatmul.f32.gmra.mxu0 %v295
        %v411 = vpop.f32.mrf.mxu0
        %v412 = vadd.f32 0.0, %v411
        %413 = vmatmul.f32.gmra.mxu0 %v298
        %v414 = vpop.f32.mrf.mxu0
        %v415 = vadd.f32 0.0, %v414
        %416 = vmatmul.f32.gmra.mxu0 %v301
        %v417 = vpop.f32.mrf.mxu0
        %v418 = vadd.f32 0.0, %v417
        %419 = vmatmul.f32.gmra.mxu0 %v304
        %v420 = vpop.f32.mrf.mxu0
        %v421 = vadd.f32 0.0, %v420
        %422 = vmatmul.f32.gmra.mxu0 %v307
        %v423 = vpop.f32.mrf.mxu0
        %v424 = vadd.f32 0.0, %v423
        %425 = vmatmul.f32.gmra.mxu0 %v310
        %v426 = vpop.f32.mrf.mxu0
        %v427 = vadd.f32 0.0, %v426
        %428 = vmatmul.f32.gmra.mxu0 %v313
        %v429 = vpop.f32.mrf.mxu0
        %v430 = vadd.f32 0.0, %v429
        %431 = vmatmul.f32.gmra.mxu0 %v316
        %v432 = vpop.f32.mrf.mxu0
        %v433 = vadd.f32 0.0, %v432
        %434 = vmatmul.f32.gmra.mxu0 %v319
        %v435 = vpop.f32.mrf.mxu0
        %v436 = vadd.f32 0.0, %v435
        %437 = vmatmul.f32.gmra.mxu0 %v322
        %v438 = vpop.f32.mrf.mxu0
        %v439 = vadd.f32 0.0, %v438
        %440 = vmatmul.f32.gmra.mxu0 %v325
        %v441 = vpop.f32.mrf.mxu0
        %v442 = vadd.f32 0.0, %v441
        %443 = vmatmul.f32.gmra.mxu0 %v328
        %v444 = vpop.f32.mrf.mxu0
        %v445 = vadd.f32 0.0, %v444
        %446 = vmatmul.f32.gmra.mxu0 %v331
        %v447 = vpop.f32.mrf.mxu0
        %v448 = vadd.f32 0.0, %v447
        %449 = vmatmul.f32.gmra.mxu0 %v334
        %v450 = vpop.f32.mrf.mxu0
        %v451 = vadd.f32 0.0, %v450
        %452 = vmatmul.f32.gmra.mxu0 %v337
        %v453 = vpop.f32.mrf.mxu0
        %v454 = vadd.f32 0.0, %v453
        %455 = vmatmul.f32.gmra.mxu0 %v340
        %v456 = vpop.f32.mrf.mxu0
        %v457 = vadd.f32 0.0, %v456
        %458 = vmatmul.f32.gmra.mxu0 %v343
        %v459 = vpop.f32.mrf.mxu0
        %v460 = vadd.f32 0.0, %v459
        %461 = vmatmul.f32.gmra.mxu0 %v346
        %v462 = vpop.f32.mrf.mxu0
        %v463 = vadd.f32 0.0, %v462
        %464 = vmatmul.f32.gmra.mxu0 %v349
        %v465 = vpop.f32.mrf.mxu0
        %v466 = vadd.f32 0.0, %v465
        %467 = vmatmul.f32.gmra.mxu0 %v352
        %v468 = vpop.f32.mrf.mxu0
        %v469 = vadd.f32 0.0, %v468
        %470 = vmatmul.f32.gmra.mxu0 %v355
        %v471 = vpop.f32.mrf.mxu0
        %v472 = vadd.f32 0.0, %v471
        %473 = vmatmul.f32.gmra.mxu0 %v358
        %v474 = vpop.f32.mrf.mxu0
        %v475 = vadd.f32 0.0, %v474
        %476 = vmatmul.f32.gmra.mxu0 %v361
        %v477 = vpop.f32.mrf.mxu0
        %v478 = vadd.f32 0.0, %v477
        %479 = vmatmul.f32.gmra.mxu0 %v364
        %v480 = vpop.f32.mrf.mxu0
        %v481 = vadd.f32 0.0, %v480
        %482 = vmatmul.f32.gmra.mxu0 %v367
        %v483 = vpop.f32.mrf.mxu0
        %v484 = vadd.f32 0.0, %v483
        %485 = vmatmul.f32.gmra.mxu0 %v370
        %v486 = vpop.f32.mrf.mxu0
        %v487 = vadd.f32 0.0, %v486
        %488 = vmatmul.f32.gmra.mxu0 %v373
        %v489 = vpop.f32.mrf.mxu0
        %v490 = vadd.f32 0.0, %v489
        %491 = vmatmul.f32.gmra.mxu0 %v376
        %v492 = vpop.f32.mrf.mxu0
        %v493 = vadd.f32 0.0, %v492
        %494 = vdwg.mxu0
        %v496 = vsel %vm281, %v214, 0
        %v499 = vsel %vm281, %v215, 0
        %v502 = vsel %vm281, %v216, 0
        %v505 = vsel %vm281, %v217, 0
        %v508 = vsel %vm281, %v218, 0
        %v511 = vsel %vm281, %v219, 0
        %v514 = vsel %vm281, %v220, 0
        %v517 = vsel %vm281, %v221, 0
        %v520 = vsel %vm281, %v222, 0
        %v523 = vsel %vm281, %v223, 0
        %v526 = vsel %vm281, %v224, 0
        %v529 = vsel %vm281, %v225, 0
        %v532 = vsel %vm281, %v226, 0
        %v535 = vsel %vm281, %v227, 0
        %v538 = vsel %vm281, %v228, 0
        %v541 = vsel %vm281, %v229, 0
        %v544 = vsel %vm281, %v230, 0
        %v547 = vsel %vm281, %v231, 0
        %v550 = vsel %vm281, %v232, 0
        %v553 = vsel %vm281, %v233, 0
        %v556 = vsel %vm281, %v234, 0
        %v559 = vsel %vm281, %v235, 0
        %v562 = vsel %vm281, %v236, 0
        %v565 = vsel %vm281, %v237, 0
        %v568 = vsel %vm281, %v238, 0
        %v571 = vsel %vm281, %v239, 0
        %v574 = vsel %vm281, %v240, 0
        %v577 = vsel %vm281, %v241, 0
        %v580 = vsel %vm281, %v242, 0
        %v583 = vsel %vm281, %v243, 0
        %v586 = vsel %vm281, %v244, 0
        %v589 = vsel %vm281, %v245, 0
        %v592 = vsel %vm378, %v246, 0
        %594 = vmatpush.msra.mxu0 0.0
        %595 = vmatpush.msra.mxu0 0.0
        %596 = vmatpush.msra.mxu0 0.0
        %597 = vmatpush.msra.mxu0 0.0
        %598 = vmatpush.msra.mxu0 0.0
        %599 = vmatpush.msra.mxu0 0.0
        %600 = vmatpush.msra.mxu0 0.0
        %601 = vmatpush.msra.mxu0 0.0
        %602 = vmatpush.msra.mxu0 0.0
        %603 = vmatpush.msra.mxu0 0.0
        %604 = vmatpush.msra.mxu0 0.0
        %605 = vmatpush.msra.mxu0 0.0
        %606 = vmatpush.msra.mxu0 0.0
        %607 = vmatpush.msra.mxu0 0.0
        %608 = vmatpush.msra.mxu0 0.0
        %609 = vmatpush.msra.mxu0 %v592
        %610 = vmatmul.f32.gmra.mxu0 %v496
        %v611 = vpop.f32.mrf.mxu0
        %v612 = vadd.f32 %v400, %v611
        %613 = vmatmul.f32.gmra.mxu0 %v499
        %v614 = vpop.f32.mrf.mxu0
        %v615 = vadd.f32 %v403, %v614
        %616 = vmatmul.f32.gmra.mxu0 %v502
        %v617 = vpop.f32.mrf.mxu0
        %v618 = vadd.f32 %v406, %v617
        %619 = vmatmul.f32.gmra.mxu0 %v505
        %v620 = vpop.f32.mrf.mxu0
        %v621 = vadd.f32 %v409, %v620
        %622 = vmatmul.f32.gmra.mxu0 %v508
        %v623 = vpop.f32.mrf.mxu0
        %v624 = vadd.f32 %v412, %v623
        %625 = vmatmul.f32.gmra.mxu0 %v511
        %v626 = vpop.f32.mrf.mxu0
        %v627 = vadd.f32 %v415, %v626
        %628 = vmatmul.f32.gmra.mxu0 %v514
        %v629 = vpop.f32.mrf.mxu0
        %v630 = vadd.f32 %v418, %v629
        %631 = vmatmul.f32.gmra.mxu0 %v517
        %v632 = vpop.f32.mrf.mxu0
        %v633 = vadd.f32 %v421, %v632
        %634 = vmatmul.f32.gmra.mxu0 %v520
        %v635 = vpop.f32.mrf.mxu0
        %v636 = vadd.f32 %v424, %v635
        %637 = vmatmul.f32.gmra.mxu0 %v523
        %v638 = vpop.f32.mrf.mxu0
        %v639 = vadd.f32 %v427, %v638
        %640 = vmatmul.f32.gmra.mxu0 %v526
        %v641 = vpop.f32.mrf.mxu0
        %v642 = vadd.f32 %v430, %v641
        %643 = vmatmul.f32.gmra.mxu0 %v529
        %v644 = vpop.f32.mrf.mxu0
        %v645 = vadd.f32 %v433, %v644
        %646 = vmatmul.f32.gmra.mxu0 %v532
        %v647 = vpop.f32.mrf.mxu0
        %v648 = vadd.f32 %v436, %v647
        %649 = vmatmul.f32.gmra.mxu0 %v535
        %v650 = vpop.f32.mrf.mxu0
        %v651 = vadd.f32 %v439, %v650
        %652 = vmatmul.f32.gmra.mxu0 %v538
        %v653 = vpop.f32.mrf.mxu0
        %v654 = vadd.f32 %v442, %v653
        %655 = vmatmul.f32.gmra.mxu0 %v541
        %v656 = vpop.f32.mrf.mxu0
        %v657 = vadd.f32 %v445, %v656
        %658 = vmatmul.f32.gmra.mxu0 %v544
        %v659 = vpop.f32.mrf.mxu0
        %v660 = vadd.f32 %v448, %v659
        %661 = vmatmul.f32.gmra.mxu0 %v547
        %v662 = vpop.f32.mrf.mxu0
        %v663 = vadd.f32 %v451, %v662
        %664 = vmatmul.f32.gmra.mxu0 %v550
        %v665 = vpop.f32.mrf.mxu0
        %v666 = vadd.f32 %v454, %v665
        %667 = vmatmul.f32.gmra.mxu0 %v553
        %v668 = vpop.f32.mrf.mxu0
        %v669 = vadd.f32 %v457, %v668
        %670 = vmatmul.f32.gmra.mxu0 %v556
        %v671 = vpop.f32.mrf.mxu0
        %v672 = vadd.f32 %v460, %v671
        %673 = vmatmul.f32.gmra.mxu0 %v559
        %v674 = vpop.f32.mrf.mxu0
        %v675 = vadd.f32 %v463, %v674
        %676 = vmatmul.f32.gmra.mxu0 %v562
        %v677 = vpop.f32.mrf.mxu0
        %v678 = vadd.f32 %v466, %v677
        %679 = vmatmul.f32.gmra.mxu0 %v565
        %v680 = vpop.f32.mrf.mxu0
        %v681 = vadd.f32 %v469, %v680
        %682 = vmatmul.f32.gmra.mxu0 %v568
        %v683 = vpop.f32.mrf.mxu0
        %v684 = vadd.f32 %v472, %v683
        %685 = vmatmul.f32.gmra.mxu0 %v571
        %v686 = vpop.f32.mrf.mxu0
        %v687 = vadd.f32 %v475, %v686
        %688 = vmatmul.f32.gmra.mxu0 %v574
        %v689 = vpop.f32.mrf.mxu0
        %v690 = vadd.f32 %v478, %v689
        %691 = vmatmul.f32.gmra.mxu0 %v577
        %v692 = vpop.f32.mrf.mxu0
        %v693 = vadd.f32 %v481, %v692
        %694 = vmatmul.f32.gmra.mxu0 %v580
        %v695 = vpop.f32.mrf.mxu0
        %v696 = vadd.f32 %v484, %v695
        %697 = vmatmul.f32.gmra.mxu0 %v583
        %v698 = vpop.f32.mrf.mxu0
        %v699 = vadd.f32 %v487, %v698
        %700 = vmatmul.f32.gmra.mxu0 %v586
        %v701 = vpop.f32.mrf.mxu0
        %v702 = vadd.f32 %v490, %v701
        %703 = vmatmul.f32.gmra.mxu0 %v589
        %v704 = vpop.f32.mrf.mxu0
        %v705 = vadd.f32 %v493, %v704
        %706 = vdwg.mxu0
        %v707 = vld [vmem:[%s213 + $0x2] sm:$0xff]
        %v708 = vld [vmem:[%s213 + $0xa] sm:$0xff]
        %v709 = vld [vmem:[%s213 + $0x1a] sm:$0xff]
        %v710 = vld [vmem:[%s213 + $0x22] sm:$0xff]
        %v711 = vld [vmem:[%s213 + $0x32] sm:$0xff]
        %v712 = vld [vmem:[%s213 + $0x3a] sm:$0xff]
        %v713 = vld [vmem:[%s213 + $0x4a] sm:$0xff]
        %v714 = vld [vmem:[%s213 + $0x52] sm:$0xff]
        %v715 = vld [vmem:[%s213 + $0x62] sm:$0xff]
        %v716 = vld [vmem:[%s213 + $0x6a] sm:$0xff]
        %v717 = vld [vmem:[%s213 + $0x7a] sm:$0xff]
        %v718 = vld [vmem:[%s213 + $0x82] sm:$0xff]
        %v719 = vld [vmem:[%s213 + $0x92] sm:$0xff]
        %v720 = vld [vmem:[%s213 + $0x9a] sm:$0xff]
        %v721 = vld [vmem:[%s213 + $0xaa] sm:$0xff]
        %v722 = vld [vmem:[%s213 + $0xb2] sm:$0xff]
        %v723 = vld [vmem:[%s213 + $0xc2] sm:$0xff]
        %v724 = vld [vmem:[%s213 + $0xca] sm:$0xff]
        %v725 = vld [vmem:[%s213 + $0xda] sm:$0xff]
        %v726 = vld [vmem:[%s213 + $0xe2] sm:$0xff]
        %v727 = vld [vmem:[%s213 + $0xf2] sm:$0xff]
        %v728 = vld [vmem:[%s213 + $0xfa] sm:$0xff]
        %v729 = vld [vmem:[%s213 + $0x10a] sm:$0xff]
        %v730 = vld [vmem:[%s213 + $0x112] sm:$0xff]
        %v731 = vld [vmem:[%s213 + $0x122] sm:$0xff]
        %v732 = vld [vmem:[%s213 + $0x12a] sm:$0xff]
        %v733 = vld [vmem:[%s213 + $0x13a] sm:$0xff]
        %v734 = vld [vmem:[%s213 + $0x142] sm:$0xff]
        %v735 = vld [vmem:[%s213 + $0x152] sm:$0xff]
        %v736 = vld [vmem:[%s213 + $0x15a] sm:$0xff]
        %v737 = vld [vmem:[%s213 + $0x16a] sm:$0xff]
        %v738 = vld [vmem:[%s213 + $0x172] sm:$0xff]
        %s739 = scalar_lea.vmem %s1, 8
        %v740 = vld [vmem:[%s739] sm:$0xf]
        %v742 = vsel %vm281, %v707, 0
        %v745 = vsel %vm281, %v708, 0
        %v748 = vsel %vm281, %v709, 0
        %v751 = vsel %vm281, %v710, 0
        %v754 = vsel %vm281, %v711, 0
        %v757 = vsel %vm281, %v712, 0
        %v760 = vsel %vm281, %v713, 0
        %v763 = vsel %vm281, %v714, 0
        %v766 = vsel %vm281, %v715, 0
        %v769 = vsel %vm281, %v716, 0
        %v772 = vsel %vm281, %v717, 0
        %v775 = vsel %vm281, %v718, 0
        %v778 = vsel %vm281, %v719, 0
        %v781 = vsel %vm281, %v720, 0
        %v784 = vsel %vm281, %v721, 0
        %v787 = vsel %vm281, %v722, 0
        %v790 = vsel %vm281, %v723, 0
        %v793 = vsel %vm281, %v724, 0
        %v796 = vsel %vm281, %v725, 0
        %v799 = vsel %vm281, %v726, 0
        %v802 = vsel %vm281, %v727, 0
        %v805 = vsel %vm281, %v728, 0
        %v808 = vsel %vm281, %v729, 0
        %v811 = vsel %vm281, %v730, 0
        %v814 = vsel %vm281, %v731, 0
        %v817 = vsel %vm281, %v732, 0
        %v820 = vsel %vm281, %v733, 0
        %v823 = vsel %vm281, %v734, 0
        %v826 = vsel %vm281, %v735, 0
        %v829 = vsel %vm281, %v736, 0
        %v832 = vsel %vm281, %v737, 0
        %v835 = vsel %vm281, %v738, 0
        %v838 = vsel %vm378, %v740, 0
        %840 = vmatpush.msra.mxu0 0.0
        %841 = vmatpush.msra.mxu0 0.0
        %842 = vmatpush.msra.mxu0 0.0
        %843 = vmatpush.msra.mxu0 0.0
        %844 = vmatpush.msra.mxu0 0.0
        %845 = vmatpush.msra.mxu0 0.0
        %846 = vmatpush.msra.mxu0 0.0
        %847 = vmatpush.msra.mxu0 0.0
        %848 = vmatpush.msra.mxu0 0.0
        %849 = vmatpush.msra.mxu0 0.0
        %850 = vmatpush.msra.mxu0 0.0
        %851 = vmatpush.msra.mxu0 0.0
        %852 = vmatpush.msra.mxu0 0.0
        %853 = vmatpush.msra.mxu0 0.0
        %854 = vmatpush.msra.mxu0 0.0
        %855 = vmatpush.msra.mxu0 %v838
        %856 = vmatmul.f32.gmra.mxu0 %v742
        %v857 = vpop.f32.mrf.mxu0
        %v858 = vadd.f32 0.0, %v857
        %859 = vmatmul.f32.gmra.mxu0 %v745
        %v860 = vpop.f32.mrf.mxu0
        %v861 = vadd.f32 0.0, %v860
        %862 = vmatmul.f32.gmra.mxu0 %v748
        %v863 = vpop.f32.mrf.mxu0
        %v864 = vadd.f32 0.0, %v863
        %865 = vmatmul.f32.gmra.mxu0 %v751
        %v866 = vpop.f32.mrf.mxu0
        %v867 = vadd.f32 0.0, %v866
        %868 = vmatmul.f32.gmra.mxu0 %v754
        %v869 = vpop.f32.mrf.mxu0
        %v870 = vadd.f32 0.0, %v869
        %871 = vmatmul.f32.gmra.mxu0 %v757
        %v872 = vpop.f32.mrf.mxu0
        %v873 = vadd.f32 0.0, %v872
        %874 = vmatmul.f32.gmra.mxu0 %v760
        %v875 = vpop.f32.mrf.mxu0
        %v876 = vadd.f32 0.0, %v875
        %877 = vmatmul.f32.gmra.mxu0 %v763
        %v878 = vpop.f32.mrf.mxu0
        %v879 = vadd.f32 0.0, %v878
        %880 = vmatmul.f32.gmra.mxu0 %v766
        %v881 = vpop.f32.mrf.mxu0
        %v882 = vadd.f32 0.0, %v881
        %883 = vmatmul.f32.gmra.mxu0 %v769
        %v884 = vpop.f32.mrf.mxu0
        %v885 = vadd.f32 0.0, %v884
        %886 = vmatmul.f32.gmra.mxu0 %v772
        %v887 = vpop.f32.mrf.mxu0
        %v888 = vadd.f32 0.0, %v887
        %889 = vmatmul.f32.gmra.mxu0 %v775
        %v890 = vpop.f32.mrf.mxu0
        %v891 = vadd.f32 0.0, %v890
        %892 = vmatmul.f32.gmra.mxu0 %v778
        %v893 = vpop.f32.mrf.mxu0
        %v894 = vadd.f32 0.0, %v893
        %895 = vmatmul.f32.gmra.mxu0 %v781
        %v896 = vpop.f32.mrf.mxu0
        %v897 = vadd.f32 0.0, %v896
        %898 = vmatmul.f32.gmra.mxu0 %v784
        %v899 = vpop.f32.mrf.mxu0
        %v900 = vadd.f32 0.0, %v899
        %901 = vmatmul.f32.gmra.mxu0 %v787
        %v902 = vpop.f32.mrf.mxu0
        %v903 = vadd.f32 0.0, %v902
        %904 = vmatmul.f32.gmra.mxu0 %v790
        %v905 = vpop.f32.mrf.mxu0
        %v906 = vadd.f32 0.0, %v905
        %907 = vmatmul.f32.gmra.mxu0 %v793
        %v908 = vpop.f32.mrf.mxu0
        %v909 = vadd.f32 0.0, %v908
        %910 = vmatmul.f32.gmra.mxu0 %v796
        %v911 = vpop.f32.mrf.mxu0
        %v912 = vadd.f32 0.0, %v911
        %913 = vmatmul.f32.gmra.mxu0 %v799
        %v914 = vpop.f32.mrf.mxu0
        %v915 = vadd.f32 0.0, %v914
        %916 = vmatmul.f32.gmra.mxu0 %v802
        %v917 = vpop.f32.mrf.mxu0
        %v918 = vadd.f32 0.0, %v917
        %919 = vmatmul.f32.gmra.mxu0 %v805
        %v920 = vpop.f32.mrf.mxu0
        %v921 = vadd.f32 0.0, %v920
        %922 = vmatmul.f32.gmra.mxu0 %v808
        %v923 = vpop.f32.mrf.mxu0
        %v924 = vadd.f32 0.0, %v923
        %925 = vmatmul.f32.gmra.mxu0 %v811
        %v926 = vpop.f32.mrf.mxu0
        %v927 = vadd.f32 0.0, %v926
        %928 = vmatmul.f32.gmra.mxu0 %v814
        %v929 = vpop.f32.mrf.mxu0
        %v930 = vadd.f32 0.0, %v929
        %931 = vmatmul.f32.gmra.mxu0 %v817
        %v932 = vpop.f32.mrf.mxu0
        %v933 = vadd.f32 0.0, %v932
        %934 = vmatmul.f32.gmra.mxu0 %v820
        %v935 = vpop.f32.mrf.mxu0
        %v936 = vadd.f32 0.0, %v935
        %937 = vmatmul.f32.gmra.mxu0 %v823
        %v938 = vpop.f32.mrf.mxu0
        %v939 = vadd.f32 0.0, %v938
        %940 = vmatmul.f32.gmra.mxu0 %v826
        %v941 = vpop.f32.mrf.mxu0
        %v942 = vadd.f32 0.0, %v941
        %943 = vmatmul.f32.gmra.mxu0 %v829
        %v944 = vpop.f32.mrf.mxu0
        %v945 = vadd.f32 0.0, %v944
        %946 = vmatmul.f32.gmra.mxu0 %v832
        %v947 = vpop.f32.mrf.mxu0
        %v948 = vadd.f32 0.0, %v947
        %949 = vmatmul.f32.gmra.mxu0 %v835
        %v950 = vpop.f32.mrf.mxu0
        %v951 = vadd.f32 0.0, %v950
        %952 = vdwg.mxu0
        %v953 = vadd.f32 %v612, %v858
        %v954 = vadd.f32 %v615, %v861
        %v955 = vadd.f32 %v618, %v864
        %v956 = vadd.f32 %v621, %v867
        %v957 = vadd.f32 %v624, %v870
        %v958 = vadd.f32 %v627, %v873
        %v959 = vadd.f32 %v630, %v876
        %v960 = vadd.f32 %v633, %v879
        %v961 = vadd.f32 %v636, %v882
        %v962 = vadd.f32 %v639, %v885
        %v963 = vadd.f32 %v642, %v888
        %v964 = vadd.f32 %v645, %v891
        %v965 = vadd.f32 %v648, %v894
        %v966 = vadd.f32 %v651, %v897
        %v967 = vadd.f32 %v654, %v900
        %v968 = vadd.f32 %v657, %v903
        %v969 = vadd.f32 %v660, %v906
        %v970 = vadd.f32 %v663, %v909
        %v971 = vadd.f32 %v666, %v912
        %v972 = vadd.f32 %v669, %v915
        %v973 = vadd.f32 %v672, %v918
        %v974 = vadd.f32 %v675, %v921
        %v975 = vadd.f32 %v678, %v924
        %v976 = vadd.f32 %v681, %v927
        %v977 = vadd.f32 %v684, %v930
        %v978 = vadd.f32 %v687, %v933
        %v979 = vadd.f32 %v690, %v936
        %v980 = vadd.f32 %v693, %v939
        %v981 = vadd.f32 %v696, %v942
        %v982 = vadd.f32 %v699, %v945
        %v983 = vadd.f32 %v702, %v948
        %v984 = vadd.f32 %v705, %v951
        %s985 = sadd.s32 %s211, 1
        %s986 = smul.u32 %s985, 24
        %s987 = scalar_lea.vmem %s209, %s986
        %v988 = vld [vmem:[%s987] sm:$0xff]
        %v989 = vld [vmem:[%s987 + $0x8] sm:$0xff]
        %v990 = vld [vmem:[%s987 + $0x18] sm:$0xff]
        %v991 = vld [vmem:[%s987 + $0x20] sm:$0xff]
        %v992 = vld [vmem:[%s987 + $0x30] sm:$0xff]
        %v993 = vld [vmem:[%s987 + $0x38] sm:$0xff]
        %v994 = vld [vmem:[%s987 + $0x48] sm:$0xff]
        %v995 = vld [vmem:[%s987 + $0x50] sm:$0xff]
        %v996 = vld [vmem:[%s987 + $0x60] sm:$0xff]
        %v997 = vld [vmem:[%s987 + $0x68] sm:$0xff]
        %v998 = vld [vmem:[%s987 + $0x78] sm:$0xff]
        %v999 = vld [vmem:[%s987 + $0x80] sm:$0xff]
        %v1000 = vld [vmem:[%s987 + $0x90] sm:$0xff]
        %v1001 = vld [vmem:[%s987 + $0x98] sm:$0xff]
        %v1002 = vld [vmem:[%s987 + $0xa8] sm:$0xff]
        %v1003 = vld [vmem:[%s987 + $0xb0] sm:$0xff]
        %v1004 = vld [vmem:[%s987 + $0xc0] sm:$0xff]
        %v1005 = vld [vmem:[%s987 + $0xc8] sm:$0xff]
        %v1006 = vld [vmem:[%s987 + $0xd8] sm:$0xff]
        %v1007 = vld [vmem:[%s987 + $0xe0] sm:$0xff]
        %v1008 = vld [vmem:[%s987 + $0xf0] sm:$0xff]
        %v1009 = vld [vmem:[%s987 + $0xf8] sm:$0xff]
        %v1010 = vld [vmem:[%s987 + $0x108] sm:$0xff]
        %v1011 = vld [vmem:[%s987 + $0x110] sm:$0xff]
        %v1012 = vld [vmem:[%s987 + $0x120] sm:$0xff]
        %v1013 = vld [vmem:[%s987 + $0x128] sm:$0xff]
        %v1014 = vld [vmem:[%s987 + $0x138] sm:$0xff]
        %v1015 = vld [vmem:[%s987 + $0x140] sm:$0xff]
        %v1016 = vld [vmem:[%s987 + $0x150] sm:$0xff]
        %v1017 = vld [vmem:[%s987 + $0x158] sm:$0xff]
        %v1018 = vld [vmem:[%s987 + $0x168] sm:$0xff]
        %v1019 = vld [vmem:[%s987 + $0x170] sm:$0xff]
        %s1020 = scalar_lea.vmem %s1, 12
        %v1021 = vld [vmem:[%s1020] sm:$0xf]
        %v1023 = vsel %vm281, %v988, 0
        %v1026 = vsel %vm281, %v989, 0
        %v1029 = vsel %vm281, %v990, 0
        %v1032 = vsel %vm281, %v991, 0
        %v1035 = vsel %vm281, %v992, 0
        %v1038 = vsel %vm281, %v993, 0
        %v1041 = vsel %vm281, %v994, 0
        %v1044 = vsel %vm281, %v995, 0
        %v1047 = vsel %vm281, %v996, 0
        %v1050 = vsel %vm281, %v997, 0
        %v1053 = vsel %vm281, %v998, 0
        %v1056 = vsel %vm281, %v999, 0
        %v1059 = vsel %vm281, %v1000, 0
        %v1062 = vsel %vm281, %v1001, 0
        %v1065 = vsel %vm281, %v1002, 0
        %v1068 = vsel %vm281, %v1003, 0
        %v1071 = vsel %vm281, %v1004, 0
        %v1074 = vsel %vm281, %v1005, 0
        %v1077 = vsel %vm281, %v1006, 0
        %v1080 = vsel %vm281, %v1007, 0
        %v1083 = vsel %vm281, %v1008, 0
        %v1086 = vsel %vm281, %v1009, 0
        %v1089 = vsel %vm281, %v1010, 0
        %v1092 = vsel %vm281, %v1011, 0
        %v1095 = vsel %vm281, %v1012, 0
        %v1098 = vsel %vm281, %v1013, 0
        %v1101 = vsel %vm281, %v1014, 0
        %v1104 = vsel %vm281, %v1015, 0
        %v1107 = vsel %vm281, %v1016, 0
        %v1110 = vsel %vm281, %v1017, 0
        %v1113 = vsel %vm281, %v1018, 0
        %v1116 = vsel %vm281, %v1019, 0
        %v1119 = vsel %vm378, %v1021, 0
        %1121 = vmatpush.msra.mxu0 0.0
        %1122 = vmatpush.msra.mxu0 0.0
        %1123 = vmatpush.msra.mxu0 0.0
        %1124 = vmatpush.msra.mxu0 0.0
        %1125 = vmatpush.msra.mxu0 0.0
        %1126 = vmatpush.msra.mxu0 0.0
        %1127 = vmatpush.msra.mxu0 0.0
        %1128 = vmatpush.msra.mxu0 0.0
        %1129 = vmatpush.msra.mxu0 0.0
        %1130 = vmatpush.msra.mxu0 0.0
        %1131 = vmatpush.msra.mxu0 0.0
        %1132 = vmatpush.msra.mxu0 0.0
        %1133 = vmatpush.msra.mxu0 0.0
        %1134 = vmatpush.msra.mxu0 0.0
        %1135 = vmatpush.msra.mxu0 0.0
        %1136 = vmatpush.msra.mxu0 %v1119
        %1137 = vmatmul.f32.gmra.mxu0 %v1023
        %v1138 = vpop.f32.mrf.mxu0
        %v1139 = vadd.f32 0.0, %v1138
        %1140 = vmatmul.f32.gmra.mxu0 %v1026
        %v1141 = vpop.f32.mrf.mxu0
        %v1142 = vadd.f32 0.0, %v1141
        %1143 = vmatmul.f32.gmra.mxu0 %v1029
        %v1144 = vpop.f32.mrf.mxu0
        %v1145 = vadd.f32 0.0, %v1144
        %1146 = vmatmul.f32.gmra.mxu0 %v1032
        %v1147 = vpop.f32.mrf.mxu0
        %v1148 = vadd.f32 0.0, %v1147
        %1149 = vmatmul.f32.gmra.mxu0 %v1035
        %v1150 = vpop.f32.mrf.mxu0
        %v1151 = vadd.f32 0.0, %v1150
        %1152 = vmatmul.f32.gmra.mxu0 %v1038
        %v1153 = vpop.f32.mrf.mxu0
        %v1154 = vadd.f32 0.0, %v1153
        %1155 = vmatmul.f32.gmra.mxu0 %v1041
        %v1156 = vpop.f32.mrf.mxu0
        %v1157 = vadd.f32 0.0, %v1156
        %1158 = vmatmul.f32.gmra.mxu0 %v1044
        %v1159 = vpop.f32.mrf.mxu0
        %v1160 = vadd.f32 0.0, %v1159
        %1161 = vmatmul.f32.gmra.mxu0 %v1047
        %v1162 = vpop.f32.mrf.mxu0
        %v1163 = vadd.f32 0.0, %v1162
        %1164 = vmatmul.f32.gmra.mxu0 %v1050
        %v1165 = vpop.f32.mrf.mxu0
        %v1166 = vadd.f32 0.0, %v1165
        %1167 = vmatmul.f32.gmra.mxu0 %v1053
        %v1168 = vpop.f32.mrf.mxu0
        %v1169 = vadd.f32 0.0, %v1168
        %1170 = vmatmul.f32.gmra.mxu0 %v1056
        %v1171 = vpop.f32.mrf.mxu0
        %v1172 = vadd.f32 0.0, %v1171
        %1173 = vmatmul.f32.gmra.mxu0 %v1059
        %v1174 = vpop.f32.mrf.mxu0
        %v1175 = vadd.f32 0.0, %v1174
        %1176 = vmatmul.f32.gmra.mxu0 %v1062
        %v1177 = vpop.f32.mrf.mxu0
        %v1178 = vadd.f32 0.0, %v1177
        %1179 = vmatmul.f32.gmra.mxu0 %v1065
        %v1180 = vpop.f32.mrf.mxu0
        %v1181 = vadd.f32 0.0, %v1180
        %1182 = vmatmul.f32.gmra.mxu0 %v1068
        %v1183 = vpop.f32.mrf.mxu0
        %v1184 = vadd.f32 0.0, %v1183
        %1185 = vmatmul.f32.gmra.mxu0 %v1071
        %v1186 = vpop.f32.mrf.mxu0
        %v1187 = vadd.f32 0.0, %v1186
        %1188 = vmatmul.f32.gmra.mxu0 %v1074
        %v1189 = vpop.f32.mrf.mxu0
        %v1190 = vadd.f32 0.0, %v1189
        %1191 = vmatmul.f32.gmra.mxu0 %v1077
        %v1192 = vpop.f32.mrf.mxu0
        %v1193 = vadd.f32 0.0, %v1192
        %1194 = vmatmul.f32.gmra.mxu0 %v1080
        %v1195 = vpop.f32.mrf.mxu0
        %v1196 = vadd.f32 0.0, %v1195
        %1197 = vmatmul.f32.gmra.mxu0 %v1083
        %v1198 = vpop.f32.mrf.mxu0
        %v1199 = vadd.f32 0.0, %v1198
        %1200 = vmatmul.f32.gmra.mxu0 %v1086
        %v1201 = vpop.f32.mrf.mxu0
        %v1202 = vadd.f32 0.0, %v1201
        %1203 = vmatmul.f32.gmra.mxu0 %v1089
        %v1204 = vpop.f32.mrf.mxu0
        %v1205 = vadd.f32 0.0, %v1204
        %1206 = vmatmul.f32.gmra.mxu0 %v1092
        %v1207 = vpop.f32.mrf.mxu0
        %v1208 = vadd.f32 0.0, %v1207
        %1209 = vmatmul.f32.gmra.mxu0 %v1095
        %v1210 = vpop.f32.mrf.mxu0
        %v1211 = vadd.f32 0.0, %v1210
        %1212 = vmatmul.f32.gmra.mxu0 %v1098
        %v1213 = vpop.f32.mrf.mxu0
        %v1214 = vadd.f32 0.0, %v1213
        %1215 = vmatmul.f32.gmra.mxu0 %v1101
        %v1216 = vpop.f32.mrf.mxu0
        %v1217 = vadd.f32 0.0, %v1216
        %1218 = vmatmul.f32.gmra.mxu0 %v1104
        %v1219 = vpop.f32.mrf.mxu0
        %v1220 = vadd.f32 0.0, %v1219
        %1221 = vmatmul.f32.gmra.mxu0 %v1107
        %v1222 = vpop.f32.mrf.mxu0
        %v1223 = vadd.f32 0.0, %v1222
        %1224 = vmatmul.f32.gmra.mxu0 %v1110
        %v1225 = vpop.f32.mrf.mxu0
        %v1226 = vadd.f32 0.0, %v1225
        %1227 = vmatmul.f32.gmra.mxu0 %v1113
        %v1228 = vpop.f32.mrf.mxu0
        %v1229 = vadd.f32 0.0, %v1228
        %1230 = vmatmul.f32.gmra.mxu0 %v1116
        %v1231 = vpop.f32.mrf.mxu0
        %v1232 = vadd.f32 0.0, %v1231
        %1233 = vdwg.mxu0
        %v1234 = vadd.f32 %v953, %v1139
        %v1235 = vadd.f32 %v954, %v1142
        %v1236 = vadd.f32 %v955, %v1145
        %v1237 = vadd.f32 %v956, %v1148
        %v1238 = vadd.f32 %v957, %v1151
        %v1239 = vadd.f32 %v958, %v1154
        %v1240 = vadd.f32 %v959, %v1157
        %v1241 = vadd.f32 %v960, %v1160
        %v1242 = vadd.f32 %v961, %v1163
        %v1243 = vadd.f32 %v962, %v1166
        %v1244 = vadd.f32 %v963, %v1169
        %v1245 = vadd.f32 %v964, %v1172
        %v1246 = vadd.f32 %v965, %v1175
        %v1247 = vadd.f32 %v966, %v1178
        %v1248 = vadd.f32 %v967, %v1181
        %v1249 = vadd.f32 %v968, %v1184
        %v1250 = vadd.f32 %v969, %v1187
        %v1251 = vadd.f32 %v970, %v1190
        %v1252 = vadd.f32 %v971, %v1193
        %v1253 = vadd.f32 %v972, %v1196
        %v1254 = vadd.f32 %v973, %v1199
        %v1255 = vadd.f32 %v974, %v1202
        %v1256 = vadd.f32 %v975, %v1205
        %v1257 = vadd.f32 %v976, %v1208
        %v1258 = vadd.f32 %v977, %v1211
        %v1259 = vadd.f32 %v978, %v1214
        %v1260 = vadd.f32 %v979, %v1217
        %v1261 = vadd.f32 %v980, %v1220
        %v1262 = vadd.f32 %v981, %v1223
        %v1263 = vadd.f32 %v982, %v1226
        %v1264 = vadd.f32 %v983, %v1229
        %v1265 = vadd.f32 %v984, %v1232
        %v1266 = vld [vmem:[%s987 + $0x1] sm:$0xff]
        %v1267 = vld [vmem:[%s987 + $0x9] sm:$0xff]
        %v1268 = vld [vmem:[%s987 + $0x19] sm:$0xff]
        %v1269 = vld [vmem:[%s987 + $0x21] sm:$0xff]
        %v1270 = vld [vmem:[%s987 + $0x31] sm:$0xff]
        %v1271 = vld [vmem:[%s987 + $0x39] sm:$0xff]
        %v1272 = vld [vmem:[%s987 + $0x49] sm:$0xff]
        %v1273 = vld [vmem:[%s987 + $0x51] sm:$0xff]
        %v1274 = vld [vmem:[%s987 + $0x61] sm:$0xff]
        %v1275 = vld [vmem:[%s987 + $0x69] sm:$0xff]
        %v1276 = vld [vmem:[%s987 + $0x79] sm:$0xff]
        %v1277 = vld [vmem:[%s987 + $0x81] sm:$0xff]
        %v1278 = vld [vmem:[%s987 + $0x91] sm:$0xff]
        %v1279 = vld [vmem:[%s987 + $0x99] sm:$0xff]
        %v1280 = vld [vmem:[%s987 + $0xa9] sm:$0xff]
        %v1281 = vld [vmem:[%s987 + $0xb1] sm:$0xff]
        %v1282 = vld [vmem:[%s987 + $0xc1] sm:$0xff]
        %v1283 = vld [vmem:[%s987 + $0xc9] sm:$0xff]
        %v1284 = vld [vmem:[%s987 + $0xd9] sm:$0xff]
        %v1285 = vld [vmem:[%s987 + $0xe1] sm:$0xff]
        %v1286 = vld [vmem:[%s987 + $0xf1] sm:$0xff]
        %v1287 = vld [vmem:[%s987 + $0xf9] sm:$0xff]
        %v1288 = vld [vmem:[%s987 + $0x109] sm:$0xff]
        %v1289 = vld [vmem:[%s987 + $0x111] sm:$0xff]
        %v1290 = vld [vmem:[%s987 + $0x121] sm:$0xff]
        %v1291 = vld [vmem:[%s987 + $0x129] sm:$0xff]
        %v1292 = vld [vmem:[%s987 + $0x139] sm:$0xff]
        %v1293 = vld [vmem:[%s987 + $0x141] sm:$0xff]
        %v1294 = vld [vmem:[%s987 + $0x151] sm:$0xff]
        %v1295 = vld [vmem:[%s987 + $0x159] sm:$0xff]
        %v1296 = vld [vmem:[%s987 + $0x169] sm:$0xff]
        %v1297 = vld [vmem:[%s987 + $0x171] sm:$0xff]
        %s1298 = scalar_lea.vmem %s1, 16
        %v1299 = vld [vmem:[%s1298] sm:$0xf]
        %v1301 = vsel %vm281, %v1266, 0
        %v1304 = vsel %vm281, %v1267, 0
        %v1307 = vsel %vm281, %v1268, 0
        %v1310 = vsel %vm281, %v1269, 0
        %v1313 = vsel %vm281, %v1270, 0
        %v1316 = vsel %vm281, %v1271, 0
        %v1319 = vsel %vm281, %v1272, 0
        %v1322 = vsel %vm281, %v1273, 0
        %v1325 = vsel %vm281, %v1274, 0
        %v1328 = vsel %vm281, %v1275, 0
        %v1331 = vsel %vm281, %v1276, 0
        %v1334 = vsel %vm281, %v1277, 0
        %v1337 = vsel %vm281, %v1278, 0
        %v1340 = vsel %vm281, %v1279, 0
        %v1343 = vsel %vm281, %v1280, 0
        %v1346 = vsel %vm281, %v1281, 0
        %v1349 = vsel %vm281, %v1282, 0
        %v1352 = vsel %vm281, %v1283, 0
        %v1355 = vsel %vm281, %v1284, 0
        %v1358 = vsel %vm281, %v1285, 0
        %v1361 = vsel %vm281, %v1286, 0
        %v1364 = vsel %vm281, %v1287, 0
        %v1367 = vsel %vm281, %v1288, 0
        %v1370 = vsel %vm281, %v1289, 0
        %v1373 = vsel %vm281, %v1290, 0
        %v1376 = vsel %vm281, %v1291, 0
        %v1379 = vsel %vm281, %v1292, 0
        %v1382 = vsel %vm281, %v1293, 0
        %v1385 = vsel %vm281, %v1294, 0
        %v1388 = vsel %vm281, %v1295, 0
        %v1391 = vsel %vm281, %v1296, 0
        %v1394 = vsel %vm281, %v1297, 0
        %v1397 = vsel %vm378, %v1299, 0
        %1399 = vmatpush.msra.mxu0 0.0
        %1400 = vmatpush.msra.mxu0 0.0
        %1401 = vmatpush.msra.mxu0 0.0
        %1402 = vmatpush.msra.mxu0 0.0
        %1403 = vmatpush.msra.mxu0 0.0
        %1404 = vmatpush.msra.mxu0 0.0
        %1405 = vmatpush.msra.mxu0 0.0
        %1406 = vmatpush.msra.mxu0 0.0
        %1407 = vmatpush.msra.mxu0 0.0
        %1408 = vmatpush.msra.mxu0 0.0
        %1409 = vmatpush.msra.mxu0 0.0
        %1410 = vmatpush.msra.mxu0 0.0
        %1411 = vmatpush.msra.mxu0 0.0
        %1412 = vmatpush.msra.mxu0 0.0
        %1413 = vmatpush.msra.mxu0 0.0
        %1414 = vmatpush.msra.mxu0 %v1397
        %1415 = vmatmul.f32.gmra.mxu0 %v1301
        %v1416 = vpop.f32.mrf.mxu0
        %v1417 = vadd.f32 0.0, %v1416
        %1418 = vmatmul.f32.gmra.mxu0 %v1304
        %v1419 = vpop.f32.mrf.mxu0
        %v1420 = vadd.f32 0.0, %v1419
        %1421 = vmatmul.f32.gmra.mxu0 %v1307
        %v1422 = vpop.f32.mrf.mxu0
        %v1423 = vadd.f32 0.0, %v1422
        %1424 = vmatmul.f32.gmra.mxu0 %v1310
        %v1425 = vpop.f32.mrf.mxu0
        %v1426 = vadd.f32 0.0, %v1425
        %1427 = vmatmul.f32.gmra.mxu0 %v1313
        %v1428 = vpop.f32.mrf.mxu0
        %v1429 = vadd.f32 0.0, %v1428
        %1430 = vmatmul.f32.gmra.mxu0 %v1316
        %v1431 = vpop.f32.mrf.mxu0
        %v1432 = vadd.f32 0.0, %v1431
        %1433 = vmatmul.f32.gmra.mxu0 %v1319
        %v1434 = vpop.f32.mrf.mxu0
        %v1435 = vadd.f32 0.0, %v1434
        %1436 = vmatmul.f32.gmra.mxu0 %v1322
        %v1437 = vpop.f32.mrf.mxu0
        %v1438 = vadd.f32 0.0, %v1437
        %1439 = vmatmul.f32.gmra.mxu0 %v1325
        %v1440 = vpop.f32.mrf.mxu0
        %v1441 = vadd.f32 0.0, %v1440
        %1442 = vmatmul.f32.gmra.mxu0 %v1328
        %v1443 = vpop.f32.mrf.mxu0
        %v1444 = vadd.f32 0.0, %v1443
        %1445 = vmatmul.f32.gmra.mxu0 %v1331
        %v1446 = vpop.f32.mrf.mxu0
        %v1447 = vadd.f32 0.0, %v1446
        %1448 = vmatmul.f32.gmra.mxu0 %v1334
        %v1449 = vpop.f32.mrf.mxu0
        %v1450 = vadd.f32 0.0, %v1449
        %1451 = vmatmul.f32.gmra.mxu0 %v1337
        %v1452 = vpop.f32.mrf.mxu0
        %v1453 = vadd.f32 0.0, %v1452
        %1454 = vmatmul.f32.gmra.mxu0 %v1340
        %v1455 = vpop.f32.mrf.mxu0
        %v1456 = vadd.f32 0.0, %v1455
        %1457 = vmatmul.f32.gmra.mxu0 %v1343
        %v1458 = vpop.f32.mrf.mxu0
        %v1459 = vadd.f32 0.0, %v1458
        %1460 = vmatmul.f32.gmra.mxu0 %v1346
        %v1461 = vpop.f32.mrf.mxu0
        %v1462 = vadd.f32 0.0, %v1461
        %1463 = vmatmul.f32.gmra.mxu0 %v1349
        %v1464 = vpop.f32.mrf.mxu0
        %v1465 = vadd.f32 0.0, %v1464
        %1466 = vmatmul.f32.gmra.mxu0 %v1352
        %v1467 = vpop.f32.mrf.mxu0
        %v1468 = vadd.f32 0.0, %v1467
        %1469 = vmatmul.f32.gmra.mxu0 %v1355
        %v1470 = vpop.f32.mrf.mxu0
        %v1471 = vadd.f32 0.0, %v1470
        %1472 = vmatmul.f32.gmra.mxu0 %v1358
        %v1473 = vpop.f32.mrf.mxu0
        %v1474 = vadd.f32 0.0, %v1473
        %1475 = vmatmul.f32.gmra.mxu0 %v1361
        %v1476 = vpop.f32.mrf.mxu0
        %v1477 = vadd.f32 0.0, %v1476
        %1478 = vmatmul.f32.gmra.mxu0 %v1364
        %v1479 = vpop.f32.mrf.mxu0
        %v1480 = vadd.f32 0.0, %v1479
        %1481 = vmatmul.f32.gmra.mxu0 %v1367
        %v1482 = vpop.f32.mrf.mxu0
        %v1483 = vadd.f32 0.0, %v1482
        %1484 = vmatmul.f32.gmra.mxu0 %v1370
        %v1485 = vpop.f32.mrf.mxu0
        %v1486 = vadd.f32 0.0, %v1485
        %1487 = vmatmul.f32.gmra.mxu0 %v1373
        %v1488 = vpop.f32.mrf.mxu0
        %v1489 = vadd.f32 0.0, %v1488
        %1490 = vmatmul.f32.gmra.mxu0 %v1376
        %v1491 = vpop.f32.mrf.mxu0
        %v1492 = vadd.f32 0.0, %v1491
        %1493 = vmatmul.f32.gmra.mxu0 %v1379
        %v1494 = vpop.f32.mrf.mxu0
        %v1495 = vadd.f32 0.0, %v1494
        %1496 = vmatmul.f32.gmra.mxu0 %v1382
        %v1497 = vpop.f32.mrf.mxu0
        %v1498 = vadd.f32 0.0, %v1497
        %1499 = vmatmul.f32.gmra.mxu0 %v1385
        %v1500 = vpop.f32.mrf.mxu0
        %v1501 = vadd.f32 0.0, %v1500
        %1502 = vmatmul.f32.gmra.mxu0 %v1388
        %v1503 = vpop.f32.mrf.mxu0
        %v1504 = vadd.f32 0.0, %v1503
        %1505 = vmatmul.f32.gmra.mxu0 %v1391
        %v1506 = vpop.f32.mrf.mxu0
        %v1507 = vadd.f32 0.0, %v1506
        %1508 = vmatmul.f32.gmra.mxu0 %v1394
        %v1509 = vpop.f32.mrf.mxu0
        %v1510 = vadd.f32 0.0, %v1509
        %1511 = vdwg.mxu0
        %v1512 = vadd.f32 %v1234, %v1417
        %v1513 = vadd.f32 %v1235, %v1420
        %v1514 = vadd.f32 %v1236, %v1423
        %v1515 = vadd.f32 %v1237, %v1426
        %v1516 = vadd.f32 %v1238, %v1429
        %v1517 = vadd.f32 %v1239, %v1432
        %v1518 = vadd.f32 %v1240, %v1435
        %v1519 = vadd.f32 %v1241, %v1438
        %v1520 = vadd.f32 %v1242, %v1441
        %v1521 = vadd.f32 %v1243, %v1444
        %v1522 = vadd.f32 %v1244, %v1447
        %v1523 = vadd.f32 %v1245, %v1450
        %v1524 = vadd.f32 %v1246, %v1453
        %v1525 = vadd.f32 %v1247, %v1456
        %v1526 = vadd.f32 %v1248, %v1459
        %v1527 = vadd.f32 %v1249, %v1462
        %v1528 = vadd.f32 %v1250, %v1465
        %v1529 = vadd.f32 %v1251, %v1468
        %v1530 = vadd.f32 %v1252, %v1471
        %v1531 = vadd.f32 %v1253, %v1474
        %v1532 = vadd.f32 %v1254, %v1477
        %v1533 = vadd.f32 %v1255, %v1480
        %v1534 = vadd.f32 %v1256, %v1483
        %v1535 = vadd.f32 %v1257, %v1486
        %v1536 = vadd.f32 %v1258, %v1489
        %v1537 = vadd.f32 %v1259, %v1492
        %v1538 = vadd.f32 %v1260, %v1495
        %v1539 = vadd.f32 %v1261, %v1498
        %v1540 = vadd.f32 %v1262, %v1501
        %v1541 = vadd.f32 %v1263, %v1504
        %v1542 = vadd.f32 %v1264, %v1507
        %v1543 = vadd.f32 %v1265, %v1510
        %v1544 = vld [vmem:[%s987 + $0x2] sm:$0xff]
        %v1545 = vld [vmem:[%s987 + $0xa] sm:$0xff]
        %v1546 = vld [vmem:[%s987 + $0x1a] sm:$0xff]
        %v1547 = vld [vmem:[%s987 + $0x22] sm:$0xff]
        %v1548 = vld [vmem:[%s987 + $0x32] sm:$0xff]
        %v1549 = vld [vmem:[%s987 + $0x3a] sm:$0xff]
        %v1550 = vld [vmem:[%s987 + $0x4a] sm:$0xff]
        %v1551 = vld [vmem:[%s987 + $0x52] sm:$0xff]
        %v1552 = vld [vmem:[%s987 + $0x62] sm:$0xff]
        %v1553 = vld [vmem:[%s987 + $0x6a] sm:$0xff]
        %v1554 = vld [vmem:[%s987 + $0x7a] sm:$0xff]
        %v1555 = vld [vmem:[%s987 + $0x82] sm:$0xff]
        %v1556 = vld [vmem:[%s987 + $0x92] sm:$0xff]
        %v1557 = vld [vmem:[%s987 + $0x9a] sm:$0xff]
        %v1558 = vld [vmem:[%s987 + $0xaa] sm:$0xff]
        %v1559 = vld [vmem:[%s987 + $0xb2] sm:$0xff]
        %v1560 = vld [vmem:[%s987 + $0xc2] sm:$0xff]
        %v1561 = vld [vmem:[%s987 + $0xca] sm:$0xff]
        %v1562 = vld [vmem:[%s987 + $0xda] sm:$0xff]
        %v1563 = vld [vmem:[%s987 + $0xe2] sm:$0xff]
        %v1564 = vld [vmem:[%s987 + $0xf2] sm:$0xff]
        %v1565 = vld [vmem:[%s987 + $0xfa] sm:$0xff]
        %v1566 = vld [vmem:[%s987 + $0x10a] sm:$0xff]
        %v1567 = vld [vmem:[%s987 + $0x112] sm:$0xff]
        %v1568 = vld [vmem:[%s987 + $0x122] sm:$0xff]
        %v1569 = vld [vmem:[%s987 + $0x12a] sm:$0xff]
        %v1570 = vld [vmem:[%s987 + $0x13a] sm:$0xff]
        %v1571 = vld [vmem:[%s987 + $0x142] sm:$0xff]
        %v1572 = vld [vmem:[%s987 + $0x152] sm:$0xff]
        %v1573 = vld [vmem:[%s987 + $0x15a] sm:$0xff]
        %v1574 = vld [vmem:[%s987 + $0x16a] sm:$0xff]
        %v1575 = vld [vmem:[%s987 + $0x172] sm:$0xff]
        %s1576 = scalar_lea.vmem %s1, 20
        %v1577 = vld [vmem:[%s1576] sm:$0xf]
        %v1579 = vsel %vm281, %v1544, 0
        %v1582 = vsel %vm281, %v1545, 0
        %v1585 = vsel %vm281, %v1546, 0
        %v1588 = vsel %vm281, %v1547, 0
        %v1591 = vsel %vm281, %v1548, 0
        %v1594 = vsel %vm281, %v1549, 0
        %v1597 = vsel %vm281, %v1550, 0
        %v1600 = vsel %vm281, %v1551, 0
        %v1603 = vsel %vm281, %v1552, 0
        %v1606 = vsel %vm281, %v1553, 0
        %v1609 = vsel %vm281, %v1554, 0
        %v1612 = vsel %vm281, %v1555, 0
        %v1615 = vsel %vm281, %v1556, 0
        %v1618 = vsel %vm281, %v1557, 0
        %v1621 = vsel %vm281, %v1558, 0
        %v1624 = vsel %vm281, %v1559, 0
        %v1627 = vsel %vm281, %v1560, 0
        %v1630 = vsel %vm281, %v1561, 0
        %v1633 = vsel %vm281, %v1562, 0
        %v1636 = vsel %vm281, %v1563, 0
        %v1639 = vsel %vm281, %v1564, 0
        %v1642 = vsel %vm281, %v1565, 0
        %v1645 = vsel %vm281, %v1566, 0
        %v1648 = vsel %vm281, %v1567, 0
        %v1651 = vsel %vm281, %v1568, 0
        %v1654 = vsel %vm281, %v1569, 0
        %v1657 = vsel %vm281, %v1570, 0
        %v1660 = vsel %vm281, %v1571, 0
        %v1663 = vsel %vm281, %v1572, 0
        %v1666 = vsel %vm281, %v1573, 0
        %v1669 = vsel %vm281, %v1574, 0
        %v1672 = vsel %vm281, %v1575, 0
        %v1675 = vsel %vm378, %v1577, 0
        %1677 = vmatpush.msra.mxu0 0.0
        %1678 = vmatpush.msra.mxu0 0.0
        %1679 = vmatpush.msra.mxu0 0.0
        %1680 = vmatpush.msra.mxu0 0.0
        %1681 = vmatpush.msra.mxu0 0.0
        %1682 = vmatpush.msra.mxu0 0.0
        %1683 = vmatpush.msra.mxu0 0.0
        %1684 = vmatpush.msra.mxu0 0.0
        %1685 = vmatpush.msra.mxu0 0.0
        %1686 = vmatpush.msra.mxu0 0.0
        %1687 = vmatpush.msra.mxu0 0.0
        %1688 = vmatpush.msra.mxu0 0.0
        %1689 = vmatpush.msra.mxu0 0.0
        %1690 = vmatpush.msra.mxu0 0.0
        %1691 = vmatpush.msra.mxu0 0.0
        %1692 = vmatpush.msra.mxu0 %v1675
        %1693 = vmatmul.f32.gmra.mxu0 %v1579
        %v1694 = vpop.f32.mrf.mxu0
        %v1695 = vadd.f32 0.0, %v1694
        %1696 = vmatmul.f32.gmra.mxu0 %v1582
        %v1697 = vpop.f32.mrf.mxu0
        %v1698 = vadd.f32 0.0, %v1697
        %1699 = vmatmul.f32.gmra.mxu0 %v1585
        %v1700 = vpop.f32.mrf.mxu0
        %v1701 = vadd.f32 0.0, %v1700
        %1702 = vmatmul.f32.gmra.mxu0 %v1588
        %v1703 = vpop.f32.mrf.mxu0
        %v1704 = vadd.f32 0.0, %v1703
        %1705 = vmatmul.f32.gmra.mxu0 %v1591
        %v1706 = vpop.f32.mrf.mxu0
        %v1707 = vadd.f32 0.0, %v1706
        %1708 = vmatmul.f32.gmra.mxu0 %v1594
        %v1709 = vpop.f32.mrf.mxu0
        %v1710 = vadd.f32 0.0, %v1709
        %1711 = vmatmul.f32.gmra.mxu0 %v1597
        %v1712 = vpop.f32.mrf.mxu0
        %v1713 = vadd.f32 0.0, %v1712
        %1714 = vmatmul.f32.gmra.mxu0 %v1600
        %v1715 = vpop.f32.mrf.mxu0
        %v1716 = vadd.f32 0.0, %v1715
        %1717 = vmatmul.f32.gmra.mxu0 %v1603
        %v1718 = vpop.f32.mrf.mxu0
        %v1719 = vadd.f32 0.0, %v1718
        %1720 = vmatmul.f32.gmra.mxu0 %v1606
        %v1721 = vpop.f32.mrf.mxu0
        %v1722 = vadd.f32 0.0, %v1721
        %1723 = vmatmul.f32.gmra.mxu0 %v1609
        %v1724 = vpop.f32.mrf.mxu0
        %v1725 = vadd.f32 0.0, %v1724
        %1726 = vmatmul.f32.gmra.mxu0 %v1612
        %v1727 = vpop.f32.mrf.mxu0
        %v1728 = vadd.f32 0.0, %v1727
        %1729 = vmatmul.f32.gmra.mxu0 %v1615
        %v1730 = vpop.f32.mrf.mxu0
        %v1731 = vadd.f32 0.0, %v1730
        %1732 = vmatmul.f32.gmra.mxu0 %v1618
        %v1733 = vpop.f32.mrf.mxu0
        %v1734 = vadd.f32 0.0, %v1733
        %1735 = vmatmul.f32.gmra.mxu0 %v1621
        %v1736 = vpop.f32.mrf.mxu0
        %v1737 = vadd.f32 0.0, %v1736
        %1738 = vmatmul.f32.gmra.mxu0 %v1624
        %v1739 = vpop.f32.mrf.mxu0
        %v1740 = vadd.f32 0.0, %v1739
        %1741 = vmatmul.f32.gmra.mxu0 %v1627
        %v1742 = vpop.f32.mrf.mxu0
        %v1743 = vadd.f32 0.0, %v1742
        %1744 = vmatmul.f32.gmra.mxu0 %v1630
        %v1745 = vpop.f32.mrf.mxu0
        %v1746 = vadd.f32 0.0, %v1745
        %1747 = vmatmul.f32.gmra.mxu0 %v1633
        %v1748 = vpop.f32.mrf.mxu0
        %v1749 = vadd.f32 0.0, %v1748
        %1750 = vmatmul.f32.gmra.mxu0 %v1636
        %v1751 = vpop.f32.mrf.mxu0
        %v1752 = vadd.f32 0.0, %v1751
        %1753 = vmatmul.f32.gmra.mxu0 %v1639
        %v1754 = vpop.f32.mrf.mxu0
        %v1755 = vadd.f32 0.0, %v1754
        %1756 = vmatmul.f32.gmra.mxu0 %v1642
        %v1757 = vpop.f32.mrf.mxu0
        %v1758 = vadd.f32 0.0, %v1757
        %1759 = vmatmul.f32.gmra.mxu0 %v1645
        %v1760 = vpop.f32.mrf.mxu0
        %v1761 = vadd.f32 0.0, %v1760
        %1762 = vmatmul.f32.gmra.mxu0 %v1648
        %v1763 = vpop.f32.mrf.mxu0
        %v1764 = vadd.f32 0.0, %v1763
        %1765 = vmatmul.f32.gmra.mxu0 %v1651
        %v1766 = vpop.f32.mrf.mxu0
        %v1767 = vadd.f32 0.0, %v1766
        %1768 = vmatmul.f32.gmra.mxu0 %v1654
        %v1769 = vpop.f32.mrf.mxu0
        %v1770 = vadd.f32 0.0, %v1769
        %1771 = vmatmul.f32.gmra.mxu0 %v1657
        %v1772 = vpop.f32.mrf.mxu0
        %v1773 = vadd.f32 0.0, %v1772
        %1774 = vmatmul.f32.gmra.mxu0 %v1660
        %v1775 = vpop.f32.mrf.mxu0
        %v1776 = vadd.f32 0.0, %v1775
        %1777 = vmatmul.f32.gmra.mxu0 %v1663
        %v1778 = vpop.f32.mrf.mxu0
        %v1779 = vadd.f32 0.0, %v1778
        %1780 = vmatmul.f32.gmra.mxu0 %v1666
        %v1781 = vpop.f32.mrf.mxu0
        %v1782 = vadd.f32 0.0, %v1781
        %1783 = vmatmul.f32.gmra.mxu0 %v1669
        %v1784 = vpop.f32.mrf.mxu0
        %v1785 = vadd.f32 0.0, %v1784
        %1786 = vmatmul.f32.gmra.mxu0 %v1672
        %v1787 = vpop.f32.mrf.mxu0
        %v1788 = vadd.f32 0.0, %v1787
        %1789 = vdwg.mxu0
        %v1790 = vadd.f32 %v1512, %v1695
        %v1791 = vadd.f32 %v1513, %v1698
        %v1792 = vadd.f32 %v1514, %v1701
        %v1793 = vadd.f32 %v1515, %v1704
        %v1794 = vadd.f32 %v1516, %v1707
        %v1795 = vadd.f32 %v1517, %v1710
        %v1796 = vadd.f32 %v1518, %v1713
        %v1797 = vadd.f32 %v1519, %v1716
        %v1798 = vadd.f32 %v1520, %v1719
        %v1799 = vadd.f32 %v1521, %v1722
        %v1800 = vadd.f32 %v1522, %v1725
        %v1801 = vadd.f32 %v1523, %v1728
        %v1802 = vadd.f32 %v1524, %v1731
        %v1803 = vadd.f32 %v1525, %v1734
        %v1804 = vadd.f32 %v1526, %v1737
        %v1805 = vadd.f32 %v1527, %v1740
        %v1806 = vadd.f32 %v1528, %v1743
        %v1807 = vadd.f32 %v1529, %v1746
        %v1808 = vadd.f32 %v1530, %v1749
        %v1809 = vadd.f32 %v1531, %v1752
        %v1810 = vadd.f32 %v1532, %v1755
        %v1811 = vadd.f32 %v1533, %v1758
        %v1812 = vadd.f32 %v1534, %v1761
        %v1813 = vadd.f32 %v1535, %v1764
        %v1814 = vadd.f32 %v1536, %v1767
        %v1815 = vadd.f32 %v1537, %v1770
        %v1816 = vadd.f32 %v1538, %v1773
        %v1817 = vadd.f32 %v1539, %v1776
        %v1818 = vadd.f32 %v1540, %v1779
        %v1819 = vadd.f32 %v1541, %v1782
        %v1820 = vadd.f32 %v1542, %v1785
        %v1821 = vadd.f32 %v1543, %v1788
        %s1822 = sadd.s32 %s211, 2
        %s1823 = smul.u32 %s1822, 24
        %s1824 = scalar_lea.vmem %s209, %s1823
        %v1825 = vld [vmem:[%s1824] sm:$0xff]
        %v1826 = vld [vmem:[%s1824 + $0x8] sm:$0xff]
        %v1827 = vld [vmem:[%s1824 + $0x18] sm:$0xff]
        %v1828 = vld [vmem:[%s1824 + $0x20] sm:$0xff]
        %v1829 = vld [vmem:[%s1824 + $0x30] sm:$0xff]
        %v1830 = vld [vmem:[%s1824 + $0x38] sm:$0xff]
        %v1831 = vld [vmem:[%s1824 + $0x48] sm:$0xff]
        %v1832 = vld [vmem:[%s1824 + $0x50] sm:$0xff]
        %v1833 = vld [vmem:[%s1824 + $0x60] sm:$0xff]
        %v1834 = vld [vmem:[%s1824 + $0x68] sm:$0xff]
        %v1835 = vld [vmem:[%s1824 + $0x78] sm:$0xff]
        %v1836 = vld [vmem:[%s1824 + $0x80] sm:$0xff]
        %v1837 = vld [vmem:[%s1824 + $0x90] sm:$0xff]
        %v1838 = vld [vmem:[%s1824 + $0x98] sm:$0xff]
        %v1839 = vld [vmem:[%s1824 + $0xa8] sm:$0xff]
        %v1840 = vld [vmem:[%s1824 + $0xb0] sm:$0xff]
        %v1841 = vld [vmem:[%s1824 + $0xc0] sm:$0xff]
        %v1842 = vld [vmem:[%s1824 + $0xc8] sm:$0xff]
        %v1843 = vld [vmem:[%s1824 + $0xd8] sm:$0xff]
        %v1844 = vld [vmem:[%s1824 + $0xe0] sm:$0xff]
        %v1845 = vld [vmem:[%s1824 + $0xf0] sm:$0xff]
        %v1846 = vld [vmem:[%s1824 + $0xf8] sm:$0xff]
        %v1847 = vld [vmem:[%s1824 + $0x108] sm:$0xff]
        %v1848 = vld [vmem:[%s1824 + $0x110] sm:$0xff]
        %v1849 = vld [vmem:[%s1824 + $0x120] sm:$0xff]
        %v1850 = vld [vmem:[%s1824 + $0x128] sm:$0xff]
        %v1851 = vld [vmem:[%s1824 + $0x138] sm:$0xff]
        %v1852 = vld [vmem:[%s1824 + $0x140] sm:$0xff]
        %v1853 = vld [vmem:[%s1824 + $0x150] sm:$0xff]
        %v1854 = vld [vmem:[%s1824 + $0x158] sm:$0xff]
        %v1855 = vld [vmem:[%s1824 + $0x168] sm:$0xff]
        %v1856 = vld [vmem:[%s1824 + $0x170] sm:$0xff]
        %s1857 = scalar_lea.vmem %s1, 24
        %v1858 = vld [vmem:[%s1857] sm:$0xf]
        %v1860 = vsel %vm281, %v1825, 0
        %v1863 = vsel %vm281, %v1826, 0
        %v1866 = vsel %vm281, %v1827, 0
        %v1869 = vsel %vm281, %v1828, 0
        %v1872 = vsel %vm281, %v1829, 0
        %v1875 = vsel %vm281, %v1830, 0
        %v1878 = vsel %vm281, %v1831, 0
        %v1881 = vsel %vm281, %v1832, 0
        %v1884 = vsel %vm281, %v1833, 0
        %v1887 = vsel %vm281, %v1834, 0
        %v1890 = vsel %vm281, %v1835, 0
        %v1893 = vsel %vm281, %v1836, 0
        %v1896 = vsel %vm281, %v1837, 0
        %v1899 = vsel %vm281, %v1838, 0
        %v1902 = vsel %vm281, %v1839, 0
        %v1905 = vsel %vm281, %v1840, 0
        %v1908 = vsel %vm281, %v1841, 0
        %v1911 = vsel %vm281, %v1842, 0
        %v1914 = vsel %vm281, %v1843, 0
        %v1917 = vsel %vm281, %v1844, 0
        %v1920 = vsel %vm281, %v1845, 0
        %v1923 = vsel %vm281, %v1846, 0
        %v1926 = vsel %vm281, %v1847, 0
        %v1929 = vsel %vm281, %v1848, 0
        %v1932 = vsel %vm281, %v1849, 0
        %v1935 = vsel %vm281, %v1850, 0
        %v1938 = vsel %vm281, %v1851, 0
        %v1941 = vsel %vm281, %v1852, 0
        %v1944 = vsel %vm281, %v1853, 0
        %v1947 = vsel %vm281, %v1854, 0
        %v1950 = vsel %vm281, %v1855, 0
        %v1953 = vsel %vm281, %v1856, 0
        %v1956 = vsel %vm378, %v1858, 0
        %1958 = vmatpush.msra.mxu0 0.0
        %1959 = vmatpush.msra.mxu0 0.0
        %1960 = vmatpush.msra.mxu0 0.0
        %1961 = vmatpush.msra.mxu0 0.0
        %1962 = vmatpush.msra.mxu0 0.0
        %1963 = vmatpush.msra.mxu0 0.0
        %1964 = vmatpush.msra.mxu0 0.0
        %1965 = vmatpush.msra.mxu0 0.0
        %1966 = vmatpush.msra.mxu0 0.0
        %1967 = vmatpush.msra.mxu0 0.0
        %1968 = vmatpush.msra.mxu0 0.0
        %1969 = vmatpush.msra.mxu0 0.0
        %1970 = vmatpush.msra.mxu0 0.0
        %1971 = vmatpush.msra.mxu0 0.0
        %1972 = vmatpush.msra.mxu0 0.0
        %1973 = vmatpush.msra.mxu0 %v1956
        %1974 = vmatmul.f32.gmra.mxu0 %v1860
        %v1975 = vpop.f32.mrf.mxu0
        %v1976 = vadd.f32 0.0, %v1975
        %1977 = vmatmul.f32.gmra.mxu0 %v1863
        %v1978 = vpop.f32.mrf.mxu0
        %v1979 = vadd.f32 0.0, %v1978
        %1980 = vmatmul.f32.gmra.mxu0 %v1866
        %v1981 = vpop.f32.mrf.mxu0
        %v1982 = vadd.f32 0.0, %v1981
        %1983 = vmatmul.f32.gmra.mxu0 %v1869
        %v1984 = vpop.f32.mrf.mxu0
        %v1985 = vadd.f32 0.0, %v1984
        %1986 = vmatmul.f32.gmra.mxu0 %v1872
        %v1987 = vpop.f32.mrf.mxu0
        %v1988 = vadd.f32 0.0, %v1987
        %1989 = vmatmul.f32.gmra.mxu0 %v1875
        %v1990 = vpop.f32.mrf.mxu0
        %v1991 = vadd.f32 0.0, %v1990
        %1992 = vmatmul.f32.gmra.mxu0 %v1878
        %v1993 = vpop.f32.mrf.mxu0
        %v1994 = vadd.f32 0.0, %v1993
        %1995 = vmatmul.f32.gmra.mxu0 %v1881
        %v1996 = vpop.f32.mrf.mxu0
        %v1997 = vadd.f32 0.0, %v1996
        %1998 = vmatmul.f32.gmra.mxu0 %v1884
        %v1999 = vpop.f32.mrf.mxu0
        %v2000 = vadd.f32 0.0, %v1999
        %2001 = vmatmul.f32.gmra.mxu0 %v1887
        %v2002 = vpop.f32.mrf.mxu0
        %v2003 = vadd.f32 0.0, %v2002
        %2004 = vmatmul.f32.gmra.mxu0 %v1890
        %v2005 = vpop.f32.mrf.mxu0
        %v2006 = vadd.f32 0.0, %v2005
        %2007 = vmatmul.f32.gmra.mxu0 %v1893
        %v2008 = vpop.f32.mrf.mxu0
        %v2009 = vadd.f32 0.0, %v2008
        %2010 = vmatmul.f32.gmra.mxu0 %v1896
        %v2011 = vpop.f32.mrf.mxu0
        %v2012 = vadd.f32 0.0, %v2011
        %2013 = vmatmul.f32.gmra.mxu0 %v1899
        %v2014 = vpop.f32.mrf.mxu0
        %v2015 = vadd.f32 0.0, %v2014
        %2016 = vmatmul.f32.gmra.mxu0 %v1902
        %v2017 = vpop.f32.mrf.mxu0
        %v2018 = vadd.f32 0.0, %v2017
        %2019 = vmatmul.f32.gmra.mxu0 %v1905
        %v2020 = vpop.f32.mrf.mxu0
        %v2021 = vadd.f32 0.0, %v2020
        %2022 = vmatmul.f32.gmra.mxu0 %v1908
        %v2023 = vpop.f32.mrf.mxu0
        %v2024 = vadd.f32 0.0, %v2023
        %2025 = vmatmul.f32.gmra.mxu0 %v1911
        %v2026 = vpop.f32.mrf.mxu0
        %v2027 = vadd.f32 0.0, %v2026
        %2028 = vmatmul.f32.gmra.mxu0 %v1914
        %v2029 = vpop.f32.mrf.mxu0
        %v2030 = vadd.f32 0.0, %v2029
        %2031 = vmatmul.f32.gmra.mxu0 %v1917
        %v2032 = vpop.f32.mrf.mxu0
        %v2033 = vadd.f32 0.0, %v2032
        %2034 = vmatmul.f32.gmra.mxu0 %v1920
        %v2035 = vpop.f32.mrf.mxu0
        %v2036 = vadd.f32 0.0, %v2035
        %2037 = vmatmul.f32.gmra.mxu0 %v1923
        %v2038 = vpop.f32.mrf.mxu0
        %v2039 = vadd.f32 0.0, %v2038
        %2040 = vmatmul.f32.gmra.mxu0 %v1926
        %v2041 = vpop.f32.mrf.mxu0
        %v2042 = vadd.f32 0.0, %v2041
        %2043 = vmatmul.f32.gmra.mxu0 %v1929
        %v2044 = vpop.f32.mrf.mxu0
        %v2045 = vadd.f32 0.0, %v2044
        %2046 = vmatmul.f32.gmra.mxu0 %v1932
        %v2047 = vpop.f32.mrf.mxu0
        %v2048 = vadd.f32 0.0, %v2047
        %2049 = vmatmul.f32.gmra.mxu0 %v1935
        %v2050 = vpop.f32.mrf.mxu0
        %v2051 = vadd.f32 0.0, %v2050
        %2052 = vmatmul.f32.gmra.mxu0 %v1938
        %v2053 = vpop.f32.mrf.mxu0
        %v2054 = vadd.f32 0.0, %v2053
        %2055 = vmatmul.f32.gmra.mxu0 %v1941
        %v2056 = vpop.f32.mrf.mxu0
        %v2057 = vadd.f32 0.0, %v2056
        %2058 = vmatmul.f32.gmra.mxu0 %v1944
        %v2059 = vpop.f32.mrf.mxu0
        %v2060 = vadd.f32 0.0, %v2059
        %2061 = vmatmul.f32.gmra.mxu0 %v1947
        %v2062 = vpop.f32.mrf.mxu0
        %v2063 = vadd.f32 0.0, %v2062
        %2064 = vmatmul.f32.gmra.mxu0 %v1950
        %v2065 = vpop.f32.mrf.mxu0
        %v2066 = vadd.f32 0.0, %v2065
        %2067 = vmatmul.f32.gmra.mxu0 %v1953
        %v2068 = vpop.f32.mrf.mxu0
        %v2069 = vadd.f32 0.0, %v2068
        %2070 = vdwg.mxu0
        %v2071 = vadd.f32 %v1790, %v1976
        %v2072 = vadd.f32 %v1791, %v1979
        %v2073 = vadd.f32 %v1792, %v1982
        %v2074 = vadd.f32 %v1793, %v1985
        %v2075 = vadd.f32 %v1794, %v1988
        %v2076 = vadd.f32 %v1795, %v1991
        %v2077 = vadd.f32 %v1796, %v1994
        %v2078 = vadd.f32 %v1797, %v1997
        %v2079 = vadd.f32 %v1798, %v2000
        %v2080 = vadd.f32 %v1799, %v2003
        %v2081 = vadd.f32 %v1800, %v2006
        %v2082 = vadd.f32 %v1801, %v2009
        %v2083 = vadd.f32 %v1802, %v2012
        %v2084 = vadd.f32 %v1803, %v2015
        %v2085 = vadd.f32 %v1804, %v2018
        %v2086 = vadd.f32 %v1805, %v2021
        %v2087 = vadd.f32 %v1806, %v2024
        %v2088 = vadd.f32 %v1807, %v2027
        %v2089 = vadd.f32 %v1808, %v2030
        %v2090 = vadd.f32 %v1809, %v2033
        %v2091 = vadd.f32 %v1810, %v2036
        %v2092 = vadd.f32 %v1811, %v2039
        %v2093 = vadd.f32 %v1812, %v2042
        %v2094 = vadd.f32 %v1813, %v2045
        %v2095 = vadd.f32 %v1814, %v2048
        %v2096 = vadd.f32 %v1815, %v2051
        %v2097 = vadd.f32 %v1816, %v2054
        %v2098 = vadd.f32 %v1817, %v2057
        %v2099 = vadd.f32 %v1818, %v2060
        %v2100 = vadd.f32 %v1819, %v2063
        %v2101 = vadd.f32 %v1820, %v2066
        %v2102 = vadd.f32 %v1821, %v2069
        %v2103 = vld [vmem:[%s1824 + $0x1] sm:$0xff]
        %v2104 = vld [vmem:[%s1824 + $0x9] sm:$0xff]
        %v2105 = vld [vmem:[%s1824 + $0x19] sm:$0xff]
        %v2106 = vld [vmem:[%s1824 + $0x21] sm:$0xff]
        %v2107 = vld [vmem:[%s1824 + $0x31] sm:$0xff]
        %v2108 = vld [vmem:[%s1824 + $0x39] sm:$0xff]
        %v2109 = vld [vmem:[%s1824 + $0x49] sm:$0xff]
        %v2110 = vld [vmem:[%s1824 + $0x51] sm:$0xff]
        %v2111 = vld [vmem:[%s1824 + $0x61] sm:$0xff]
        %v2112 = vld [vmem:[%s1824 + $0x69] sm:$0xff]
        %v2113 = vld [vmem:[%s1824 + $0x79] sm:$0xff]
        %v2114 = vld [vmem:[%s1824 + $0x81] sm:$0xff]
        %v2115 = vld [vmem:[%s1824 + $0x91] sm:$0xff]
        %v2116 = vld [vmem:[%s1824 + $0x99] sm:$0xff]
        %v2117 = vld [vmem:[%s1824 + $0xa9] sm:$0xff]
        %v2118 = vld [vmem:[%s1824 + $0xb1] sm:$0xff]
        %v2119 = vld [vmem:[%s1824 + $0xc1] sm:$0xff]
        %v2120 = vld [vmem:[%s1824 + $0xc9] sm:$0xff]
        %v2121 = vld [vmem:[%s1824 + $0xd9] sm:$0xff]
        %v2122 = vld [vmem:[%s1824 + $0xe1] sm:$0xff]
        %v2123 = vld [vmem:[%s1824 + $0xf1] sm:$0xff]
        %v2124 = vld [vmem:[%s1824 + $0xf9] sm:$0xff]
        %v2125 = vld [vmem:[%s1824 + $0x109] sm:$0xff]
        %v2126 = vld [vmem:[%s1824 + $0x111] sm:$0xff]
        %v2127 = vld [vmem:[%s1824 + $0x121] sm:$0xff]
        %v2128 = vld [vmem:[%s1824 + $0x129] sm:$0xff]
        %v2129 = vld [vmem:[%s1824 + $0x139] sm:$0xff]
        %v2130 = vld [vmem:[%s1824 + $0x141] sm:$0xff]
        %v2131 = vld [vmem:[%s1824 + $0x151] sm:$0xff]
        %v2132 = vld [vmem:[%s1824 + $0x159] sm:$0xff]
        %v2133 = vld [vmem:[%s1824 + $0x169] sm:$0xff]
        %v2134 = vld [vmem:[%s1824 + $0x171] sm:$0xff]
        %s2135 = scalar_lea.vmem %s1, 28
        %v2136 = vld [vmem:[%s2135] sm:$0xf]
        %v2138 = vsel %vm281, %v2103, 0
        %v2141 = vsel %vm281, %v2104, 0
        %v2144 = vsel %vm281, %v2105, 0
        %v2147 = vsel %vm281, %v2106, 0
        %v2150 = vsel %vm281, %v2107, 0
        %v2153 = vsel %vm281, %v2108, 0
        %v2156 = vsel %vm281, %v2109, 0
        %v2159 = vsel %vm281, %v2110, 0
        %v2162 = vsel %vm281, %v2111, 0
        %v2165 = vsel %vm281, %v2112, 0
        %v2168 = vsel %vm281, %v2113, 0
        %v2171 = vsel %vm281, %v2114, 0
        %v2174 = vsel %vm281, %v2115, 0
        %v2177 = vsel %vm281, %v2116, 0
        %v2180 = vsel %vm281, %v2117, 0
        %v2183 = vsel %vm281, %v2118, 0
        %v2186 = vsel %vm281, %v2119, 0
        %v2189 = vsel %vm281, %v2120, 0
        %v2192 = vsel %vm281, %v2121, 0
        %v2195 = vsel %vm281, %v2122, 0
        %v2198 = vsel %vm281, %v2123, 0
        %v2201 = vsel %vm281, %v2124, 0
        %v2204 = vsel %vm281, %v2125, 0
        %v2207 = vsel %vm281, %v2126, 0
        %v2210 = vsel %vm281, %v2127, 0
        %v2213 = vsel %vm281, %v2128, 0
        %v2216 = vsel %vm281, %v2129, 0
        %v2219 = vsel %vm281, %v2130, 0
        %v2222 = vsel %vm281, %v2131, 0
        %v2225 = vsel %vm281, %v2132, 0
        %v2228 = vsel %vm281, %v2133, 0
        %v2231 = vsel %vm281, %v2134, 0
        %v2234 = vsel %vm378, %v2136, 0
        %2236 = vmatpush.msra.mxu0 0.0
        %2237 = vmatpush.msra.mxu0 0.0
        %2238 = vmatpush.msra.mxu0 0.0
        %2239 = vmatpush.msra.mxu0 0.0
        %2240 = vmatpush.msra.mxu0 0.0
        %2241 = vmatpush.msra.mxu0 0.0
        %2242 = vmatpush.msra.mxu0 0.0
        %2243 = vmatpush.msra.mxu0 0.0
        %2244 = vmatpush.msra.mxu0 0.0
        %2245 = vmatpush.msra.mxu0 0.0
        %2246 = vmatpush.msra.mxu0 0.0
        %2247 = vmatpush.msra.mxu0 0.0
        %2248 = vmatpush.msra.mxu0 0.0
        %2249 = vmatpush.msra.mxu0 0.0
        %2250 = vmatpush.msra.mxu0 0.0
        %2251 = vmatpush.msra.mxu0 %v2234
        %2252 = vmatmul.f32.gmra.mxu0 %v2138
        %v2253 = vpop.f32.mrf.mxu0
        %v2254 = vadd.f32 0.0, %v2253
        %2255 = vmatmul.f32.gmra.mxu0 %v2141
        %v2256 = vpop.f32.mrf.mxu0
        %v2257 = vadd.f32 0.0, %v2256
        %2258 = vmatmul.f32.gmra.mxu0 %v2144
        %v2259 = vpop.f32.mrf.mxu0
        %v2260 = vadd.f32 0.0, %v2259
        %2261 = vmatmul.f32.gmra.mxu0 %v2147
        %v2262 = vpop.f32.mrf.mxu0
        %v2263 = vadd.f32 0.0, %v2262
        %2264 = vmatmul.f32.gmra.mxu0 %v2150
        %v2265 = vpop.f32.mrf.mxu0
        %v2266 = vadd.f32 0.0, %v2265
        %2267 = vmatmul.f32.gmra.mxu0 %v2153
        %v2268 = vpop.f32.mrf.mxu0
        %v2269 = vadd.f32 0.0, %v2268
        %2270 = vmatmul.f32.gmra.mxu0 %v2156
        %v2271 = vpop.f32.mrf.mxu0
        %v2272 = vadd.f32 0.0, %v2271
        %2273 = vmatmul.f32.gmra.mxu0 %v2159
        %v2274 = vpop.f32.mrf.mxu0
        %v2275 = vadd.f32 0.0, %v2274
        %2276 = vmatmul.f32.gmra.mxu0 %v2162
        %v2277 = vpop.f32.mrf.mxu0
        %v2278 = vadd.f32 0.0, %v2277
        %2279 = vmatmul.f32.gmra.mxu0 %v2165
        %v2280 = vpop.f32.mrf.mxu0
        %v2281 = vadd.f32 0.0, %v2280
        %2282 = vmatmul.f32.gmra.mxu0 %v2168
        %v2283 = vpop.f32.mrf.mxu0
        %v2284 = vadd.f32 0.0, %v2283
        %2285 = vmatmul.f32.gmra.mxu0 %v2171
        %v2286 = vpop.f32.mrf.mxu0
        %v2287 = vadd.f32 0.0, %v2286
        %2288 = vmatmul.f32.gmra.mxu0 %v2174
        %v2289 = vpop.f32.mrf.mxu0
        %v2290 = vadd.f32 0.0, %v2289
        %2291 = vmatmul.f32.gmra.mxu0 %v2177
        %v2292 = vpop.f32.mrf.mxu0
        %v2293 = vadd.f32 0.0, %v2292
        %2294 = vmatmul.f32.gmra.mxu0 %v2180
        %v2295 = vpop.f32.mrf.mxu0
        %v2296 = vadd.f32 0.0, %v2295
        %2297 = vmatmul.f32.gmra.mxu0 %v2183
        %v2298 = vpop.f32.mrf.mxu0
        %v2299 = vadd.f32 0.0, %v2298
        %2300 = vmatmul.f32.gmra.mxu0 %v2186
        %v2301 = vpop.f32.mrf.mxu0
        %v2302 = vadd.f32 0.0, %v2301
        %2303 = vmatmul.f32.gmra.mxu0 %v2189
        %v2304 = vpop.f32.mrf.mxu0
        %v2305 = vadd.f32 0.0, %v2304
        %2306 = vmatmul.f32.gmra.mxu0 %v2192
        %v2307 = vpop.f32.mrf.mxu0
        %v2308 = vadd.f32 0.0, %v2307
        %2309 = vmatmul.f32.gmra.mxu0 %v2195
        %v2310 = vpop.f32.mrf.mxu0
        %v2311 = vadd.f32 0.0, %v2310
        %2312 = vmatmul.f32.gmra.mxu0 %v2198
        %v2313 = vpop.f32.mrf.mxu0
        %v2314 = vadd.f32 0.0, %v2313
        %2315 = vmatmul.f32.gmra.mxu0 %v2201
        %v2316 = vpop.f32.mrf.mxu0
        %v2317 = vadd.f32 0.0, %v2316
        %2318 = vmatmul.f32.gmra.mxu0 %v2204
        %v2319 = vpop.f32.mrf.mxu0
        %v2320 = vadd.f32 0.0, %v2319
        %2321 = vmatmul.f32.gmra.mxu0 %v2207
        %v2322 = vpop.f32.mrf.mxu0
        %v2323 = vadd.f32 0.0, %v2322
        %2324 = vmatmul.f32.gmra.mxu0 %v2210
        %v2325 = vpop.f32.mrf.mxu0
        %v2326 = vadd.f32 0.0, %v2325
        %2327 = vmatmul.f32.gmra.mxu0 %v2213
        %v2328 = vpop.f32.mrf.mxu0
        %v2329 = vadd.f32 0.0, %v2328
        %2330 = vmatmul.f32.gmra.mxu0 %v2216
        %v2331 = vpop.f32.mrf.mxu0
        %v2332 = vadd.f32 0.0, %v2331
        %2333 = vmatmul.f32.gmra.mxu0 %v2219
        %v2334 = vpop.f32.mrf.mxu0
        %v2335 = vadd.f32 0.0, %v2334
        %2336 = vmatmul.f32.gmra.mxu0 %v2222
        %v2337 = vpop.f32.mrf.mxu0
        %v2338 = vadd.f32 0.0, %v2337
        %2339 = vmatmul.f32.gmra.mxu0 %v2225
        %v2340 = vpop.f32.mrf.mxu0
        %v2341 = vadd.f32 0.0, %v2340
        %2342 = vmatmul.f32.gmra.mxu0 %v2228
        %v2343 = vpop.f32.mrf.mxu0
        %v2344 = vadd.f32 0.0, %v2343
        %2345 = vmatmul.f32.gmra.mxu0 %v2231
        %v2346 = vpop.f32.mrf.mxu0
        %v2347 = vadd.f32 0.0, %v2346
        %2348 = vdwg.mxu0
        %v2349 = vadd.f32 %v2071, %v2254
        %v2350 = vadd.f32 %v2072, %v2257
        %v2351 = vadd.f32 %v2073, %v2260
        %v2352 = vadd.f32 %v2074, %v2263
        %v2353 = vadd.f32 %v2075, %v2266
        %v2354 = vadd.f32 %v2076, %v2269
        %v2355 = vadd.f32 %v2077, %v2272
        %v2356 = vadd.f32 %v2078, %v2275
        %v2357 = vadd.f32 %v2079, %v2278
        %v2358 = vadd.f32 %v2080, %v2281
        %v2359 = vadd.f32 %v2081, %v2284
        %v2360 = vadd.f32 %v2082, %v2287
        %v2361 = vadd.f32 %v2083, %v2290
        %v2362 = vadd.f32 %v2084, %v2293
        %v2363 = vadd.f32 %v2085, %v2296
        %v2364 = vadd.f32 %v2086, %v2299
        %v2365 = vadd.f32 %v2087, %v2302
        %v2366 = vadd.f32 %v2088, %v2305
        %v2367 = vadd.f32 %v2089, %v2308
        %v2368 = vadd.f32 %v2090, %v2311
        %v2369 = vadd.f32 %v2091, %v2314
        %v2370 = vadd.f32 %v2092, %v2317
        %v2371 = vadd.f32 %v2093, %v2320
        %v2372 = vadd.f32 %v2094, %v2323
        %v2373 = vadd.f32 %v2095, %v2326
        %v2374 = vadd.f32 %v2096, %v2329
        %v2375 = vadd.f32 %v2097, %v2332
        %v2376 = vadd.f32 %v2098, %v2335
        %v2377 = vadd.f32 %v2099, %v2338
        %v2378 = vadd.f32 %v2100, %v2341
        %v2379 = vadd.f32 %v2101, %v2344
        %v2380 = vadd.f32 %v2102, %v2347
        %v2381 = vld [vmem:[%s1824 + $0x2] sm:$0xff]
        %v2382 = vld [vmem:[%s1824 + $0xa] sm:$0xff]
        %v2383 = vld [vmem:[%s1824 + $0x1a] sm:$0xff]
        %v2384 = vld [vmem:[%s1824 + $0x22] sm:$0xff]
        %v2385 = vld [vmem:[%s1824 + $0x32] sm:$0xff]
        %v2386 = vld [vmem:[%s1824 + $0x3a] sm:$0xff]
        %v2387 = vld [vmem:[%s1824 + $0x4a] sm:$0xff]
        %v2388 = vld [vmem:[%s1824 + $0x52] sm:$0xff]
        %v2389 = vld [vmem:[%s1824 + $0x62] sm:$0xff]
        %v2390 = vld [vmem:[%s1824 + $0x6a] sm:$0xff]
        %v2391 = vld [vmem:[%s1824 + $0x7a] sm:$0xff]
        %v2392 = vld [vmem:[%s1824 + $0x82] sm:$0xff]
        %v2393 = vld [vmem:[%s1824 + $0x92] sm:$0xff]
        %v2394 = vld [vmem:[%s1824 + $0x9a] sm:$0xff]
        %v2395 = vld [vmem:[%s1824 + $0xaa] sm:$0xff]
        %v2396 = vld [vmem:[%s1824 + $0xb2] sm:$0xff]
        %v2397 = vld [vmem:[%s1824 + $0xc2] sm:$0xff]
        %v2398 = vld [vmem:[%s1824 + $0xca] sm:$0xff]
        %v2399 = vld [vmem:[%s1824 + $0xda] sm:$0xff]
        %v2400 = vld [vmem:[%s1824 + $0xe2] sm:$0xff]
        %v2401 = vld [vmem:[%s1824 + $0xf2] sm:$0xff]
        %v2402 = vld [vmem:[%s1824 + $0xfa] sm:$0xff]
        %v2403 = vld [vmem:[%s1824 + $0x10a] sm:$0xff]
        %v2404 = vld [vmem:[%s1824 + $0x112] sm:$0xff]
        %v2405 = vld [vmem:[%s1824 + $0x122] sm:$0xff]
        %v2406 = vld [vmem:[%s1824 + $0x12a] sm:$0xff]
        %v2407 = vld [vmem:[%s1824 + $0x13a] sm:$0xff]
        %v2408 = vld [vmem:[%s1824 + $0x142] sm:$0xff]
        %v2409 = vld [vmem:[%s1824 + $0x152] sm:$0xff]
        %v2410 = vld [vmem:[%s1824 + $0x15a] sm:$0xff]
        %v2411 = vld [vmem:[%s1824 + $0x16a] sm:$0xff]
        %v2412 = vld [vmem:[%s1824 + $0x172] sm:$0xff]
        %s2413 = scalar_lea.vmem %s1, 32
        %v2414 = vld [vmem:[%s2413] sm:$0xf]
        %v2416 = vsel %vm281, %v2381, 0
        %v2419 = vsel %vm281, %v2382, 0
        %v2422 = vsel %vm281, %v2383, 0
        %v2425 = vsel %vm281, %v2384, 0
        %v2428 = vsel %vm281, %v2385, 0
        %v2431 = vsel %vm281, %v2386, 0
        %v2434 = vsel %vm281, %v2387, 0
        %v2437 = vsel %vm281, %v2388, 0
        %v2440 = vsel %vm281, %v2389, 0
        %v2443 = vsel %vm281, %v2390, 0
        %v2446 = vsel %vm281, %v2391, 0
        %v2449 = vsel %vm281, %v2392, 0
        %v2452 = vsel %vm281, %v2393, 0
        %v2455 = vsel %vm281, %v2394, 0
        %v2458 = vsel %vm281, %v2395, 0
        %v2461 = vsel %vm281, %v2396, 0
        %v2464 = vsel %vm281, %v2397, 0
        %v2467 = vsel %vm281, %v2398, 0
        %v2470 = vsel %vm281, %v2399, 0
        %v2473 = vsel %vm281, %v2400, 0
        %v2476 = vsel %vm281, %v2401, 0
        %v2479 = vsel %vm281, %v2402, 0
        %v2482 = vsel %vm281, %v2403, 0
        %v2485 = vsel %vm281, %v2404, 0
        %v2488 = vsel %vm281, %v2405, 0
        %v2491 = vsel %vm281, %v2406, 0
        %v2494 = vsel %vm281, %v2407, 0
        %v2497 = vsel %vm281, %v2408, 0
        %v2500 = vsel %vm281, %v2409, 0
        %v2503 = vsel %vm281, %v2410, 0
        %v2506 = vsel %vm281, %v2411, 0
        %v2509 = vsel %vm281, %v2412, 0
        %v2512 = vsel %vm378, %v2414, 0
        %2514 = vmatpush.msra.mxu0 0.0
        %2515 = vmatpush.msra.mxu0 0.0
        %2516 = vmatpush.msra.mxu0 0.0
        %2517 = vmatpush.msra.mxu0 0.0
        %2518 = vmatpush.msra.mxu0 0.0
        %2519 = vmatpush.msra.mxu0 0.0
        %2520 = vmatpush.msra.mxu0 0.0
        %2521 = vmatpush.msra.mxu0 0.0
        %2522 = vmatpush.msra.mxu0 0.0
        %2523 = vmatpush.msra.mxu0 0.0
        %2524 = vmatpush.msra.mxu0 0.0
        %2525 = vmatpush.msra.mxu0 0.0
        %2526 = vmatpush.msra.mxu0 0.0
        %2527 = vmatpush.msra.mxu0 0.0
        %2528 = vmatpush.msra.mxu0 0.0
        %2529 = vmatpush.msra.mxu0 %v2512
        %2530 = vmatmul.f32.gmra.mxu0 %v2416
        %v2531 = vpop.f32.mrf.mxu0
        %v2532 = vadd.f32 0.0, %v2531
        %2533 = vmatmul.f32.gmra.mxu0 %v2419
        %v2534 = vpop.f32.mrf.mxu0
        %v2535 = vadd.f32 0.0, %v2534
        %2536 = vmatmul.f32.gmra.mxu0 %v2422
        %v2537 = vpop.f32.mrf.mxu0
        %v2538 = vadd.f32 0.0, %v2537
        %2539 = vmatmul.f32.gmra.mxu0 %v2425
        %v2540 = vpop.f32.mrf.mxu0
        %v2541 = vadd.f32 0.0, %v2540
        %2542 = vmatmul.f32.gmra.mxu0 %v2428
        %v2543 = vpop.f32.mrf.mxu0
        %v2544 = vadd.f32 0.0, %v2543
        %2545 = vmatmul.f32.gmra.mxu0 %v2431
        %v2546 = vpop.f32.mrf.mxu0
        %v2547 = vadd.f32 0.0, %v2546
        %2548 = vmatmul.f32.gmra.mxu0 %v2434
        %v2549 = vpop.f32.mrf.mxu0
        %v2550 = vadd.f32 0.0, %v2549
        %2551 = vmatmul.f32.gmra.mxu0 %v2437
        %v2552 = vpop.f32.mrf.mxu0
        %v2553 = vadd.f32 0.0, %v2552
        %2554 = vmatmul.f32.gmra.mxu0 %v2440
        %v2555 = vpop.f32.mrf.mxu0
        %v2556 = vadd.f32 0.0, %v2555
        %2557 = vmatmul.f32.gmra.mxu0 %v2443
        %v2558 = vpop.f32.mrf.mxu0
        %v2559 = vadd.f32 0.0, %v2558
        %2560 = vmatmul.f32.gmra.mxu0 %v2446
        %v2561 = vpop.f32.mrf.mxu0
        %v2562 = vadd.f32 0.0, %v2561
        %2563 = vmatmul.f32.gmra.mxu0 %v2449
        %v2564 = vpop.f32.mrf.mxu0
        %v2565 = vadd.f32 0.0, %v2564
        %2566 = vmatmul.f32.gmra.mxu0 %v2452
        %v2567 = vpop.f32.mrf.mxu0
        %v2568 = vadd.f32 0.0, %v2567
        %2569 = vmatmul.f32.gmra.mxu0 %v2455
        %v2570 = vpop.f32.mrf.mxu0
        %v2571 = vadd.f32 0.0, %v2570
        %2572 = vmatmul.f32.gmra.mxu0 %v2458
        %v2573 = vpop.f32.mrf.mxu0
        %v2574 = vadd.f32 0.0, %v2573
        %2575 = vmatmul.f32.gmra.mxu0 %v2461
        %v2576 = vpop.f32.mrf.mxu0
        %v2577 = vadd.f32 0.0, %v2576
        %2578 = vmatmul.f32.gmra.mxu0 %v2464
        %v2579 = vpop.f32.mrf.mxu0
        %v2580 = vadd.f32 0.0, %v2579
        %2581 = vmatmul.f32.gmra.mxu0 %v2467
        %v2582 = vpop.f32.mrf.mxu0
        %v2583 = vadd.f32 0.0, %v2582
        %2584 = vmatmul.f32.gmra.mxu0 %v2470
        %v2585 = vpop.f32.mrf.mxu0
        %v2586 = vadd.f32 0.0, %v2585
        %2587 = vmatmul.f32.gmra.mxu0 %v2473
        %v2588 = vpop.f32.mrf.mxu0
        %v2589 = vadd.f32 0.0, %v2588
        %2590 = vmatmul.f32.gmra.mxu0 %v2476
        %v2591 = vpop.f32.mrf.mxu0
        %v2592 = vadd.f32 0.0, %v2591
        %2593 = vmatmul.f32.gmra.mxu0 %v2479
        %v2594 = vpop.f32.mrf.mxu0
        %v2595 = vadd.f32 0.0, %v2594
        %2596 = vmatmul.f32.gmra.mxu0 %v2482
        %v2597 = vpop.f32.mrf.mxu0
        %v2598 = vadd.f32 0.0, %v2597
        %2599 = vmatmul.f32.gmra.mxu0 %v2485
        %v2600 = vpop.f32.mrf.mxu0
        %v2601 = vadd.f32 0.0, %v2600
        %2602 = vmatmul.f32.gmra.mxu0 %v2488
        %v2603 = vpop.f32.mrf.mxu0
        %v2604 = vadd.f32 0.0, %v2603
        %2605 = vmatmul.f32.gmra.mxu0 %v2491
        %v2606 = vpop.f32.mrf.mxu0
        %v2607 = vadd.f32 0.0, %v2606
        %2608 = vmatmul.f32.gmra.mxu0 %v2494
        %v2609 = vpop.f32.mrf.mxu0
        %v2610 = vadd.f32 0.0, %v2609
        %2611 = vmatmul.f32.gmra.mxu0 %v2497
        %v2612 = vpop.f32.mrf.mxu0
        %v2613 = vadd.f32 0.0, %v2612
        %2614 = vmatmul.f32.gmra.mxu0 %v2500
        %v2615 = vpop.f32.mrf.mxu0
        %v2616 = vadd.f32 0.0, %v2615
        %2617 = vmatmul.f32.gmra.mxu0 %v2503
        %v2618 = vpop.f32.mrf.mxu0
        %v2619 = vadd.f32 0.0, %v2618
        %2620 = vmatmul.f32.gmra.mxu0 %v2506
        %v2621 = vpop.f32.mrf.mxu0
        %v2622 = vadd.f32 0.0, %v2621
        %2623 = vmatmul.f32.gmra.mxu0 %v2509
        %v2624 = vpop.f32.mrf.mxu0
        %v2625 = vadd.f32 0.0, %v2624
        %2626 = vdwg.mxu0
        %v2627 = vadd.f32 %v2349, %v2532
        %v2628 = vadd.f32 %v2350, %v2535
        %v2629 = vadd.f32 %v2351, %v2538
        %v2630 = vadd.f32 %v2352, %v2541
        %v2631 = vadd.f32 %v2353, %v2544
        %v2632 = vadd.f32 %v2354, %v2547
        %v2633 = vadd.f32 %v2355, %v2550
        %v2634 = vadd.f32 %v2356, %v2553
        %v2635 = vadd.f32 %v2357, %v2556
        %v2636 = vadd.f32 %v2358, %v2559
        %v2637 = vadd.f32 %v2359, %v2562
        %v2638 = vadd.f32 %v2360, %v2565
        %v2639 = vadd.f32 %v2361, %v2568
        %v2640 = vadd.f32 %v2362, %v2571
        %v2641 = vadd.f32 %v2363, %v2574
        %v2642 = vadd.f32 %v2364, %v2577
        %v2643 = vadd.f32 %v2365, %v2580
        %v2644 = vadd.f32 %v2366, %v2583
        %v2645 = vadd.f32 %v2367, %v2586
        %v2646 = vadd.f32 %v2368, %v2589
        %v2647 = vadd.f32 %v2369, %v2592
        %v2648 = vadd.f32 %v2370, %v2595
        %v2649 = vadd.f32 %v2371, %v2598
        %v2650 = vadd.f32 %v2372, %v2601
        %v2651 = vadd.f32 %v2373, %v2604
        %v2652 = vadd.f32 %v2374, %v2607
        %v2653 = vadd.f32 %v2375, %v2610
        %v2654 = vadd.f32 %v2376, %v2613
        %v2655 = vadd.f32 %v2377, %v2616
        %v2656 = vadd.f32 %v2378, %v2619
        %v2657 = vadd.f32 %v2379, %v2622
        %v2658 = vadd.f32 %v2380, %v2625
        %v2659 = vld [vmem:[%s2] sm:$0x1]
        %v2661 = vperm.slane %v2659, 0
        %v2663 = vadd.f32 %v2627, %v2661
        %v2664 = vadd.f32 %v2628, %v2661
        %v2665 = vadd.f32 %v2629, %v2661
        %v2666 = vadd.f32 %v2630, %v2661
        %v2667 = vadd.f32 %v2631, %v2661
        %v2668 = vadd.f32 %v2632, %v2661
        %v2669 = vadd.f32 %v2633, %v2661
        %v2670 = vadd.f32 %v2634, %v2661
        %v2671 = vadd.f32 %v2635, %v2661
        %v2672 = vadd.f32 %v2636, %v2661
        %v2673 = vadd.f32 %v2637, %v2661
        %v2674 = vadd.f32 %v2638, %v2661
        %v2675 = vadd.f32 %v2639, %v2661
        %v2676 = vadd.f32 %v2640, %v2661
        %v2677 = vadd.f32 %v2641, %v2661
        %v2678 = vadd.f32 %v2642, %v2661
        %v2679 = vadd.f32 %v2643, %v2661
        %v2680 = vadd.f32 %v2644, %v2661
        %v2681 = vadd.f32 %v2645, %v2661
        %v2682 = vadd.f32 %v2646, %v2661
        %v2683 = vadd.f32 %v2647, %v2661
        %v2684 = vadd.f32 %v2648, %v2661
        %v2685 = vadd.f32 %v2649, %v2661
        %v2686 = vadd.f32 %v2650, %v2661
        %v2687 = vadd.f32 %v2651, %v2661
        %v2688 = vadd.f32 %v2652, %v2661
        %v2689 = vadd.f32 %v2653, %v2661
        %v2690 = vadd.f32 %v2654, %v2661
        %v2691 = vadd.f32 %v2655, %v2661
        %v2692 = vadd.f32 %v2656, %v2661
        %v2693 = vadd.f32 %v2657, %v2661
        %v2694 = vadd.f32 %v2658, %v2661
        %vm2695 = vcmp.gt.f32.partialorder %v2663, 0.0
        %vm2696 = vcmp.gt.f32.partialorder %v2664, 0.0
        %vm2697 = vcmp.gt.f32.partialorder %v2665, 0.0
        %vm2698 = vcmp.gt.f32.partialorder %v2666, 0.0
        %vm2699 = vcmp.gt.f32.partialorder %v2667, 0.0
        %vm2700 = vcmp.gt.f32.partialorder %v2668, 0.0
        %vm2701 = vcmp.gt.f32.partialorder %v2669, 0.0
        %vm2702 = vcmp.gt.f32.partialorder %v2670, 0.0
        %vm2703 = vcmp.gt.f32.partialorder %v2671, 0.0
        %vm2704 = vcmp.gt.f32.partialorder %v2672, 0.0
        %vm2705 = vcmp.gt.f32.partialorder %v2673, 0.0
        %vm2706 = vcmp.gt.f32.partialorder %v2674, 0.0
        %vm2707 = vcmp.gt.f32.partialorder %v2675, 0.0
        %vm2708 = vcmp.gt.f32.partialorder %v2676, 0.0
        %vm2709 = vcmp.gt.f32.partialorder %v2677, 0.0
        %vm2710 = vcmp.gt.f32.partialorder %v2678, 0.0
        %vm2711 = vcmp.gt.f32.partialorder %v2679, 0.0
        %vm2712 = vcmp.gt.f32.partialorder %v2680, 0.0
        %vm2713 = vcmp.gt.f32.partialorder %v2681, 0.0
        %vm2714 = vcmp.gt.f32.partialorder %v2682, 0.0
        %vm2715 = vcmp.gt.f32.partialorder %v2683, 0.0
        %vm2716 = vcmp.gt.f32.partialorder %v2684, 0.0
        %vm2717 = vcmp.gt.f32.partialorder %v2685, 0.0
        %vm2718 = vcmp.gt.f32.partialorder %v2686, 0.0
        %vm2719 = vcmp.gt.f32.partialorder %v2687, 0.0
        %vm2720 = vcmp.gt.f32.partialorder %v2688, 0.0
        %vm2721 = vcmp.gt.f32.partialorder %v2689, 0.0
        %vm2722 = vcmp.gt.f32.partialorder %v2690, 0.0
        %vm2723 = vcmp.gt.f32.partialorder %v2691, 0.0
        %vm2724 = vcmp.gt.f32.partialorder %v2692, 0.0
        %vm2725 = vcmp.gt.f32.partialorder %v2693, 0.0
        %vm2726 = vcmp.gt.f32.partialorder %v2694, 0.0
        %v2727 = vld [vmem:[%s3] sm:$0x1]
        %v2729 = vperm.slane %v2727, 0
        %v2731 = vmul.f32 %v2729, %v2663
        %v2732 = vmul.f32 %v2729, %v2664
        %v2733 = vmul.f32 %v2729, %v2665
        %v2734 = vmul.f32 %v2729, %v2666
        %v2735 = vmul.f32 %v2729, %v2667
        %v2736 = vmul.f32 %v2729, %v2668
        %v2737 = vmul.f32 %v2729, %v2669
        %v2738 = vmul.f32 %v2729, %v2670
        %v2739 = vmul.f32 %v2729, %v2671
        %v2740 = vmul.f32 %v2729, %v2672
        %v2741 = vmul.f32 %v2729, %v2673
        %v2742 = vmul.f32 %v2729, %v2674
        %v2743 = vmul.f32 %v2729, %v2675
        %v2744 = vmul.f32 %v2729, %v2676
        %v2745 = vmul.f32 %v2729, %v2677
        %v2746 = vmul.f32 %v2729, %v2678
        %v2747 = vmul.f32 %v2729, %v2679
        %v2748 = vmul.f32 %v2729, %v2680
        %v2749 = vmul.f32 %v2729, %v2681
        %v2750 = vmul.f32 %v2729, %v2682
        %v2751 = vmul.f32 %v2729, %v2683
        %v2752 = vmul.f32 %v2729, %v2684
        %v2753 = vmul.f32 %v2729, %v2685
        %v2754 = vmul.f32 %v2729, %v2686
        %v2755 = vmul.f32 %v2729, %v2687
        %v2756 = vmul.f32 %v2729, %v2688
        %v2757 = vmul.f32 %v2729, %v2689
        %v2758 = vmul.f32 %v2729, %v2690
        %v2759 = vmul.f32 %v2729, %v2691
        %v2760 = vmul.f32 %v2729, %v2692
        %v2761 = vmul.f32 %v2729, %v2693
        %v2762 = vmul.f32 %v2729, %v2694
        %v2763 = vsel %vm2695, %v2663, %v2731
        %v2764 = vsel %vm2696, %v2664, %v2732
        %v2765 = vsel %vm2697, %v2665, %v2733
        %v2766 = vsel %vm2698, %v2666, %v2734
        %v2767 = vsel %vm2699, %v2667, %v2735
        %v2768 = vsel %vm2700, %v2668, %v2736
        %v2769 = vsel %vm2701, %v2669, %v2737
        %v2770 = vsel %vm2702, %v2670, %v2738
        %v2771 = vsel %vm2703, %v2671, %v2739
        %v2772 = vsel %vm2704, %v2672, %v2740
        %v2773 = vsel %vm2705, %v2673, %v2741
        %v2774 = vsel %vm2706, %v2674, %v2742
        %v2775 = vsel %vm2707, %v2675, %v2743
        %v2776 = vsel %vm2708, %v2676, %v2744
        %v2777 = vsel %vm2709, %v2677, %v2745
        %v2778 = vsel %vm2710, %v2678, %v2746
        %v2779 = vsel %vm2711, %v2679, %v2747
        %v2780 = vsel %vm2712, %v2680, %v2748
        %v2781 = vsel %vm2713, %v2681, %v2749
        %v2782 = vsel %vm2714, %v2682, %v2750
        %v2783 = vsel %vm2715, %v2683, %v2751
        %v2784 = vsel %vm2716, %v2684, %v2752
        %v2785 = vsel %vm2717, %v2685, %v2753
        %v2786 = vsel %vm2718, %v2686, %v2754
        %v2787 = vsel %vm2719, %v2687, %v2755
        %v2788 = vsel %vm2720, %v2688, %v2756
        %v2789 = vsel %vm2721, %v2689, %v2757
        %v2790 = vsel %vm2722, %v2690, %v2758
        %v2791 = vsel %vm2723, %v2691, %v2759
        %v2792 = vsel %vm2724, %v2692, %v2760
        %v2793 = vsel %vm2725, %v2693, %v2761
        %v2794 = vsel %vm2726, %v2694, %v2762
        %2795 = vst [vmem:[%s204] sm:$0xff] %v2763
        %2796 = vst [vmem:[%s204 + $0x8] sm:$0xff] %v2764
        %2797 = vst [vmem:[%s204 + $0x10] sm:$0xff] %v2765
        %2798 = vst [vmem:[%s204 + $0x18] sm:$0xff] %v2766
        %2799 = vst [vmem:[%s204 + $0x20] sm:$0xff] %v2767
        %2800 = vst [vmem:[%s204 + $0x28] sm:$0xff] %v2768
        %2801 = vst [vmem:[%s204 + $0x30] sm:$0xff] %v2769
        %2802 = vst [vmem:[%s204 + $0x38] sm:$0xff] %v2770
        %2803 = vst [vmem:[%s204 + $0x40] sm:$0xff] %v2771
        %2804 = vst [vmem:[%s204 + $0x48] sm:$0xff] %v2772
        %2805 = vst [vmem:[%s204 + $0x50] sm:$0xff] %v2773
        %2806 = vst [vmem:[%s204 + $0x58] sm:$0xff] %v2774
        %2807 = vst [vmem:[%s204 + $0x60] sm:$0xff] %v2775
        %2808 = vst [vmem:[%s204 + $0x68] sm:$0xff] %v2776
        %2809 = vst [vmem:[%s204 + $0x70] sm:$0xff] %v2777
        %2810 = vst [vmem:[%s204 + $0x78] sm:$0xff] %v2778
        %2811 = vst [vmem:[%s204 + $0x80] sm:$0xff] %v2779
        %2812 = vst [vmem:[%s204 + $0x88] sm:$0xff] %v2780
        %2813 = vst [vmem:[%s204 + $0x90] sm:$0xff] %v2781
        %2814 = vst [vmem:[%s204 + $0x98] sm:$0xff] %v2782
        %2815 = vst [vmem:[%s204 + $0xa0] sm:$0xff] %v2783
        %2816 = vst [vmem:[%s204 + $0xa8] sm:$0xff] %v2784
        %2817 = vst [vmem:[%s204 + $0xb0] sm:$0xff] %v2785
        %2818 = vst [vmem:[%s204 + $0xb8] sm:$0xff] %v2786
        %2819 = vst [vmem:[%s204 + $0xc0] sm:$0xff] %v2787
        %2820 = vst [vmem:[%s204 + $0xc8] sm:$0xff] %v2788
        %2821 = vst [vmem:[%s204 + $0xd0] sm:$0xff] %v2789
        %2822 = vst [vmem:[%s204 + $0xd8] sm:$0xff] %v2790
        %2823 = vst [vmem:[%s204 + $0xe0] sm:$0xff] %v2791
        %2824 = vst [vmem:[%s204 + $0xe8] sm:$0xff] %v2792
        %2825 = vst [vmem:[%s204 + $0xf0] sm:$0xff] %v2793
        %2826 = vst [vmem:[%s204 + $0xf8] sm:$0xff] %v2794
        %s2827 = sand.u32 %s129, 1
        %s2828 = scalar_lea.sflag [#allocation3], %s2827
        %s2829 = sand.u32 %s129, 1
        %s2830 = smul.addr %s2829, 256
        %s2831 = scalar_lea.vmem [#allocation2], %s2830
        // Predicated region
        $region37: #{tpu_custom_call.1} parent=35 // pred_check
          %p2832 = pneg %p139
        $region38: #{tpu_custom_call.1} parent=35 // pred_check_branch
          %2834 = sbr.rel (%p2832) target = $region40
        $region39: #{tpu_custom_call.1} parent=35 // pred_region
          %s2835 = smul.u32 16, %s23
          %2837 = vsyncadd %s2828, 0
          %s2838 = smul.addr %s2835, 2
          %s2839 = smul.addr %s22, 32
          %s2840 = sadd.s32 %s2838, %s2839
          %s2841 = smul.addr %s2840, 8
          %s2842 = scalar_lea.hbm %s4, %s2841
          %s2843 = sshll.u32 %s2831, 4
          %s2844 = int_to_ptr.vmem [resolvable:$true] %s2843
          %s2845 = sshll.u32 %s2842, 4
          %s2846 = int_to_ptr.hbm [resolvable:$true] %s2845
          %2851 = dma.vmem_to_hbm [thread:$0]  %s2844, 4096, %s2846, %s2828, 128, 128, 8
        $region40: #{tpu_custom_call.1} parent=35 // pred_fallthru
          _
      $region36: #{tpu_custom_call.1} parent=5 // pred_fallthru
        _
      %p2852 = scmp.le.s32.totalorder 2, %s13
      // Predicated region
      $region41: #{tpu_custom_call.1} parent=5 // pred_check
        %p2853 = pneg %p2852
      $region42: #{tpu_custom_call.1} parent=5 // pred_check_branch
        %2855 = sbr.rel (%p2853) target = $region44
      $region43: #{tpu_custom_call.1} parent=5 // pred_region
        %s2856 = ssub.s32 %s13, 2
        // Predicated region
        $region45: #{tpu_custom_call.1} parent=43 // pred_check
          %p2857 = pneg %p145
        $region46: #{tpu_custom_call.1} parent=43 // pred_check_branch
          %2859 = sbr.rel (%p2857) target = $region48
        $region47: #{tpu_custom_call.1} parent=43 // pred_region
          %s2860 = sand.u32 %s130, 1
          %s2861 = scalar_lea.sflag [#allocation3], %s2860
          %s2862 = sand.u32 %s130, 1
          %s2863 = smul.addr %s2862, 256
          %s2864 = scalar_lea.vmem [#allocation2], %s2863
          %2866 = dma.done %s2861, 4096
        $region48: #{tpu_custom_call.1} parent=43 // pred_fallthru
          _
      $region44: #{tpu_custom_call.1} parent=5 // pred_fallthru
        _
    $region6: #{tpu_custom_call.1} parent=1 // loop_footer
      %s17 = sadd.s32 1, %s13
    $region7: #{tpu_custom_call.1} parent=1 // loop_footer_branch
      %12 = sbr.rel target = $region3
    $region8: #{tpu_custom_call.1} parent=1 // loop_exit
      _
    %2867 = vsyncpa [#allocation3], 1
    %s2868 = scalar_lea.sflag [#allocation3], 1
    %2869 = vsyncpa %s2868, 1

</llo_original>
